<compile_context>
chip_gen: v6e
topology: v6e:2x2x1
jax: 0.10.0
libtpu: 0.0.40
codegen_flags: <defaults>
</compile_context>

<pallas_src>
import functools

import jax
import jax.numpy as jnp
import numpy as np
from jax.experimental import pallas as pl
from jax.experimental.pallas import tpu as pltpu


# ----------------------------------------------------------------------------
# Pallas kernel: fused (Co, K) @ (K, M) matmul + bias + ReLU, bf16 output.
# Operands arrive in bf16, accumulation is f32 on the MXU.
# ----------------------------------------------------------------------------
def _conv_matmul_kernel(w_ref, p_ref, b_ref, o_ref):
    acc = jnp.dot(w_ref[...], p_ref[...], preferred_element_type=jnp.float32)
    acc = jnp.maximum(acc + b_ref[...], 0.0)       # (Co, 1) bias broadcast
    o_ref[...] = acc.astype(o_ref.dtype)


def _choose_tn(M):
    """Largest lane tile in {512,256,128} giving >=2 grid steps, else full M."""
    for cand in (512, 256, 128):
        if M % cand == 0 and M // cand >= 2:
            return cand
    return M


def conv_matmul_bias_relu(w_mat, patches, b):
    """w_mat (Co, K) bf16 @ patches (K, M) bf16 + b, ReLU.  Output (Co, M) bf16."""
    Co, K = w_mat.shape
    K2, M = patches.shape
    assert K == K2
    tn = _choose_tn(M)
    grid = (M // tn,)
    return pl.pallas_call(
        _conv_matmul_kernel,
        out_shape=jax.ShapeDtypeStruct((Co, M), jnp.bfloat16),
        grid_spec=pltpu.PrefetchScalarGridSpec(
            num_scalar_prefetch=0,
            grid=grid,
            in_specs=[
                pl.BlockSpec((Co, K), lambda i: (0, 0)),   # weights (resident)
                pl.BlockSpec((K, tn), lambda i: (0, i)),   # im2col patches
                pl.BlockSpec((Co, 1), lambda i: (0, 0)),   # bias (resident)
            ],
            out_specs=pl.BlockSpec((Co, tn), lambda i: (0, i)),
        ),
        compiler_params=pltpu.CompilerParams(
            dimension_semantics=("parallel",)),
    )(w_mat, patches, b.reshape(Co, 1).astype(jnp.float32))


# ----------------------------------------------------------------------------
# Wrapper-side im2col for Conv2d(k=4, s=2, p=1) on C-major bf16 activations.
# ----------------------------------------------------------------------------
def _im2col(act_cbhw, *, transposed=False):
    """act (Ci, B, H, W) bf16.

    transposed=False: returns (16*Ci, B*OH*OW), rows (ky,kx,ci), cols (b,oy,ox).
    transposed=True : returns (OH*OW*B, 16*Ci), rows (oy,ox,b), cols (ky,kx,ci).
    """
    Ci, B, H, W = act_cbhw.shape
    OH, OW = H // 2, W // 2
    xp = jnp.pad(act_cbhw, ((0, 0), (0, 0), (1, 1), (1, 1)))
    taps = [xp[:, :, ky::2, kx::2][:, :, :OH, :OW]
            for ky in range(4) for kx in range(4)]
    p = jnp.stack(taps, axis=0)                         # (16, Ci, B, OH, OW)
    if not transposed:
        return p.reshape(16 * Ci, B * OH * OW)
    p = p.transpose(3, 4, 2, 0, 1)                      # (OH, OW, B, 16, Ci)
    return p.reshape(OH * OW * B, 16 * Ci)


def conv2d_s2(act_cbhw, w, b):
    """Conv2d(Ci, Co, 4, 2, pad=1) + ReLU on (Ci,B,H,W) bf16 -> (Co,B,H/2,W/2) bf16."""
    Ci, B, H, W = act_cbhw.shape
    Co = w.shape[0]
    patches = _im2col(act_cbhw)                                       # (16Ci, M)
    w_mat = w.transpose(0, 2, 3, 1).reshape(Co, 16 * Ci).astype(jnp.bfloat16)
    y = conv_matmul_bias_relu(w_mat, patches, b)                      # (Co, M) bf16
    return y.reshape(Co, B, H // 2, W // 2)


# ----------------------------------------------------------------------------
# Fused tail kernel: conv4 + flatten + fc -> ReLU -> [fc_mean | fc_logvar].
# Everything VMEM resident, single grid step.  The PyTorch flatten order
# (co4*16 + s) is handled by a wrapper-side permutation of fc_w plus 16
# partial dots over dense static slices -- no in-kernel relayout needed.
# ----------------------------------------------------------------------------
def _tail_kernel(p4_ref, w4_ref, b4_ref, fcw_ref, fcb_ref, w2_ref, b2_ref,
                 o_ref, *, batch):
    n_spatial, _, hidden = fcw_ref.shape                # (16, Co4, 256)
    # conv4: (S*B, K4) @ (K4, Co4), bias + ReLU, f32 accumulate.
    y4 = jnp.dot(p4_ref[...], w4_ref[...], preferred_element_type=jnp.float32)
    y4 = jnp.maximum(y4 + b4_ref[...], 0.0)             # (S*B, Co4)
    # fc: h[b, r] = sum_{co,s} fc_w[r, co*16+s] * y4[s*B+b, co]
    h = jnp.zeros((batch, hidden), jnp.float32)
    for s in range(n_spatial):                          # static unroll (16)
        y4s = y4[s * batch:(s + 1) * batch, :].astype(jnp.bfloat16)   # (B, Co4)
        h = h + jnp.dot(y4s, fcw_ref[s], preferred_element_type=jnp.float32)
    h = jnp.maximum(h + fcb_ref[...], 0.0).astype(jnp.bfloat16)       # (B, 256)
    out = jnp.dot(h, w2_ref[...], preferred_element_type=jnp.float32)
    o_ref[...] = out + b2_ref[...]                      # (B, 2L)


def tail_forward(act3, p):
    """act3 (64, B, 8, 8) bf16 -> (B, 2*n_latents) f32 = [mean | logvar]."""
    Ci, B, H, W = act3.shape
    S = (H // 2) * (W // 2)                                   # 16
    K4 = 16 * Ci                                              # 1024
    Co4 = p["conv4_w"].shape[0]                               # 64
    hidden = p["fc_w"].shape[0]                               # 256
    L = p["fc_mean_w"].shape[0]

    p4t = _im2col(act3, transposed=True)                      # (S*B, K4) bf16
    w4t = p["conv4_w"].transpose(2, 3, 1, 0).reshape(K4, Co4).astype(jnp.bfloat16)
    b4 = p["conv4_b"].reshape(1, Co4).astype(jnp.float32)
    # fc_w[r, co*S + s] -> (s, co, r); tiny, done once per call inside jit.
    fcw = p["fc_w"].reshape(hidden, Co4, S).transpose(2, 1, 0).astype(jnp.bfloat16)
    fcb = p["fc_b"].reshape(1, hidden).astype(jnp.float32)
    w2t = jnp.concatenate([p["fc_mean_w"], p["fc_logvar_w"]],
                          axis=0).T.astype(jnp.bfloat16)      # (256, 2L)
    b2 = jnp.concatenate([p["fc_mean_b"], p["fc_logvar_b"]],
                         axis=0).reshape(1, 2 * L).astype(jnp.float32)

    return pl.pallas_call(
        functools.partial(_tail_kernel, batch=B),
        out_shape=jax.ShapeDtypeStruct((B, 2 * L), jnp.float32),
        grid_spec=pltpu.PrefetchScalarGridSpec(
            num_scalar_prefetch=0,
            grid=(1,),
            in_specs=[
                pl.BlockSpec((S * B, K4), lambda i: (0, 0)),
                pl.BlockSpec((K4, Co4), lambda i: (0, 0)),
                pl.BlockSpec((1, Co4), lambda i: (0, 0)),
                pl.BlockSpec((S, Co4, hidden), lambda i: (0, 0, 0)),
                pl.BlockSpec((1, hidden), lambda i: (0, 0)),
                pl.BlockSpec((hidden, 2 * L), lambda i: (0, 0)),
                pl.BlockSpec((1, 2 * L), lambda i: (0, 0)),
            ],
            out_specs=pl.BlockSpec((B, 2 * L), lambda i: (0, 0)),
        ),
        compiler_params=pltpu.CompilerParams(
            dimension_semantics=("arbitrary",)),
    )(p4t, w4t, b4, fcw, fcb, w2t, b2)


# ----------------------------------------------------------------------------
# Full encoder forward
# ----------------------------------------------------------------------------
@jax.jit
def encoder_forward(x, p):
    n_latents = p["fc_mean_w"].shape[0]
    # NCHW -> C-major bf16 once; conv activations stay (C, B, H, W) bf16.
    act = x.transpose(1, 0, 2, 3).astype(jnp.bfloat16)
    act = conv2d_s2(act, p["conv1_w"], p["conv1_b"])   # (32, B, 32, 32)
    act = conv2d_s2(act, p["conv2_w"], p["conv2_b"])   # (32, B, 16, 16)
    act = conv2d_s2(act, p["conv3_w"], p["conv3_b"])   # (64, B,  8,  8)
    out = tail_forward(act, p)                         # (B, 2L) f32
    return out[:, :n_latents], out[:, n_latents:]


# ----------------------------------------------------------------------------
# Deterministic synthetic parameters (shapes from the PyTorch __init__)
# ----------------------------------------------------------------------------
def init_params(key, in_channels, n_latents):
    ks = jax.random.split(key, 14)

    def rnd(k, shape, fan_in):
        return (jax.random.normal(k, shape, jnp.float32) / np.sqrt(fan_in)).astype(jnp.float32)

    p = {}
    p["conv1_w"] = rnd(ks[0], (32, in_channels, 4, 4), in_channels * 16)
    p["conv1_b"] = rnd(ks[1], (32,), in_channels * 16)
    p["conv2_w"] = rnd(ks[2], (32, 32, 4, 4), 32 * 16)
    p["conv2_b"] = rnd(ks[3], (32,), 32 * 16)
    p["conv3_w"] = rnd(ks[4], (64, 32, 4, 4), 32 * 16)
    p["conv3_b"] = rnd(ks[5], (64,), 32 * 16)
    p["conv4_w"] = rnd(ks[6], (64, 64, 4, 4), 64 * 16)
    p["conv4_b"] = rnd(ks[7], (64,), 64 * 16)
    p["fc_w"] = rnd(ks[8], (256, 1024), 1024)
    p["fc_b"] = rnd(ks[9], (256,), 1024)
    p["fc_mean_w"] = rnd(ks[10], (n_latents, 256), 256)
    p["fc_mean_b"] = rnd(ks[11], (n_latents,), 256)
    p["fc_logvar_w"] = rnd(ks[12], (n_latents, 256), 256)
    p["fc_logvar_b"] = rnd(ks[13], (n_latents,), 256)
    return p


# ----------------------------------------------------------------------------
# Pure-JAX f32 reference (matches PyTorch semantics) for verification
# ----------------------------------------------------------------------------
def ref_forward(x, p):
    def conv(x, w, b):
        y = jax.lax.conv_general_dilated(
            x, w, window_strides=(2, 2), padding=[(1, 1), (1, 1)],
            dimension_numbers=("NCHW", "OIHW", "NCHW"))
        return jax.nn.relu(y + b.reshape(1, -1, 1, 1))

    h = conv(x, p["conv1_w"], p["conv1_b"])
    h = conv(h, p["conv2_w"], p["conv2_b"])
    h = conv(h, p["conv3_w"], p["conv3_b"])
    h = conv(h, p["conv4_w"], p["conv4_b"])
    flat = h.reshape(x.shape[0], 1024)
    hf = jax.nn.relu(flat @ p["fc_w"].T + p["fc_b"])
    mean = hf @ p["fc_mean_w"].T + p["fc_mean_b"]
    logvar = hf @ p["fc_logvar_w"].T + p["fc_logvar_b"]
    return mean, logvar


if __name__ == "__main__":
    B, in_channels, n_latents = 2, 3, 8   # 64x64 input is implied by fc(1024)
    root = jax.random.PRNGKey(0)
    k_params, k_x = jax.random.split(root)
    params = init_params(k_params, in_channels, n_latents)
    x = jax.random.normal(k_x, (B, in_channels, 64, 64), jnp.float32)

    mean, logvar = encoder_forward(x, params)
    mean = jax.block_until_ready(mean)
    logvar = jax.block_until_ready(logvar)
    assert mean.shape == (B, n_latents), mean.shape
    assert logvar.shape == (B, n_latents), logvar.shape

    ref_mean, ref_logvar = ref_forward(x, params)
    ref_mean = jax.block_until_ready(ref_mean)
    ref_logvar = jax.block_until_ready(ref_logvar)
    # bf16 MXU operands / bf16 inter-layer activations with f32 accumulation.
    np.testing.assert_allclose(np.asarray(mean), np.asarray(ref_mean), rtol=5e-2, atol=5e-2)
    np.testing.assert_allclose(np.asarray(logvar), np.asarray(ref_logvar), rtol=5e-2, atol=5e-2)

    print("KERNEL_OK")
</pallas_src>

<mosaic_0001>
module attributes {stable_mosaic.version = 11 : i64} {
  func.func @_conv_matmul_kernel(%arg0: i32, %arg1: memref<32x48xbf16, #tpu.memory_space<vmem>>, %arg2: memref<48x512xbf16, #tpu.memory_space<vmem>>, %arg3: memref<32x1xf32, #tpu.memory_space<vmem>>, %arg4: memref<32x512xbf16, #tpu.memory_space<vmem>>) attributes {dimension_semantics = [#tpu.dimension_semantics<parallel>], iteration_bounds = array<i64: 4>, scalar_prefetch = 0 : i64, scratch_operands = 0 : i64, tpu.core_type = #tpu.core_type<tc>, window_params = [{pipeline_mode = #tpu.pipeline_mode<synchronous>, transform_indices = @transform_0, window_bounds = array<i64: 32, 48>}, {transform_indices = @transform_1, window_bounds = array<i64: 48, 512>}, {pipeline_mode = #tpu.pipeline_mode<synchronous>, transform_indices = @transform_2, window_bounds = array<i64: 32, 1>}, {transform_indices = @transform_3, window_bounds = array<i64: 32, 512>}]} {
    %c0 = arith.constant 0 : index
    %c0_0 = arith.constant 0 : index
    %0 = vector.load %arg1[%c0, %c0_0] : memref<32x48xbf16, #tpu.memory_space<vmem>>, vector<32x48xbf16>
    %c0_1 = arith.constant 0 : index
    %c0_2 = arith.constant 0 : index
    %1 = vector.load %arg2[%c0_1, %c0_2] : memref<48x512xbf16, #tpu.memory_space<vmem>>, vector<48x512xbf16>
    %cst = arith.constant dense<0.000000e+00> : vector<32x512xf32>
    %2 = tpu.matmul %0, %1, %cst {dimension_numbers = #tpu.dot_dimension_numbers<[1], [0], [0], [1], [0, 0, 1, 1], [], []>} : vector<32x48xbf16>, vector<48x512xbf16>, vector<32x512xf32> -> vector<32x512xf32>
    %c0_3 = arith.constant 0 : index
    %c0_4 = arith.constant 0 : index
    %3 = vector.load %arg3[%c0_3, %c0_4] : memref<32x1xf32, #tpu.memory_space<vmem>>, vector<32x1xf32>
    %4 = vector.broadcast %3 : vector<32x1xf32> to vector<32x512xf32>
    %5 = arith.addf %2, %4 : vector<32x512xf32>
    %cst_5 = arith.constant 0.000000e+00 : f32
    %6 = vector.broadcast %cst_5 : f32 to vector<32x512xf32>
    %7 = arith.maximumf %5, %6 : vector<32x512xf32>
    %8 = arith.truncf %7 : vector<32x512xf32> to vector<32x512xbf16>
    %c0_6 = arith.constant 0 : index
    %c0_7 = arith.constant 0 : index
    %9 = vector.load %arg4[%c0_6, %c0_7] : memref<32x512xbf16, #tpu.memory_space<vmem>>, vector<32x512xbf16>
    tpu.vector_store %arg4[%c0_6, %c0_7], %8 {strides = array<i32>} : memref<32x512xbf16, #tpu.memory_space<vmem>>, vector<32x512xbf16>,
    return
  }
  func.func @transform_0(%arg0: i32) -> (i32, i32) {
    %c0_i32 = arith.constant 0 : i32
    %c0_i32_0 = arith.constant 0 : i32
    %c0_i32_1 = arith.constant 0 : i32
    return %c0_i32, %c0_i32_0 : i32, i32
  }
  func.func @transform_1(%arg0: i32) -> (i32, i32) {
    %c0_i32 = arith.constant 0 : i32
    %c0_i32_0 = arith.constant 0 : i32
    return %c0_i32, %arg0 : i32, i32
  }
  func.func @transform_2(%arg0: i32) -> (i32, i32) {
    %c0_i32 = arith.constant 0 : i32
    %c0_i32_0 = arith.constant 0 : i32
    %c0_i32_1 = arith.constant 0 : i32
    return %c0_i32, %c0_i32_0 : i32, i32
  }
  func.func @transform_3(%arg0: i32) -> (i32, i32) {
    %c0_i32 = arith.constant 0 : i32
    %c0_i32_0 = arith.constant 0 : i32
    return %c0_i32, %arg0 : i32, i32
  }
}

module attributes {stable_mosaic.version = 11 : i64} {
  func.func @_conv_matmul_kernel(%arg0: i32, %arg1: memref<32x512xbf16, #tpu.memory_space<vmem>>, %arg2: memref<512x256xbf16, #tpu.memory_space<vmem>>, %arg3: memref<32x1xf32, #tpu.memory_space<vmem>>, %arg4: memref<32x256xbf16, #tpu.memory_space<vmem>>) attributes {dimension_semantics = [#tpu.dimension_semantics<parallel>], iteration_bounds = array<i64: 2>, scalar_prefetch = 0 : i64, scratch_operands = 0 : i64, tpu.core_type = #tpu.core_type<tc>, window_params = [{pipeline_mode = #tpu.pipeline_mode<synchronous>, transform_indices = @transform_0, window_bounds = array<i64: 32, 512>}, {transform_indices = @transform_1, window_bounds = array<i64: 512, 256>}, {pipeline_mode = #tpu.pipeline_mode<synchronous>, transform_indices = @transform_2, window_bounds = array<i64: 32, 1>}, {transform_indices = @transform_3, window_bounds = array<i64: 32, 256>}]} {
    %c0 = arith.constant 0 : index
    %c0_0 = arith.constant 0 : index
    %0 = vector.load %arg1[%c0, %c0_0] : memref<32x512xbf16, #tpu.memory_space<vmem>>, vector<32x512xbf16>
    %c0_1 = arith.constant 0 : index
    %c0_2 = arith.constant 0 : index
    %1 = vector.load %arg2[%c0_1, %c0_2] : memref<512x256xbf16, #tpu.memory_space<vmem>>, vector<512x256xbf16>
    %cst = arith.constant dense<0.000000e+00> : vector<32x256xf32>
    %2 = tpu.matmul %0, %1, %cst {dimension_numbers = #tpu.dot_dimension_numbers<[1], [0], [0], [1], [0, 0, 1, 1], [], []>} : vector<32x512xbf16>, vector<512x256xbf16>, vector<32x256xf32> -> vector<32x256xf32>
    %c0_3 = arith.constant 0 : index
    %c0_4 = arith.constant 0 : index
    %3 = vector.load %arg3[%c0_3, %c0_4] : memref<32x1xf32, #tpu.memory_space<vmem>>, vector<32x1xf32>
    %4 = vector.broadcast %3 : vector<32x1xf32> to vector<32x256xf32>
    %5 = arith.addf %2, %4 : vector<32x256xf32>
    %cst_5 = arith.constant 0.000000e+00 : f32
    %6 = vector.broadcast %cst_5 : f32 to vector<32x256xf32>
    %7 = arith.maximumf %5, %6 : vector<32x256xf32>
    %8 = arith.truncf %7 : vector<32x256xf32> to vector<32x256xbf16>
    %c0_6 = arith.constant 0 : index
    %c0_7 = arith.constant 0 : index
    %9 = vector.load %arg4[%c0_6, %c0_7] : memref<32x256xbf16, #tpu.memory_space<vmem>>, vector<32x256xbf16>
    tpu.vector_store %arg4[%c0_6, %c0_7], %8 {strides = array<i32>} : memref<32x256xbf16, #tpu.memory_space<vmem>>, vector<32x256xbf16>,
    return
  }
  func.func @transform_0(%arg0: i32) -> (i32, i32) {
    %c0_i32 = arith.constant 0 : i32
    %c0_i32_0 = arith.constant 0 : i32
    %c0_i32_1 = arith.constant 0 : i32
    return %c0_i32, %c0_i32_0 : i32, i32
  }
  func.func @transform_1(%arg0: i32) -> (i32, i32) {
    %c0_i32 = arith.constant 0 : i32
    %c0_i32_0 = arith.constant 0 : i32
    return %c0_i32, %arg0 : i32, i32
  }
  func.func @transform_2(%arg0: i32) -> (i32, i32) {
    %c0_i32 = arith.constant 0 : i32
    %c0_i32_0 = arith.constant 0 : i32
    %c0_i32_1 = arith.constant 0 : i32
    return %c0_i32, %c0_i32_0 : i32, i32
  }
  func.func @transform_3(%arg0: i32) -> (i32, i32) {
    %c0_i32 = arith.constant 0 : i32
    %c0_i32_0 = arith.constant 0 : i32
    return %c0_i32, %arg0 : i32, i32
  }
}

module attributes {stable_mosaic.version = 11 : i64} {
  func.func @_conv_matmul_kernel(%arg0: i32, %arg1: memref<64x512xbf16, #tpu.memory_space<vmem>>, %arg2: memref<512x128xbf16, #tpu.memory_space<vmem>>, %arg3: memref<64x1xf32, #tpu.memory_space<vmem>>, %arg4: memref<64x128xbf16, #tpu.memory_space<vmem>>) attributes {dimension_semantics = [#tpu.dimension_semantics<parallel>], iteration_bounds = array<i64: 1>, scalar_prefetch = 0 : i64, scratch_operands = 0 : i64, tpu.core_type = #tpu.core_type<tc>, window_params = [{pipeline_mode = #tpu.pipeline_mode<synchronous>, transform_indices = @transform_0, window_bounds = array<i64: 64, 512>}, {transform_indices = @transform_1, window_bounds = array<i64: 512, 128>}, {pipeline_mode = #tpu.pipeline_mode<synchronous>, transform_indices = @transform_2, window_bounds = array<i64: 64, 1>}, {transform_indices = @transform_3, window_bounds = array<i64: 64, 128>}]} {
    %c0 = arith.constant 0 : index
    %c0_0 = arith.constant 0 : index
    %0 = vector.load %arg1[%c0, %c0_0] : memref<64x512xbf16, #tpu.memory_space<vmem>>, vector<64x512xbf16>
    %c0_1 = arith.constant 0 : index
    %c0_2 = arith.constant 0 : index
    %1 = vector.load %arg2[%c0_1, %c0_2] : memref<512x128xbf16, #tpu.memory_space<vmem>>, vector<512x128xbf16>
    %cst = arith.constant dense<0.000000e+00> : vector<64x128xf32>
    %2 = tpu.matmul %0, %1, %cst {dimension_numbers = #tpu.dot_dimension_numbers<[1], [0], [0], [1], [0, 0, 1, 1], [], []>} : vector<64x512xbf16>, vector<512x128xbf16>, vector<64x128xf32> -> vector<64x128xf32>
    %c0_3 = arith.constant 0 : index
    %c0_4 = arith.constant 0 : index
    %3 = vector.load %arg3[%c0_3, %c0_4] : memref<64x1xf32, #tpu.memory_space<vmem>>, vector<64x1xf32>
    %4 = vector.broadcast %3 : vector<64x1xf32> to vector<64x128xf32>
    %5 = arith.addf %2, %4 : vector<64x128xf32>
    %cst_5 = arith.constant 0.000000e+00 : f32
    %6 = vector.broadcast %cst_5 : f32 to vector<64x128xf32>
    %7 = arith.maximumf %5, %6 : vector<64x128xf32>
    %8 = arith.truncf %7 : vector<64x128xf32> to vector<64x128xbf16>
    %c0_6 = arith.constant 0 : index
    %c0_7 = arith.constant 0 : index
    %9 = vector.load %arg4[%c0_6, %c0_7] : memref<64x128xbf16, #tpu.memory_space<vmem>>, vector<64x128xbf16>
    tpu.vector_store %arg4[%c0_6, %c0_7], %8 {strides = array<i32>} : memref<64x128xbf16, #tpu.memory_space<vmem>>, vector<64x128xbf16>,
    return
  }
  func.func @transform_0(%arg0: i32) -> (i32, i32) {
    %c0_i32 = arith.constant 0 : i32
    %c0_i32_0 = arith.constant 0 : i32
    %c0_i32_1 = arith.constant 0 : i32
    return %c0_i32, %c0_i32_0 : i32, i32
  }
  func.func @transform_1(%arg0: i32) -> (i32, i32) {
    %c0_i32 = arith.constant 0 : i32
    %c0_i32_0 = arith.constant 0 : i32
    return %c0_i32, %arg0 : i32, i32
  }
  func.func @transform_2(%arg0: i32) -> (i32, i32) {
    %c0_i32 = arith.constant 0 : i32
    %c0_i32_0 = arith.constant 0 : i32
    %c0_i32_1 = arith.constant 0 : i32
    return %c0_i32, %c0_i32_0 : i32, i32
  }
  func.func @transform_3(%arg0: i32) -> (i32, i32) {
    %c0_i32 = arith.constant 0 : i32
    %c0_i32_0 = arith.constant 0 : i32
    return %c0_i32, %arg0 : i32, i32
  }
}

module attributes {stable_mosaic.version = 11 : i64} {
  func.func @_tail_kernel(%arg0: i32, %arg1: memref<32x1024xbf16, #tpu.memory_space<vmem>>, %arg2: memref<1024x64xbf16, #tpu.memory_space<vmem>>, %arg3: memref<1x64xf32, #tpu.memory_space<vmem>>, %arg4: memref<16x64x256xbf16, #tpu.memory_space<vmem>>, %arg5: memref<1x256xf32, #tpu.memory_space<vmem>>, %arg6: memref<256x16xbf16, #tpu.memory_space<vmem>>, %arg7: memref<1x16xf32, #tpu.memory_space<vmem>>, %arg8: memref<2x16xf32, #tpu.memory_space<vmem>>) attributes {dimension_semantics = [#tpu.dimension_semantics<arbitrary>], iteration_bounds = array<i64: 1>, scalar_prefetch = 0 : i64, scratch_operands = 0 : i64, tpu.core_type = #tpu.core_type<tc>, window_params = [{pipeline_mode = #tpu.pipeline_mode<synchronous>, transform_indices = @transform_0, window_bounds = array<i64: 32, 1024>}, {pipeline_mode = #tpu.pipeline_mode<synchronous>, transform_indices = @transform_1, window_bounds = array<i64: 1024, 64>}, {pipeline_mode = #tpu.pipeline_mode<synchronous>, transform_indices = @transform_2, window_bounds = array<i64: 1, 64>}, {pipeline_mode = #tpu.pipeline_mode<synchronous>, transform_indices = @transform_3, window_bounds = array<i64: 16, 64, 256>}, {pipeline_mode = #tpu.pipeline_mode<synchronous>, transform_indices = @transform_4, window_bounds = array<i64: 1, 256>}, {pipeline_mode = #tpu.pipeline_mode<synchronous>, transform_indices = @transform_5, window_bounds = array<i64: 256, 16>}, {pipeline_mode = #tpu.pipeline_mode<synchronous>, transform_indices = @transform_6, window_bounds = array<i64: 1, 16>}, {pipeline_mode = #tpu.pipeline_mode<synchronous>, transform_indices = @transform_7, window_bounds = array<i64: 2, 16>}]} {
    %c0 = arith.constant 0 : index
    %c0_0 = arith.constant 0 : index
    %0 = vector.load %arg1[%c0, %c0_0] : memref<32x1024xbf16, #tpu.memory_space<vmem>>, vector<32x1024xbf16>
    %c0_1 = arith.constant 0 : index
    %c0_2 = arith.constant 0 : index
    %1 = vector.load %arg2[%c0_1, %c0_2] : memref<1024x64xbf16, #tpu.memory_space<vmem>>, vector<1024x64xbf16>
    %cst = arith.constant dense<0.000000e+00> : vector<32x64xf32>
    %2 = tpu.matmul %0, %1, %cst {dimension_numbers = #tpu.dot_dimension_numbers<[1], [0], [0], [1], [0, 0, 1, 1], [], []>} : vector<32x1024xbf16>, vector<1024x64xbf16>, vector<32x64xf32> -> vector<32x64xf32>
    %c0_3 = arith.constant 0 : index
    %c0_4 = arith.constant 0 : index
    %3 = vector.load %arg3[%c0_3, %c0_4] : memref<1x64xf32, #tpu.memory_space<vmem>>, vector<1x64xf32>
    %4 = vector.broadcast %3 : vector<1x64xf32> to vector<32x64xf32>
    %5 = arith.addf %2, %4 : vector<32x64xf32>
    %cst_5 = arith.constant 0.000000e+00 : f32
    %6 = vector.broadcast %cst_5 : f32 to vector<32x64xf32>
    %7 = arith.maximumf %5, %6 : vector<32x64xf32>
    %cst_6 = arith.constant 0.000000e+00 : f32
    %8 = vector.broadcast %cst_6 : f32 to vector<2x256xf32>
    %9 = vector.extract_strided_slice %7 {offsets = [0, 0], sizes = [2, 64], strides = [1, 1]} : vector<32x64xf32> to vector<2x64xf32>
    %10 = arith.truncf %9 : vector<2x64xf32> to vector<2x64xbf16>
    %c0_7 = arith.constant 0 : index
    %c0_8 = arith.constant 0 : index
    %c0_9 = arith.constant 0 : index
    %11 = vector.load %arg4[%c0_7, %c0_8, %c0_9] : memref<16x64x256xbf16, #tpu.memory_space<vmem>>, vector<1x64x256xbf16>
    %12 = vector.shape_cast %11 : vector<1x64x256xbf16> to vector<64x256xbf16>
    %cst_10 = arith.constant dense<0.000000e+00> : vector<2x256xf32>
    %13 = tpu.matmul %10, %12, %cst_10 {dimension_numbers = #tpu.dot_dimension_numbers<[1], [0], [0], [1], [0, 0, 1, 1], [], []>} : vector<2x64xbf16>, vector<64x256xbf16>, vector<2x256xf32> -> vector<2x256xf32>
    %14 = arith.addf %8, %13 : vector<2x256xf32>
    %15 = vector.extract_strided_slice %7 {offsets = [2, 0], sizes = [2, 64], strides = [1, 1]} : vector<32x64xf32> to vector<2x64xf32>
    %16 = arith.truncf %15 : vector<2x64xf32> to vector<2x64xbf16>
    %c1 = arith.constant 1 : index
    %c0_11 = arith.constant 0 : index
    %c0_12 = arith.constant 0 : index
    %17 = vector.load %arg4[%c1, %c0_11, %c0_12] : memref<16x64x256xbf16, #tpu.memory_space<vmem>>, vector<1x64x256xbf16>
    %18 = vector.shape_cast %17 : vector<1x64x256xbf16> to vector<64x256xbf16>
    %cst_13 = arith.constant dense<0.000000e+00> : vector<2x256xf32>
    %19 = tpu.matmul %16, %18, %cst_13 {dimension_numbers = #tpu.dot_dimension_numbers<[1], [0], [0], [1], [0, 0, 1, 1], [], []>} : vector<2x64xbf16>, vector<64x256xbf16>, vector<2x256xf32> -> vector<2x256xf32>
    %20 = arith.addf %14, %19 : vector<2x256xf32>
    %21 = vector.extract_strided_slice %7 {offsets = [4, 0], sizes = [2, 64], strides = [1, 1]} : vector<32x64xf32> to vector<2x64xf32>
    %22 = arith.truncf %21 : vector<2x64xf32> to vector<2x64xbf16>
    %c2 = arith.constant 2 : index
    %c0_14 = arith.constant 0 : index
    %c0_15 = arith.constant 0 : index
    %23 = vector.load %arg4[%c2, %c0_14, %c0_15] : memref<16x64x256xbf16, #tpu.memory_space<vmem>>, vector<1x64x256xbf16>
    %24 = vector.shape_cast %23 : vector<1x64x256xbf16> to vector<64x256xbf16>
    %cst_16 = arith.constant dense<0.000000e+00> : vector<2x256xf32>
    %25 = tpu.matmul %22, %24, %cst_16 {dimension_numbers = #tpu.dot_dimension_numbers<[1], [0], [0], [1], [0, 0, 1, 1], [], []>} : vector<2x64xbf16>, vector<64x256xbf16>, vector<2x256xf32> -> vector<2x256xf32>
    %26 = arith.addf %20, %25 : vector<2x256xf32>
    %27 = vector.extract_strided_slice %7 {offsets = [6, 0], sizes = [2, 64], strides = [1, 1]} : vector<32x64xf32> to vector<2x64xf32>
    %28 = arith.truncf %27 : vector<2x64xf32> to vector<2x64xbf16>
    %c3 = arith.constant 3 : index
    %c0_17 = arith.constant 0 : index
    %c0_18 = arith.constant 0 : index
    %29 = vector.load %arg4[%c3, %c0_17, %c0_18] : memref<16x64x256xbf16, #tpu.memory_space<vmem>>, vector<1x64x256xbf16>
    %30 = vector.shape_cast %29 : vector<1x64x256xbf16> to vector<64x256xbf16>
    %cst_19 = arith.constant dense<0.000000e+00> : vector<2x256xf32>
    %31 = tpu.matmul %28, %30, %cst_19 {dimension_numbers = #tpu.dot_dimension_numbers<[1], [0], [0], [1], [0, 0, 1, 1], [], []>} : vector<2x64xbf16>, vector<64x256xbf16>, vector<2x256xf32> -> vector<2x256xf32>
    %32 = arith.addf %26, %31 : vector<2x256xf32>
    %33 = vector.extract_strided_slice %7 {offsets = [8, 0], sizes = [2, 64], strides = [1, 1]} : vector<32x64xf32> to vector<2x64xf32>
    %34 = arith.truncf %33 : vector<2x64xf32> to vector<2x64xbf16>
    %c4 = arith.constant 4 : index
    %c0_20 = arith.constant 0 : index
    %c0_21 = arith.constant 0 : index
    %35 = vector.load %arg4[%c4, %c0_20, %c0_21] : memref<16x64x256xbf16, #tpu.memory_space<vmem>>, vector<1x64x256xbf16>
    %36 = vector.shape_cast %35 : vector<1x64x256xbf16> to vector<64x256xbf16>
    %cst_22 = arith.constant dense<0.000000e+00> : vector<2x256xf32>
    %37 = tpu.matmul %34, %36, %cst_22 {dimension_numbers = #tpu.dot_dimension_numbers<[1], [0], [0], [1], [0, 0, 1, 1], [], []>} : vector<2x64xbf16>, vector<64x256xbf16>, vector<2x256xf32> -> vector<2x256xf32>
    %38 = arith.addf %32, %37 : vector<2x256xf32>
    %39 = vector.extract_strided_slice %7 {offsets = [10, 0], sizes = [2, 64], strides = [1, 1]} : vector<32x64xf32> to vector<2x64xf32>
    %40 = arith.truncf %39 : vector<2x64xf32> to vector<2x64xbf16>
    %c5 = arith.constant 5 : index
    %c0_23 = arith.constant 0 : index
    %c0_24 = arith.constant 0 : index
    %41 = vector.load %arg4[%c5, %c0_23, %c0_24] : memref<16x64x256xbf16, #tpu.memory_space<vmem>>, vector<1x64x256xbf16>
    %42 = vector.shape_cast %41 : vector<1x64x256xbf16> to vector<64x256xbf16>
    %cst_25 = arith.constant dense<0.000000e+00> : vector<2x256xf32>
    %43 = tpu.matmul %40, %42, %cst_25 {dimension_numbers = #tpu.dot_dimension_numbers<[1], [0], [0], [1], [0, 0, 1, 1], [], []>} : vector<2x64xbf16>, vector<64x256xbf16>, vector<2x256xf32> -> vector<2x256xf32>
    %44 = arith.addf %38, %43 : vector<2x256xf32>
    %45 = vector.extract_strided_slice %7 {offsets = [12, 0], sizes = [2, 64], strides = [1, 1]} : vector<32x64xf32> to vector<2x64xf32>
    %46 = arith.truncf %45 : vector<2x64xf32> to vector<2x64xbf16>
    %c6 = arith.constant 6 : index
    %c0_26 = arith.constant 0 : index
    %c0_27 = arith.constant 0 : index
    %47 = vector.load %arg4[%c6, %c0_26, %c0_27] : memref<16x64x256xbf16, #tpu.memory_space<vmem>>, vector<1x64x256xbf16>
    %48 = vector.shape_cast %47 : vector<1x64x256xbf16> to vector<64x256xbf16>
    %cst_28 = arith.constant dense<0.000000e+00> : vector<2x256xf32>
    %49 = tpu.matmul %46, %48, %cst_28 {dimension_numbers = #tpu.dot_dimension_numbers<[1], [0], [0], [1], [0, 0, 1, 1], [], []>} : vector<2x64xbf16>, vector<64x256xbf16>, vector<2x256xf32> -> vector<2x256xf32>
    %50 = arith.addf %44, %49 : vector<2x256xf32>
    %51 = vector.extract_strided_slice %7 {offsets = [14, 0], sizes = [2, 64], strides = [1, 1]} : vector<32x64xf32> to vector<2x64xf32>
    %52 = arith.truncf %51 : vector<2x64xf32> to vector<2x64xbf16>
    %c7 = arith.constant 7 : index
    %c0_29 = arith.constant 0 : index
    %c0_30 = arith.constant 0 : index
    %53 = vector.load %arg4[%c7, %c0_29, %c0_30] : memref<16x64x256xbf16, #tpu.memory_space<vmem>>, vector<1x64x256xbf16>
    %54 = vector.shape_cast %53 : vector<1x64x256xbf16> to vector<64x256xbf16>
    %cst_31 = arith.constant dense<0.000000e+00> : vector<2x256xf32>
    %55 = tpu.matmul %52, %54, %cst_31 {dimension_numbers = #tpu.dot_dimension_numbers<[1], [0], [0], [1], [0, 0, 1, 1], [], []>} : vector<2x64xbf16>, vector<64x256xbf16>, vector<2x256xf32> -> vector<2x256xf32>
    %56 = arith.addf %50, %55 : vector<2x256xf32>
    %57 = vector.extract_strided_slice %7 {offsets = [16, 0], sizes = [2, 64], strides = [1, 1]} : vector<32x64xf32> to vector<2x64xf32>
    %58 = arith.truncf %57 : vector<2x64xf32> to vector<2x64xbf16>
    %c8 = arith.constant 8 : index
    %c0_32 = arith.constant 0 : index
    %c0_33 = arith.constant 0 : index
    %59 = vector.load %arg4[%c8, %c0_32, %c0_33] : memref<16x64x256xbf16, #tpu.memory_space<vmem>>, vector<1x64x256xbf16>
    %60 = vector.shape_cast %59 : vector<1x64x256xbf16> to vector<64x256xbf16>
    %cst_34 = arith.constant dense<0.000000e+00> : vector<2x256xf32>
    %61 = tpu.matmul %58, %60, %cst_34 {dimension_numbers = #tpu.dot_dimension_numbers<[1], [0], [0], [1], [0, 0, 1, 1], [], []>} : vector<2x64xbf16>, vector<64x256xbf16>, vector<2x256xf32> -> vector<2x256xf32>
    %62 = arith.addf %56, %61 : vector<2x256xf32>
    %63 = vector.extract_strided_slice %7 {offsets = [18, 0], sizes = [2, 64], strides = [1, 1]} : vector<32x64xf32> to vector<2x64xf32>
    %64 = arith.truncf %63 : vector<2x64xf32> to vector<2x64xbf16>
    %c9 = arith.constant 9 : index
    %c0_35 = arith.constant 0 : index
    %c0_36 = arith.constant 0 : index
    %65 = vector.load %arg4[%c9, %c0_35, %c0_36] : memref<16x64x256xbf16, #tpu.memory_space<vmem>>, vector<1x64x256xbf16>
    %66 = vector.shape_cast %65 : vector<1x64x256xbf16> to vector<64x256xbf16>
    %cst_37 = arith.constant dense<0.000000e+00> : vector<2x256xf32>
    %67 = tpu.matmul %64, %66, %cst_37 {dimension_numbers = #tpu.dot_dimension_numbers<[1], [0], [0], [1], [0, 0, 1, 1], [], []>} : vector<2x64xbf16>, vector<64x256xbf16>, vector<2x256xf32> -> vector<2x256xf32>
    %68 = arith.addf %62, %67 : vector<2x256xf32>
    %69 = vector.extract_strided_slice %7 {offsets = [20, 0], sizes = [2, 64], strides = [1, 1]} : vector<32x64xf32> to vector<2x64xf32>
    %70 = arith.truncf %69 : vector<2x64xf32> to vector<2x64xbf16>
    %c10 = arith.constant 10 : index
    %c0_38 = arith.constant 0 : index
    %c0_39 = arith.constant 0 : index
    %71 = vector.load %arg4[%c10, %c0_38, %c0_39] : memref<16x64x256xbf16, #tpu.memory_space<vmem>>, vector<1x64x256xbf16>
    %72 = vector.shape_cast %71 : vector<1x64x256xbf16> to vector<64x256xbf16>
    %cst_40 = arith.constant dense<0.000000e+00> : vector<2x256xf32>
    %73 = tpu.matmul %70, %72, %cst_40 {dimension_numbers = #tpu.dot_dimension_numbers<[1], [0], [0], [1], [0, 0, 1, 1], [], []>} : vector<2x64xbf16>, vector<64x256xbf16>, vector<2x256xf32> -> vector<2x256xf32>
    %74 = arith.addf %68, %73 : vector<2x256xf32>
    %75 = vector.extract_strided_slice %7 {offsets = [22, 0], sizes = [2, 64], strides = [1, 1]} : vector<32x64xf32> to vector<2x64xf32>
    %76 = arith.truncf %75 : vector<2x64xf32> to vector<2x64xbf16>
    %c11 = arith.constant 11 : index
    %c0_41 = arith.constant 0 : index
    %c0_42 = arith.constant 0 : index
    %77 = vector.load %arg4[%c11, %c0_41, %c0_42] : memref<16x64x256xbf16, #tpu.memory_space<vmem>>, vector<1x64x256xbf16>
    %78 = vector.shape_cast %77 : vector<1x64x256xbf16> to vector<64x256xbf16>
    %cst_43 = arith.constant dense<0.000000e+00> : vector<2x256xf32>
    %79 = tpu.matmul %76, %78, %cst_43 {dimension_numbers = #tpu.dot_dimension_numbers<[1], [0], [0], [1], [0, 0, 1, 1], [], []>} : vector<2x64xbf16>, vector<64x256xbf16>, vector<2x256xf32> -> vector<2x256xf32>
    %80 = arith.addf %74, %79 : vector<2x256xf32>
    %81 = vector.extract_strided_slice %7 {offsets = [24, 0], sizes = [2, 64], strides = [1, 1]} : vector<32x64xf32> to vector<2x64xf32>
    %82 = arith.truncf %81 : vector<2x64xf32> to vector<2x64xbf16>
    %c12 = arith.constant 12 : index
    %c0_44 = arith.constant 0 : index
    %c0_45 = arith.constant 0 : index
    %83 = vector.load %arg4[%c12, %c0_44, %c0_45] : memref<16x64x256xbf16, #tpu.memory_space<vmem>>, vector<1x64x256xbf16>
    %84 = vector.shape_cast %83 : vector<1x64x256xbf16> to vector<64x256xbf16>
    %cst_46 = arith.constant dense<0.000000e+00> : vector<2x256xf32>
    %85 = tpu.matmul %82, %84, %cst_46 {dimension_numbers = #tpu.dot_dimension_numbers<[1], [0], [0], [1], [0, 0, 1, 1], [], []>} : vector<2x64xbf16>, vector<64x256xbf16>, vector<2x256xf32> -> vector<2x256xf32>
    %86 = arith.addf %80, %85 : vector<2x256xf32>
    %87 = vector.extract_strided_slice %7 {offsets = [26, 0], sizes = [2, 64], strides = [1, 1]} : vector<32x64xf32> to vector<2x64xf32>
    %88 = arith.truncf %87 : vector<2x64xf32> to vector<2x64xbf16>
    %c13 = arith.constant 13 : index
    %c0_47 = arith.constant 0 : index
    %c0_48 = arith.constant 0 : index
    %89 = vector.load %arg4[%c13, %c0_47, %c0_48] : memref<16x64x256xbf16, #tpu.memory_space<vmem>>, vector<1x64x256xbf16>
    %90 = vector.shape_cast %89 : vector<1x64x256xbf16> to vector<64x256xbf16>
    %cst_49 = arith.constant dense<0.000000e+00> : vector<2x256xf32>
    %91 = tpu.matmul %88, %90, %cst_49 {dimension_numbers = #tpu.dot_dimension_numbers<[1], [0], [0], [1], [0, 0, 1, 1], [], []>} : vector<2x64xbf16>, vector<64x256xbf16>, vector<2x256xf32> -> vector<2x256xf32>
    %92 = arith.addf %86, %91 : vector<2x256xf32>
    %93 = vector.extract_strided_slice %7 {offsets = [28, 0], sizes = [2, 64], strides = [1, 1]} : vector<32x64xf32> to vector<2x64xf32>
    %94 = arith.truncf %93 : vector<2x64xf32> to vector<2x64xbf16>
    %c14 = arith.constant 14 : index
    %c0_50 = arith.constant 0 : index
    %c0_51 = arith.constant 0 : index
    %95 = vector.load %arg4[%c14, %c0_50, %c0_51] : memref<16x64x256xbf16, #tpu.memory_space<vmem>>, vector<1x64x256xbf16>
    %96 = vector.shape_cast %95 : vector<1x64x256xbf16> to vector<64x256xbf16>
    %cst_52 = arith.constant dense<0.000000e+00> : vector<2x256xf32>
    %97 = tpu.matmul %94, %96, %cst_52 {dimension_numbers = #tpu.dot_dimension_numbers<[1], [0], [0], [1], [0, 0, 1, 1], [], []>} : vector<2x64xbf16>, vector<64x256xbf16>, vector<2x256xf32> -> vector<2x256xf32>
    %98 = arith.addf %92, %97 : vector<2x256xf32>
    %99 = vector.extract_strided_slice %7 {offsets = [30, 0], sizes = [2, 64], strides = [1, 1]} : vector<32x64xf32> to vector<2x64xf32>
    %100 = arith.truncf %99 : vector<2x64xf32> to vector<2x64xbf16>
    %c15 = arith.constant 15 : index
    %c0_53 = arith.constant 0 : index
    %c0_54 = arith.constant 0 : index
    %101 = vector.load %arg4[%c15, %c0_53, %c0_54] : memref<16x64x256xbf16, #tpu.memory_space<vmem>>, vector<1x64x256xbf16>
    %102 = vector.shape_cast %101 : vector<1x64x256xbf16> to vector<64x256xbf16>
    %cst_55 = arith.constant dense<0.000000e+00> : vector<2x256xf32>
    %103 = tpu.matmul %100, %102, %cst_55 {dimension_numbers = #tpu.dot_dimension_numbers<[1], [0], [0], [1], [0, 0, 1, 1], [], []>} : vector<2x64xbf16>, vector<64x256xbf16>, vector<2x256xf32> -> vector<2x256xf32>
    %104 = arith.addf %98, %103 : vector<2x256xf32>
    %c0_56 = arith.constant 0 : index
    %c0_57 = arith.constant 0 : index
    %105 = vector.load %arg5[%c0_56, %c0_57] : memref<1x256xf32, #tpu.memory_space<vmem>>, vector<1x256xf32>
    %106 = vector.broadcast %105 : vector<1x256xf32> to vector<2x256xf32>
    %107 = arith.addf %104, %106 : vector<2x256xf32>
    %cst_58 = arith.constant 0.000000e+00 : f32
    %108 = vector.broadcast %cst_58 : f32 to vector<2x256xf32>
    %109 = arith.maximumf %107, %108 : vector<2x256xf32>
    %110 = arith.truncf %109 : vector<2x256xf32> to vector<2x256xbf16>
    %c0_59 = arith.constant 0 : index
    %c0_60 = arith.constant 0 : index
    %111 = vector.load %arg6[%c0_59, %c0_60] : memref<256x16xbf16, #tpu.memory_space<vmem>>, vector<256x16xbf16>
    %cst_61 = arith.constant dense<0.000000e+00> : vector<2x16xf32>
    %112 = tpu.matmul %110, %111, %cst_61 {dimension_numbers = #tpu.dot_dimension_numbers<[1], [0], [0], [1], [0, 0, 1, 1], [], []>} : vector<2x256xbf16>, vector<256x16xbf16>, vector<2x16xf32> -> vector<2x16xf32>
    %c0_62 = arith.constant 0 : index
    %c0_63 = arith.constant 0 : index
    %113 = vector.load %arg7[%c0_62, %c0_63] : memref<1x16xf32, #tpu.memory_space<vmem>>, vector<1x16xf32>
    %114 = vector.broadcast %113 : vector<1x16xf32> to vector<2x16xf32>
    %115 = arith.addf %112, %114 : vector<2x16xf32>
    %c0_64 = arith.constant 0 : index
    %c0_65 = arith.constant 0 : index
    %116 = vector.load %arg8[%c0_64, %c0_65] : memref<2x16xf32, #tpu.memory_space<vmem>>, vector<2x16xf32>
    tpu.vector_store %arg8[%c0_64, %c0_65], %115 {strides = array<i32>} : memref<2x16xf32, #tpu.memory_space<vmem>>, vector<2x16xf32>,
    return
  }
  func.func @transform_0(%arg0: i32) -> (i32, i32) {
    %c0_i32 = arith.constant 0 : i32
    %c0_i32_0 = arith.constant 0 : i32
    %c0_i32_1 = arith.constant 0 : i32
    return %c0_i32, %c0_i32_0 : i32, i32
  }
  func.func @transform_1(%arg0: i32) -> (i32, i32) {
    %c0_i32 = arith.constant 0 : i32
    %c0_i32_0 = arith.constant 0 : i32
    %c0_i32_1 = arith.constant 0 : i32
    return %c0_i32, %c0_i32_0 : i32, i32
  }
  func.func @transform_2(%arg0: i32) -> (i32, i32) {
    %c0_i32 = arith.constant 0 : i32
    %c0_i32_0 = arith.constant 0 : i32
    %c0_i32_1 = arith.constant 0 : i32
    return %c0_i32, %c0_i32_0 : i32, i32
  }
  func.func @transform_3(%arg0: i32) -> (i32, i32, i32) {
    %c0_i32 = arith.constant 0 : i32
    %c0_i32_0 = arith.constant 0 : i32
    %c0_i32_1 = arith.constant 0 : i32
    %c0_i32_2 = arith.constant 0 : i32
    return %c0_i32, %c0_i32_0, %c0_i32_1 : i32, i32, i32
  }
  func.func @transform_4(%arg0: i32) -> (i32, i32) {
    %c0_i32 = arith.constant 0 : i32
    %c0_i32_0 = arith.constant 0 : i32
    %c0_i32_1 = arith.constant 0 : i32
    return %c0_i32, %c0_i32_0 : i32, i32
  }
  func.func @transform_5(%arg0: i32) -> (i32, i32) {
    %c0_i32 = arith.constant 0 : i32
    %c0_i32_0 = arith.constant 0 : i32
    %c0_i32_1 = arith.constant 0 : i32
    return %c0_i32, %c0_i32_0 : i32, i32
  }
  func.func @transform_6(%arg0: i32) -> (i32, i32) {
    %c0_i32 = arith.constant 0 : i32
    %c0_i32_0 = arith.constant 0 : i32
    %c0_i32_1 = arith.constant 0 : i32
    return %c0_i32, %c0_i32_0 : i32, i32
  }
  func.func @transform_7(%arg0: i32) -> (i32, i32) {
    %c0_i32 = arith.constant 0 : i32
    %c0_i32_0 = arith.constant 0 : i32
    %c0_i32_1 = arith.constant 0 : i32
    return %c0_i32, %c0_i32_0 : i32, i32
  }
}

</mosaic_0001>

<llo_original>
// kernel: encoder_forward.4
$region0: #{encoder_forward.4}
  #allocation0 [shape = 'u32[]', space=smem, size = 0x4, offset = 0x4, fixed_abs, tag = 'smem constant byte address 0x4 - core index']
  #allocation1 [shape = 'u32[144,128]{1,0:T(1,128)}', space=vmem, size = 0x12000, scoped, tag = 'internal scratch']
  %s0 = inlined_call_operand.vmem [shape: bf16[32,48], index: 0, kind: input, shape index: {}]
  %s1 = inlined_call_operand.vmem [shape: bf16[48,2048], index: 1, kind: input, shape index: {}]
  %s2 = inlined_call_operand.vmem [shape: f32[32,1], index: 2, kind: input, shape index: {}]
  %s3 = inlined_call_operand.vmem [shape: bf16[32,2048], index: 3, kind: output, shape index: {}]
  %s4 = sld [smem:[#allocation0]]
  $region87: #{encoder_forward.4} parent=0
    _
  %s6 = ssub.s32 1, %s4
  %s7 = scalar_select 0, %s6, %s4
  $region1: #{encoder_forward.4} parent=0
    #allocation2 [shape = 'u8[98304]{0}', space=vmem, size = 0x18000, scoped, tag = 'input window, operand 1']
    #allocation3 [shape = 'u8[65536]{0}', space=vmem, size = 0x10000, scoped, tag = 'output window, operand 0']
    loop: start=0, step=1, limit=6
    $region2: #{encoder_forward.4} parent=1 // loop_pre_header
      _
    $region3: #{encoder_forward.4} parent=1 // loop_header
      %s9 = sphi 0, %s13
      %p10 = scmp.ge.s32.totalorder %s9, 6
      %s17 = sphi 0, %s17
      %s19 = sphi 0, %s17
      %s20 = sphi 0, %s19
      %s34 = sphi 0, %s20
      %s40 = sphi 0, %s42
      %s43 = sphi 0, %s40
      %s44 = sphi 0, %s43
      %s60 = sphi 0, %s44
      %s64 = sphi 0, %s64
      %s66 = sphi 0, %s64
      %s67 = sphi 0, %s66
      %s81 = sphi 0, %s67
      %s87 = sphi 0, %s89
      %s90 = sphi 0, %s87
      %s91 = sphi 0, %s90
      %s107 = sphi 0, %s91
    $region4: #{encoder_forward.4} parent=1 // loop_header_branch
      %12 = sbr.rel (%p10) target = $region8
    $region5: #{encoder_forward.4} parent=1 // loop_body
      %s14 = ssub.s32 %s9, 1
      %s15 = ssub.s32 %s9, 2
      %s16 = sadd.s32 %s9, 1
      %s18 = sadd.s32 %s17, 1
      %p21 = scmp.eq.s32.totalorder %s9, 3
      %p22 = scmp.ne.s32.totalorder %s17, %s19
      %p23 = scmp.eq.s32.totalorder %s9, 0
      %p24 = por %p22, %p23
      %p25 = scmp.ne.s32.totalorder %s17, %s19
      %p26 = scmp.eq.s32.totalorder %s14, 3
      %p27 = por %p25, %p26
      %p28 = scmp.ne.s32.totalorder %s19, %s20
      %p29 = scmp.eq.s32.totalorder %s14, 0
      %p30 = por %p28, %p29
      %p31 = scmp.ne.s32.totalorder %s19, %s20
      %p32 = scmp.eq.s32.totalorder %s15, 3
      %p33 = por %p31, %p32
      %p35 = scmp.ne.s32.totalorder %s20, %s34
      %p36 = scmp.eq.s32.totalorder %s15, 0
      %p37 = por %p35, %p36
      %s38 = ssub.s32 %s9, %s16
      %p39 = scmp.eq.s32.totalorder %s38, 0
      %s41 = sadd.s32 %s40, 1
      %s42 = scalar_select %p39, %s40, %s41
      %p45 = pneg %p39
      %p46 = scmp.eq.s32.totalorder %s9, 3
      %p47 = por %p45, %p46
      %p48 = scmp.ne.s32.totalorder %s40, %s43
      %p49 = scmp.eq.s32.totalorder %s9, 0
      %p50 = por %p48, %p49
      %p51 = scmp.ne.s32.totalorder %s40, %s43
      %p52 = scmp.eq.s32.totalorder %s14, 3
      %p53 = por %p51, %p52
      %p54 = scmp.ne.s32.totalorder %s43, %s44
      %p55 = scmp.eq.s32.totalorder %s14, 0
      %p56 = por %p54, %p55
      %p57 = scmp.ne.s32.totalorder %s43, %s44
      %p58 = scmp.eq.s32.totalorder %s15, 3
      %p59 = por %p57, %p58
      %p61 = scmp.ne.s32.totalorder %s44, %s60
      %p62 = scmp.eq.s32.totalorder %s15, 0
      %p63 = por %p61, %p62
      %s65 = sadd.s32 %s64, 1
      %p68 = scmp.eq.s32.totalorder %s9, 3
      %p69 = scmp.ne.s32.totalorder %s64, %s66
      %p70 = scmp.eq.s32.totalorder %s9, 0
      %p71 = por %p69, %p70
      %p72 = scmp.ne.s32.totalorder %s64, %s66
      %p73 = scmp.eq.s32.totalorder %s14, 3
      %p74 = por %p72, %p73
      %p75 = scmp.ne.s32.totalorder %s66, %s67
      %p76 = scmp.eq.s32.totalorder %s14, 0
      %p77 = por %p75, %p76
      %p78 = scmp.ne.s32.totalorder %s66, %s67
      %p79 = scmp.eq.s32.totalorder %s15, 3
      %p80 = por %p78, %p79
      %p82 = scmp.ne.s32.totalorder %s67, %s81
      %p83 = scmp.eq.s32.totalorder %s15, 0
      %p84 = por %p82, %p83
      %s85 = ssub.s32 %s9, %s16
      %p86 = scmp.eq.s32.totalorder %s85, 0
      %s88 = sadd.s32 %s87, 1
      %s89 = scalar_select %p86, %s87, %s88
      %p92 = pneg %p86
      %p93 = scmp.eq.s32.totalorder %s9, 3
      %p94 = por %p92, %p93
      %p95 = scmp.ne.s32.totalorder %s87, %s90
      %p96 = scmp.eq.s32.totalorder %s9, 0
      %p97 = por %p95, %p96
      %p98 = scmp.ne.s32.totalorder %s87, %s90
      %p99 = scmp.eq.s32.totalorder %s14, 3
      %p100 = por %p98, %p99
      %p101 = scmp.ne.s32.totalorder %s90, %s91
      %p102 = scmp.eq.s32.totalorder %s14, 0
      %p103 = por %p101, %p102
      %p104 = scmp.ne.s32.totalorder %s90, %s91
      %p105 = scmp.eq.s32.totalorder %s15, 3
      %p106 = por %p104, %p105
      %p108 = scmp.ne.s32.totalorder %s91, %s107
      %p109 = scmp.eq.s32.totalorder %s15, 0
      %p110 = por %p108, %p109
      %p111 = scmp.le.s32.totalorder 1, %s9
      %p112 = scmp.lt.s32.totalorder %s9, 5
      %p113 = pnand %p111, %p112
      %p114 = pneg %p113
      // Predicated region
      $region9: #{encoder_forward.4} parent=5 // pred_check
        _
      $region10: #{encoder_forward.4} parent=5 // pred_check_branch
        %116 = sbr.rel (%p113) target = $region12
      $region11: #{encoder_forward.4} parent=5 // pred_region
        %s117 = ssub.s32 %s9, 1
        // Predicated region
        $region13: #{encoder_forward.4} parent=11 // pred_check
          %p118 = pneg %p30
        $region14: #{encoder_forward.4} parent=11 // pred_check_branch
          %120 = sbr.rel (%p118) target = $region16
        $region15: #{encoder_forward.4} parent=11 // pred_region
          _
        $region16: #{encoder_forward.4} parent=11 // pred_fallthru
          _
        // Predicated region
        $region17: #{encoder_forward.4} parent=11 // pred_check
          %p121 = pneg %p77
        $region18: #{encoder_forward.4} parent=11 // pred_check_branch
          %123 = sbr.rel (%p121) target = $region20
        $region19: #{encoder_forward.4} parent=11 // pred_region
          _
        $region20: #{encoder_forward.4} parent=11 // pred_fallthru
          _
      $region12: #{encoder_forward.4} parent=5 // pred_fallthru
        _
      %p124 = scmp.lt.s32.totalorder %s9, 4
      // Predicated region
      $region21: #{encoder_forward.4} parent=5 // pred_check
        %p125 = pneg %p124
      $region22: #{encoder_forward.4} parent=5 // pred_check_branch
        %127 = sbr.rel (%p125) target = $region24
      $region23: #{encoder_forward.4} parent=5 // pred_region
        // Predicated region
        $region25: #{encoder_forward.4} parent=23 // pred_check
          %p128 = pneg %p50
        $region26: #{encoder_forward.4} parent=23 // pred_check_branch
          %130 = sbr.rel (%p128) target = $region28
        $region27: #{encoder_forward.4} parent=23 // pred_region
          %s131 = sand.u32 %s40, 1
          %s132 = sand.u32 %s40, 1
          %s133 = smul.addr %s132, 96
          %s134 = scalar_lea.vmem [#allocation2], %s133
          %s135 = smul.u32 4, %s9
          %s136 = smul.addr %s135, 4
          %s137 = scalar_lea.vmem %s1, %s136
          // Predicated region
          $region29: #{encoder_forward.4} parent=27 // pred_check
            _
          $region30: #{encoder_forward.4} parent=27 // pred_check_branch
            %139 = sbr.rel (0) target = $region32
          $region31: #{encoder_forward.4} parent=27 // pred_region
            // Predicated region
            $region33: #{encoder_forward.4} parent=31 // pred_check
              _
            $region34: #{encoder_forward.4} parent=31 // pred_check_branch
              %141 = sbr.rel (0) target = $region36
            $region35: #{encoder_forward.4} parent=31 // pred_region
              loop: start=0, step=1, limit=1
              $region37: #{encoder_forward.4} parent=35 // loop_pre_header
                _
              $region38: #{encoder_forward.4} parent=35 // loop_header
                %s143 = sphi 0, %s147
                %p144 = scmp.ge.s32.totalorder %s143, 1
                %s148 = sphi %s137, %s137
                %s149 = sphi %s134, %s134
              $region39: #{encoder_forward.4} parent=35 // loop_header_branch
                %146 = sbr.rel (%p144) target = $region43
              $region40: #{encoder_forward.4} parent=35 // loop_body
                %v150 = vld [vmem:[%s148] sm:$0xff]
                %151 = vst [vmem:[%s149] sm:$0xff] %v150
                %v152 = vld [vmem:[%s148 + $0x8] sm:$0xff]
                %153 = vst [vmem:[%s149 + $0x8] sm:$0xff] %v152
                %v154 = vld [vmem:[%s148 + $0x40] sm:$0xff]
                %155 = vst [vmem:[%s149 + $0x10] sm:$0xff] %v154
                %v156 = vld [vmem:[%s148 + $0x48] sm:$0xff]
                %157 = vst [vmem:[%s149 + $0x18] sm:$0xff] %v156
                %v158 = vld [vmem:[%s148 + $0x80] sm:$0xff]
                %159 = vst [vmem:[%s149 + $0x20] sm:$0xff] %v158
                %v160 = vld [vmem:[%s148 + $0x88] sm:$0xff]
                %161 = vst [vmem:[%s149 + $0x28] sm:$0xff] %v160
                %v162 = vld [vmem:[%s148 + $0xc0] sm:$0xff]
                %163 = vst [vmem:[%s149 + $0x30] sm:$0xff] %v162
                %v164 = vld [vmem:[%s148 + $0xc8] sm:$0xff]
                %165 = vst [vmem:[%s149 + $0x38] sm:$0xff] %v164
                %v166 = vld [vmem:[%s148 + $0x100] sm:$0xff]
                %167 = vst [vmem:[%s149 + $0x40] sm:$0xff] %v166
                %v168 = vld [vmem:[%s148 + $0x108] sm:$0xff]
                %169 = vst [vmem:[%s149 + $0x48] sm:$0xff] %v168
                %v170 = vld [vmem:[%s148 + $0x140] sm:$0xff]
                %171 = vst [vmem:[%s149 + $0x50] sm:$0xff] %v170
                %v172 = vld [vmem:[%s148 + $0x148] sm:$0xff]
                %173 = vst [vmem:[%s149 + $0x58] sm:$0xff] %v172
              $region41: #{encoder_forward.4} parent=35 // loop_footer
                %s147 = sadd.s32 1, %s143
              $region42: #{encoder_forward.4} parent=35 // loop_footer_branch
                %142 = sbr.rel target = $region38
              $region43: #{encoder_forward.4} parent=35 // loop_exit
                _
            $region36: #{encoder_forward.4} parent=31 // pred_fallthru
              _
            // Predicated region
            $region44: #{encoder_forward.4} parent=31 // pred_check
              _
            $region45: #{encoder_forward.4} parent=31 // pred_check_branch
              %175 = sbr.rel target = $region47
            $region46: #{encoder_forward.4} parent=31 // pred_region
              _
            $region47: #{encoder_forward.4} parent=31 // pred_fallthru
              _
          $region32: #{encoder_forward.4} parent=27 // pred_fallthru
            _
          %176 = vnop
        $region28: #{encoder_forward.4} parent=23 // pred_fallthru
          _
      $region24: #{encoder_forward.4} parent=5 // pred_fallthru
        _
      %p177 = scmp.le.s32.totalorder 1, %s9
      %p178 = scmp.lt.s32.totalorder %s9, 5
      %p179 = pnand %p177, %p178
      %p180 = pneg %p179
      // Predicated region
      $region48: #{encoder_forward.4} parent=5 // pred_check
        _
      $region49: #{encoder_forward.4} parent=5 // pred_check_branch
        %182 = sbr.rel (%p179) target = $region51
      $region50: #{encoder_forward.4} parent=5 // pred_region
        %s183 = ssub.s32 %s9, 1
        %s184 = sand.u32 %s43, 1
        %s185 = sand.u32 %s43, 1
        %s186 = smul.addr %s185, 96
        %s187 = scalar_lea.vmem [#allocation2], %s186
        // Predicated region
        $region52: #{encoder_forward.4} parent=50 // pred_check
          %p188 = pneg %p56
        $region53: #{encoder_forward.4} parent=50 // pred_check_branch
          %190 = sbr.rel (%p188) target = $region55
        $region54: #{encoder_forward.4} parent=50 // pred_region
          _
        $region55: #{encoder_forward.4} parent=50 // pred_fallthru
          _
        %p191 = pneg %p30
        %p192 = pneg %p27
        %s193 = sand.u32 %s43, 1
        %s194 = sand.u32 %s43, 1
        %s195 = smul.addr %s194, 96
        %s196 = scalar_lea.vmem [#allocation2], %s195
        %p197 = pneg %p56
        %p198 = pneg %p53
        %p199 = pneg %p77
        %p200 = pneg %p74
        %p201 = pneg %p103
        %p202 = pneg %p100
        %s203 = sand.u32 %s90, 1
        %s204 = sand.u32 %s90, 1
        %s205 = smul.addr %s204, 64
        %s206 = scalar_lea.vmem [#allocation3], %s205
        %s207 = smul.u32 4, %s14
        %s208 = smul.u32 4, %s14
        %v210 = vld [vmem:[%s0] sm:$0xf]
        %v211 = vld [vmem:[%s0 + $0x4] sm:$0xf]
        %v212 = vld [vmem:[%s0 + $0x8] sm:$0xf]
        %v213 = vld [vmem:[%s0 + $0xc] sm:$0xf]
        %v214 = vld [vmem:[%s187] sm:$0xff]
        %v215 = vld [vmem:[%s187 + $0x8] sm:$0xff]
        %v216 = vld [vmem:[%s187 + $0x10] sm:$0xff]
        %v217 = vld [vmem:[%s187 + $0x18] sm:$0xff]
        %v218 = vld [vmem:[%s187 + $0x20] sm:$0xff]
        %v219 = vld [vmem:[%s187 + $0x28] sm:$0xff]
        %v220 = vld [vmem:[%s187 + $0x30] sm:$0xff]
        %v221 = vld [vmem:[%s187 + $0x38] sm:$0xff]
        %v222 = vld [vmem:[%s187 + $0x40] sm:$0xff]
        %v223 = vld [vmem:[%s187 + $0x48] sm:$0xff]
        %v224 = vld [vmem:[%s187 + $0x50] sm:$0xff]
        %v225 = vld [vmem:[%s187 + $0x58] sm:$0xff]
        %v226 = vld [vmem:[%s2] sm:$0xff]
        %v227 = vld [vmem:[%s2 + $0x8] sm:$0xff]
        %v228 = vld [vmem:[%s2 + $0x10] sm:$0xff]
        %v229 = vld [vmem:[%s2 + $0x18] sm:$0xff]
        %231 = vset.pattern.permute.xlu0 0
        %232 = vperm.xlu0 %231, %v226
        %v233 = vpop.permute.xlu0 %232
        %236 = vset.pattern.permute.xlu0 0
        %237 = vperm.xlu0 %236, %v227
        %v238 = vpop.permute.xlu0 %237
        %241 = vset.pattern.permute.xlu0 0
        %242 = vperm.xlu0 %241, %v228
        %v243 = vpop.permute.xlu0 %242
        %246 = vset.pattern.permute.xlu0 0
        %247 = vperm.xlu0 %246, %v229
        %v248 = vpop.permute.xlu0 %247
        %v254 = vunpack.c.l.b16 %v210
        %v255 = vunpack.c.l.b16 %v211
        %v256 = vunpack.c.l.b16 %v212
        %v257 = vunpack.c.l.b16 %v213
        %v258 = vpack.c.b16 %v255, %v254
        %v259 = vpack.c.b16 %v257, %v256
        %v272 = vunpack.c.l.b16 %v214
        %v273 = vunpack.c.h.b16 %v214
        %v274 = vunpack.c.l.b16 %v215
        %v275 = vunpack.c.h.b16 %v215
        %v276 = vunpack.c.l.b16 %v216
        %v277 = vunpack.c.h.b16 %v216
        %v278 = vunpack.c.l.b16 %v217
        %v279 = vunpack.c.h.b16 %v217
        %v280 = vunpack.c.l.b16 %v218
        %v281 = vunpack.c.h.b16 %v218
        %v282 = vunpack.c.l.b16 %v219
        %v283 = vunpack.c.h.b16 %v219
        %v284 = vunpack.c.l.b16 %v220
        %v285 = vunpack.c.h.b16 %v220
        %v286 = vunpack.c.l.b16 %v221
        %v287 = vunpack.c.h.b16 %v221
        %v288 = vunpack.c.l.b16 %v222
        %v289 = vunpack.c.h.b16 %v222
        %v290 = vunpack.c.l.b16 %v223
        %v291 = vunpack.c.h.b16 %v223
        %v292 = vunpack.c.l.b16 %v224
        %v293 = vunpack.c.h.b16 %v224
        %v294 = vunpack.c.l.b16 %v225
        %v295 = vunpack.c.h.b16 %v225
        %v296 = vpack.c.b16 %v276, %v272
        %v297 = vpack.c.b16 %v277, %v273
        %v298 = vpack.c.b16 %v278, %v274
        %v299 = vpack.c.b16 %v279, %v275
        %v300 = vpack.c.b16 %v284, %v280
        %v301 = vpack.c.b16 %v285, %v281
        %v302 = vpack.c.b16 %v286, %v282
        %v303 = vpack.c.b16 %v287, %v283
        %v304 = vpack.c.b16 %v292, %v288
        %v305 = vpack.c.b16 %v293, %v289
        %v306 = vpack.c.b16 %v294, %v290
        %v307 = vpack.c.b16 %v295, %v291
        %vm320 = vcmask 392192
        %v322 = vsel %vm320, %v258, 0
        %v325 = vsel %vm320, %v259, 0
        %327 = vmatprep.subr.bf16.mxu0 0
        %328 = vmatpush1.bf16.msra.mxu0 0
        %329 = vmatprep.subr.bf16.mxu0 0
        %330 = vmatpush1.bf16.msra.mxu0 0
        %331 = vmatprep.subr.bf16.mxu0 0
        %332 = vmatpush1.bf16.msra.mxu0 0
        %333 = vmatprep.subr.bf16.mxu0 0
        %334 = vmatpush1.bf16.msra.mxu0 0
        %335 = vmatprep.subr.bf16.mxu0 0
        %336 = vmatpush1.bf16.msra.mxu0 0
        %337 = vmatprep.subr.bf16.mxu0 %v305
        %338 = vmatpush1.bf16.msra.mxu0 %v304
        %339 = vmatprep.subr.bf16.mxu0 %v301
        %340 = vmatpush1.bf16.msra.mxu0 %v300
        %341 = vmatprep.subr.bf16.mxu0 %v297
        %342 = vmatpush1.bf16.msra.mxu0 %v296
        %343 = vmatprep.subr.bf16.mxu0 0
        %344 = vmatpush2.bf16.msra.mxu0 0
        %345 = vmatprep.subr.bf16.mxu0 0
        %346 = vmatpush2.bf16.msra.mxu0 0
        %347 = vmatprep.subr.bf16.mxu0 0
        %348 = vmatpush2.bf16.msra.mxu0 0
        %349 = vmatprep.subr.bf16.mxu0 0
        %350 = vmatpush2.bf16.msra.mxu0 0
        %351 = vmatprep.subr.bf16.mxu0 0
        %352 = vmatpush2.bf16.msra.mxu0 0
        %353 = vmatprep.subr.bf16.mxu0 0
        %354 = vmatpush2.bf16.msra.mxu0 0
        %355 = vmatprep.subr.bf16.mxu0 0
        %356 = vmatpush2.bf16.msra.mxu0 0
        %357 = vmatprep.subr.bf16.mxu0 0
        %358 = vmatpush2.bf16.msra.mxu0 0
        %359 = vmatprep.mubr.bf16.mxu0 0
        %360 = vmatmul.mubr.bf16.gmra.mxu0 %v322
        %v361 = vpop.f32.mrf.mxu0
        %v362 = vadd.f32 %v233, %v361
        %v363 = vpop.f32.mrf.mxu0
        %v364 = vadd.f32 %v233, %v363
        %v365 = vpop.f32.mrf.mxu0
        %v366 = vadd.f32 %v238, %v365
        %v367 = vpop.f32.mrf.mxu0
        %v368 = vadd.f32 %v238, %v367
        %369 = vmatprep.mubr.bf16.mxu0 0
        %370 = vmatmul.mubr.bf16.gmra.mxu0 %v325
        %v371 = vpop.f32.mrf.mxu0
        %v372 = vadd.f32 %v243, %v371
        %v373 = vpop.f32.mrf.mxu0
        %v374 = vadd.f32 %v243, %v373
        %v375 = vpop.f32.mrf.mxu0
        %v376 = vadd.f32 %v248, %v375
        %v377 = vpop.f32.mrf.mxu0
        %v378 = vadd.f32 %v248, %v377
        %379 = vdwg.mxu0
        %380 = vmatprep.subr.bf16.mxu0 0
        %381 = vmatpush1.bf16.msra.mxu0 0
        %382 = vmatprep.subr.bf16.mxu0 0
        %383 = vmatpush1.bf16.msra.mxu0 0
        %384 = vmatprep.subr.bf16.mxu0 0
        %385 = vmatpush1.bf16.msra.mxu0 0
        %386 = vmatprep.subr.bf16.mxu0 0
        %387 = vmatpush1.bf16.msra.mxu0 0
        %388 = vmatprep.subr.bf16.mxu0 0
        %389 = vmatpush1.bf16.msra.mxu0 0
        %390 = vmatprep.subr.bf16.mxu0 %v307
        %391 = vmatpush1.bf16.msra.mxu0 %v306
        %392 = vmatprep.subr.bf16.mxu0 %v303
        %393 = vmatpush1.bf16.msra.mxu0 %v302
        %394 = vmatprep.subr.bf16.mxu0 %v299
        %395 = vmatpush1.bf16.msra.mxu0 %v298
        %396 = vmatprep.subr.bf16.mxu0 0
        %397 = vmatpush2.bf16.msra.mxu0 0
        %398 = vmatprep.subr.bf16.mxu0 0
        %399 = vmatpush2.bf16.msra.mxu0 0
        %400 = vmatprep.subr.bf16.mxu0 0
        %401 = vmatpush2.bf16.msra.mxu0 0
        %402 = vmatprep.subr.bf16.mxu0 0
        %403 = vmatpush2.bf16.msra.mxu0 0
        %404 = vmatprep.subr.bf16.mxu0 0
        %405 = vmatpush2.bf16.msra.mxu0 0
        %406 = vmatprep.subr.bf16.mxu0 0
        %407 = vmatpush2.bf16.msra.mxu0 0
        %408 = vmatprep.subr.bf16.mxu0 0
        %409 = vmatpush2.bf16.msra.mxu0 0
        %410 = vmatprep.subr.bf16.mxu0 0
        %411 = vmatpush2.bf16.msra.mxu0 0
        %412 = vmatprep.mubr.bf16.mxu0 0
        %413 = vmatmul.mubr.bf16.gmra.mxu0 %v322
        %v414 = vpop.f32.mrf.mxu0
        %v415 = vadd.f32 %v233, %v414
        %v416 = vpop.f32.mrf.mxu0
        %v417 = vadd.f32 %v233, %v416
        %v418 = vpop.f32.mrf.mxu0
        %v419 = vadd.f32 %v238, %v418
        %v420 = vpop.f32.mrf.mxu0
        %v421 = vadd.f32 %v238, %v420
        %422 = vmatprep.mubr.bf16.mxu0 0
        %423 = vmatmul.mubr.bf16.gmra.mxu0 %v325
        %v424 = vpop.f32.mrf.mxu0
        %v425 = vadd.f32 %v243, %v424
        %v426 = vpop.f32.mrf.mxu0
        %v427 = vadd.f32 %v243, %v426
        %v428 = vpop.f32.mrf.mxu0
        %v429 = vadd.f32 %v248, %v428
        %v430 = vpop.f32.mrf.mxu0
        %v431 = vadd.f32 %v248, %v430
        %432 = vdwg.mxu0
        %v433 = vmax.f32 %v362, 0.0
        %v434 = vmax.f32 %v364, 0.0
        %v435 = vmax.f32 %v415, 0.0
        %v436 = vmax.f32 %v417, 0.0
        %v437 = vmax.f32 %v366, 0.0
        %v438 = vmax.f32 %v368, 0.0
        %v439 = vmax.f32 %v419, 0.0
        %v440 = vmax.f32 %v421, 0.0
        %v441 = vmax.f32 %v372, 0.0
        %v442 = vmax.f32 %v374, 0.0
        %v443 = vmax.f32 %v425, 0.0
        %v444 = vmax.f32 %v427, 0.0
        %v445 = vmax.f32 %v376, 0.0
        %v446 = vmax.f32 %v378, 0.0
        %v447 = vmax.f32 %v429, 0.0
        %v448 = vmax.f32 %v431, 0.0
        %v449 = vpack.c.bf16 %v437, %v433
        %v450 = vpack.c.bf16 %v438, %v434
        %v451 = vpack.c.bf16 %v439, %v435
        %v452 = vpack.c.bf16 %v440, %v436
        %v453 = vpack.c.bf16 %v445, %v441
        %v454 = vpack.c.bf16 %v446, %v442
        %v455 = vpack.c.bf16 %v447, %v443
        %v456 = vpack.c.bf16 %v448, %v444
        %v465 = vunpack.c.l.b16 %v449
        %v466 = vunpack.c.l.b16 %v450
        %v467 = vunpack.c.l.b16 %v451
        %v468 = vunpack.c.l.b16 %v452
        %v469 = vunpack.c.h.b16 %v449
        %v470 = vunpack.c.h.b16 %v450
        %v471 = vunpack.c.h.b16 %v451
        %v472 = vunpack.c.h.b16 %v452
        %v473 = vunpack.c.l.b16 %v453
        %v474 = vunpack.c.l.b16 %v454
        %v475 = vunpack.c.l.b16 %v455
        %v476 = vunpack.c.l.b16 %v456
        %v477 = vunpack.c.h.b16 %v453
        %v478 = vunpack.c.h.b16 %v454
        %v479 = vunpack.c.h.b16 %v455
        %v480 = vunpack.c.h.b16 %v456
        %v481 = vpack.c.b16 %v466, %v465
        %v482 = vpack.c.b16 %v468, %v467
        %v483 = vpack.c.b16 %v470, %v469
        %v484 = vpack.c.b16 %v472, %v471
        %v485 = vpack.c.b16 %v474, %v473
        %v486 = vpack.c.b16 %v476, %v475
        %v487 = vpack.c.b16 %v478, %v477
        %v488 = vpack.c.b16 %v480, %v479
        %497 = vst [vmem:[%s206] sm:$0xff] %v481
        %498 = vst [vmem:[%s206 + $0x8] sm:$0xff] %v482
        %499 = vst [vmem:[%s206 + $0x10] sm:$0xff] %v483
        %500 = vst [vmem:[%s206 + $0x18] sm:$0xff] %v484
        %501 = vst [vmem:[%s206 + $0x20] sm:$0xff] %v485
        %502 = vst [vmem:[%s206 + $0x28] sm:$0xff] %v486
        %503 = vst [vmem:[%s206 + $0x30] sm:$0xff] %v487
        %504 = vst [vmem:[%s206 + $0x38] sm:$0xff] %v488
        %s505 = sand.u32 %s90, 1
        %s506 = sand.u32 %s90, 1
        %s507 = smul.addr %s506, 64
        %s508 = scalar_lea.vmem [#allocation3], %s507
        // Predicated region
        $region56: #{encoder_forward.4} parent=50 // pred_check
          %p509 = pneg %p100
        $region57: #{encoder_forward.4} parent=50 // pred_check_branch
          %511 = sbr.rel (%p509) target = $region59
        $region58: #{encoder_forward.4} parent=50 // pred_region
          %s512 = smul.u32 4, %s14
          %s513 = smul.addr %s512, 4
          %s514 = scalar_lea.vmem %s3, %s513
          // Predicated region
          $region60: #{encoder_forward.4} parent=58 // pred_check
            _
          $region61: #{encoder_forward.4} parent=58 // pred_check_branch
            %516 = sbr.rel (0) target = $region63
          $region62: #{encoder_forward.4} parent=58 // pred_region
            // Predicated region
            $region64: #{encoder_forward.4} parent=62 // pred_check
              _
            $region65: #{encoder_forward.4} parent=62 // pred_check_branch
              %518 = sbr.rel (0) target = $region67
            $region66: #{encoder_forward.4} parent=62 // pred_region
              loop: start=0, step=1, limit=1
              $region68: #{encoder_forward.4} parent=66 // loop_pre_header
                _
              $region69: #{encoder_forward.4} parent=66 // loop_header
                %s520 = sphi 0, %s524
                %p521 = scmp.ge.s32.totalorder %s520, 1
                %s525 = sphi %s508, %s508
                %s526 = sphi %s514, %s514
              $region70: #{encoder_forward.4} parent=66 // loop_header_branch
                %523 = sbr.rel (%p521) target = $region74
              $region71: #{encoder_forward.4} parent=66 // loop_body
                %v527 = vld [vmem:[%s525] sm:$0xff]
                %528 = vst [vmem:[%s526] sm:$0xff] %v527
                %v529 = vld [vmem:[%s525 + $0x8] sm:$0xff]
                %530 = vst [vmem:[%s526 + $0x8] sm:$0xff] %v529
                %v531 = vld [vmem:[%s525 + $0x10] sm:$0xff]
                %532 = vst [vmem:[%s526 + $0x40] sm:$0xff] %v531
                %v533 = vld [vmem:[%s525 + $0x18] sm:$0xff]
                %534 = vst [vmem:[%s526 + $0x48] sm:$0xff] %v533
                %v535 = vld [vmem:[%s525 + $0x20] sm:$0xff]
                %536 = vst [vmem:[%s526 + $0x80] sm:$0xff] %v535
                %v537 = vld [vmem:[%s525 + $0x28] sm:$0xff]
                %538 = vst [vmem:[%s526 + $0x88] sm:$0xff] %v537
                %v539 = vld [vmem:[%s525 + $0x30] sm:$0xff]
                %540 = vst [vmem:[%s526 + $0xc0] sm:$0xff] %v539
                %v541 = vld [vmem:[%s525 + $0x38] sm:$0xff]
                %542 = vst [vmem:[%s526 + $0xc8] sm:$0xff] %v541
              $region72: #{encoder_forward.4} parent=66 // loop_footer
                %s524 = sadd.s32 1, %s520
              $region73: #{encoder_forward.4} parent=66 // loop_footer_branch
                %519 = sbr.rel target = $region69
              $region74: #{encoder_forward.4} parent=66 // loop_exit
                _
            $region67: #{encoder_forward.4} parent=62 // pred_fallthru
              _
            // Predicated region
            $region75: #{encoder_forward.4} parent=62 // pred_check
              _
            $region76: #{encoder_forward.4} parent=62 // pred_check_branch
              %544 = sbr.rel target = $region78
            $region77: #{encoder_forward.4} parent=62 // pred_region
              _
            $region78: #{encoder_forward.4} parent=62 // pred_fallthru
              _
          $region63: #{encoder_forward.4} parent=58 // pred_fallthru
            _
          %545 = vnop
        $region59: #{encoder_forward.4} parent=50 // pred_fallthru
          _
      $region51: #{encoder_forward.4} parent=5 // pred_fallthru
        _
      %p546 = scmp.le.s32.totalorder 2, %s9
      // Predicated region
      $region79: #{encoder_forward.4} parent=5 // pred_check
        %p547 = pneg %p546
      $region80: #{encoder_forward.4} parent=5 // pred_check_branch
        %549 = sbr.rel (%p547) target = $region82
      $region81: #{encoder_forward.4} parent=5 // pred_region
        %s550 = ssub.s32 %s9, 2
        // Predicated region
        $region83: #{encoder_forward.4} parent=81 // pred_check
          %p551 = pneg %p106
        $region84: #{encoder_forward.4} parent=81 // pred_check_branch
          %553 = sbr.rel (%p551) target = $region86
        $region85: #{encoder_forward.4} parent=81 // pred_region
          %s554 = sand.u32 %s91, 1
          %s555 = sand.u32 %s91, 1
          %s556 = smul.addr %s555, 64
          %s557 = scalar_lea.vmem [#allocation3], %s556
        $region86: #{encoder_forward.4} parent=81 // pred_fallthru
          _
      $region82: #{encoder_forward.4} parent=5 // pred_fallthru
        _
    $region6: #{encoder_forward.4} parent=1 // loop_footer
      %s13 = sadd.s32 1, %s9
    $region7: #{encoder_forward.4} parent=1 // loop_footer_branch
      %8 = sbr.rel target = $region3
    $region8: #{encoder_forward.4} parent=1 // loop_exit
      _

// kernel: encoder_forward.5
$region0: #{encoder_forward.5}
  #allocation0 [shape = 'u32[]', space=smem, size = 0x4, offset = 0x4, fixed_abs, tag = 'smem constant byte address 0x4 - core index']
  #allocation1 [shape = 'u32[144,128]{1,0:T(1,128)}', space=vmem, size = 0x12000, scoped, tag = 'internal scratch']
  %s0 = inlined_call_operand.vmem [shape: bf16[32,512], index: 0, kind: input, shape index: {}]
  %s1 = inlined_call_operand.vmem [shape: bf16[512,512], index: 1, kind: input, shape index: {}]
  %s2 = inlined_call_operand.vmem [shape: f32[32,1], index: 2, kind: input, shape index: {}]
  %s3 = inlined_call_operand.vmem [shape: bf16[32,512], index: 3, kind: output, shape index: {}]
  %s4 = sld [smem:[#allocation0]]
  $region117: #{encoder_forward.5} parent=0
    _
  %s6 = ssub.s32 1, %s4
  %s7 = scalar_select 0, %s6, %s4
  $region1: #{encoder_forward.5} parent=0
    #allocation2 [shape = 'u8[524288]{0}', space=vmem, size = 0x80000, scoped, tag = 'input window, operand 1']
    #allocation3 [shape = 'u8[32768]{0}', space=vmem, size = 0x8000, scoped, tag = 'output window, operand 0']
    loop: start=0, step=1, limit=4
    $region2: #{encoder_forward.5} parent=1 // loop_pre_header
      _
    $region3: #{encoder_forward.5} parent=1 // loop_header
      %s9 = sphi 0, %s13
      %p10 = scmp.ge.s32.totalorder %s9, 4
      %s17 = sphi 0, %s17
      %s19 = sphi 0, %s17
      %s20 = sphi 0, %s19
      %s34 = sphi 0, %s20
      %s40 = sphi 0, %s42
      %s43 = sphi 0, %s40
      %s44 = sphi 0, %s43
      %s60 = sphi 0, %s44
      %s64 = sphi 0, %s64
      %s66 = sphi 0, %s64
      %s67 = sphi 0, %s66
      %s81 = sphi 0, %s67
      %s87 = sphi 0, %s89
      %s90 = sphi 0, %s87
      %s91 = sphi 0, %s90
      %s107 = sphi 0, %s91
    $region4: #{encoder_forward.5} parent=1 // loop_header_branch
      %12 = sbr.rel (%p10) target = $region8
    $region5: #{encoder_forward.5} parent=1 // loop_body
      %s14 = ssub.s32 %s9, 1
      %s15 = ssub.s32 %s9, 2
      %s16 = sadd.s32 %s9, 1
      %s18 = sadd.s32 %s17, 1
      %p21 = scmp.eq.s32.totalorder %s9, 1
      %p22 = scmp.ne.s32.totalorder %s17, %s19
      %p23 = scmp.eq.s32.totalorder %s9, 0
      %p24 = por %p22, %p23
      %p25 = scmp.ne.s32.totalorder %s17, %s19
      %p26 = scmp.eq.s32.totalorder %s14, 1
      %p27 = por %p25, %p26
      %p28 = scmp.ne.s32.totalorder %s19, %s20
      %p29 = scmp.eq.s32.totalorder %s14, 0
      %p30 = por %p28, %p29
      %p31 = scmp.ne.s32.totalorder %s19, %s20
      %p32 = scmp.eq.s32.totalorder %s15, 1
      %p33 = por %p31, %p32
      %p35 = scmp.ne.s32.totalorder %s20, %s34
      %p36 = scmp.eq.s32.totalorder %s15, 0
      %p37 = por %p35, %p36
      %s38 = ssub.s32 %s9, %s16
      %p39 = scmp.eq.s32.totalorder %s38, 0
      %s41 = sadd.s32 %s40, 1
      %s42 = scalar_select %p39, %s40, %s41
      %p45 = pneg %p39
      %p46 = scmp.eq.s32.totalorder %s9, 1
      %p47 = por %p45, %p46
      %p48 = scmp.ne.s32.totalorder %s40, %s43
      %p49 = scmp.eq.s32.totalorder %s9, 0
      %p50 = por %p48, %p49
      %p51 = scmp.ne.s32.totalorder %s40, %s43
      %p52 = scmp.eq.s32.totalorder %s14, 1
      %p53 = por %p51, %p52
      %p54 = scmp.ne.s32.totalorder %s43, %s44
      %p55 = scmp.eq.s32.totalorder %s14, 0
      %p56 = por %p54, %p55
      %p57 = scmp.ne.s32.totalorder %s43, %s44
      %p58 = scmp.eq.s32.totalorder %s15, 1
      %p59 = por %p57, %p58
      %p61 = scmp.ne.s32.totalorder %s44, %s60
      %p62 = scmp.eq.s32.totalorder %s15, 0
      %p63 = por %p61, %p62
      %s65 = sadd.s32 %s64, 1
      %p68 = scmp.eq.s32.totalorder %s9, 1
      %p69 = scmp.ne.s32.totalorder %s64, %s66
      %p70 = scmp.eq.s32.totalorder %s9, 0
      %p71 = por %p69, %p70
      %p72 = scmp.ne.s32.totalorder %s64, %s66
      %p73 = scmp.eq.s32.totalorder %s14, 1
      %p74 = por %p72, %p73
      %p75 = scmp.ne.s32.totalorder %s66, %s67
      %p76 = scmp.eq.s32.totalorder %s14, 0
      %p77 = por %p75, %p76
      %p78 = scmp.ne.s32.totalorder %s66, %s67
      %p79 = scmp.eq.s32.totalorder %s15, 1
      %p80 = por %p78, %p79
      %p82 = scmp.ne.s32.totalorder %s67, %s81
      %p83 = scmp.eq.s32.totalorder %s15, 0
      %p84 = por %p82, %p83
      %s85 = ssub.s32 %s9, %s16
      %p86 = scmp.eq.s32.totalorder %s85, 0
      %s88 = sadd.s32 %s87, 1
      %s89 = scalar_select %p86, %s87, %s88
      %p92 = pneg %p86
      %p93 = scmp.eq.s32.totalorder %s9, 1
      %p94 = por %p92, %p93
      %p95 = scmp.ne.s32.totalorder %s87, %s90
      %p96 = scmp.eq.s32.totalorder %s9, 0
      %p97 = por %p95, %p96
      %p98 = scmp.ne.s32.totalorder %s87, %s90
      %p99 = scmp.eq.s32.totalorder %s14, 1
      %p100 = por %p98, %p99
      %p101 = scmp.ne.s32.totalorder %s90, %s91
      %p102 = scmp.eq.s32.totalorder %s14, 0
      %p103 = por %p101, %p102
      %p104 = scmp.ne.s32.totalorder %s90, %s91
      %p105 = scmp.eq.s32.totalorder %s15, 1
      %p106 = por %p104, %p105
      %p108 = scmp.ne.s32.totalorder %s91, %s107
      %p109 = scmp.eq.s32.totalorder %s15, 0
      %p110 = por %p108, %p109
      %p111 = scmp.le.s32.totalorder 1, %s9
      %p112 = scmp.lt.s32.totalorder %s9, 3
      %p113 = pnand %p111, %p112
      %p114 = pneg %p113
      // Predicated region
      $region9: #{encoder_forward.5} parent=5 // pred_check
        _
      $region10: #{encoder_forward.5} parent=5 // pred_check_branch
        %116 = sbr.rel (%p113) target = $region12
      $region11: #{encoder_forward.5} parent=5 // pred_region
        %s117 = ssub.s32 %s9, 1
        // Predicated region
        $region13: #{encoder_forward.5} parent=11 // pred_check
          %p118 = pneg %p30
        $region14: #{encoder_forward.5} parent=11 // pred_check_branch
          %120 = sbr.rel (%p118) target = $region16
        $region15: #{encoder_forward.5} parent=11 // pred_region
          _
        $region16: #{encoder_forward.5} parent=11 // pred_fallthru
          _
        // Predicated region
        $region17: #{encoder_forward.5} parent=11 // pred_check
          %p121 = pneg %p77
        $region18: #{encoder_forward.5} parent=11 // pred_check_branch
          %123 = sbr.rel (%p121) target = $region20
        $region19: #{encoder_forward.5} parent=11 // pred_region
          _
        $region20: #{encoder_forward.5} parent=11 // pred_fallthru
          _
      $region12: #{encoder_forward.5} parent=5 // pred_fallthru
        _
      %p124 = scmp.lt.s32.totalorder %s9, 2
      // Predicated region
      $region21: #{encoder_forward.5} parent=5 // pred_check
        %p125 = pneg %p124
      $region22: #{encoder_forward.5} parent=5 // pred_check_branch
        %127 = sbr.rel (%p125) target = $region24
      $region23: #{encoder_forward.5} parent=5 // pred_region
        // Predicated region
        $region25: #{encoder_forward.5} parent=23 // pred_check
          %p128 = pneg %p50
        $region26: #{encoder_forward.5} parent=23 // pred_check_branch
          %130 = sbr.rel (%p128) target = $region28
        $region27: #{encoder_forward.5} parent=23 // pred_region
          %s131 = sand.u32 %s40, 1
          %s132 = sand.u32 %s40, 1
          %s133 = smul.addr %s132, 512
          %s134 = scalar_lea.vmem [#allocation2], %s133
          %s135 = smul.u32 2, %s9
          %s136 = smul.addr %s135, 4
          %s137 = scalar_lea.vmem %s1, %s136
          // Predicated region
          $region29: #{encoder_forward.5} parent=27 // pred_check
            _
          $region30: #{encoder_forward.5} parent=27 // pred_check_branch
            %139 = sbr.rel (0) target = $region32
          $region31: #{encoder_forward.5} parent=27 // pred_region
            // Predicated region
            $region33: #{encoder_forward.5} parent=31 // pred_check
              _
            $region34: #{encoder_forward.5} parent=31 // pred_check_branch
              %141 = sbr.rel (0) target = $region36
            $region35: #{encoder_forward.5} parent=31 // pred_region
              // Predicated region
              $region48: #{encoder_forward.5} parent=35 // pred_check
                _
              $region49: #{encoder_forward.5} parent=35 // pred_check_branch
                %283 = sbr.rel (0) target = $region51
              $region50: #{encoder_forward.5} parent=35 // pred_region
                loop: start=0, step=1, limit=1
                $region52: #{encoder_forward.5} parent=50 // loop_pre_header
                  _
                $region53: #{encoder_forward.5} parent=50 // loop_header
                  %s285 = sphi 0, %s289
                  %p286 = scmp.ge.s32.totalorder %s285, 1
                  %s290 = sphi %s137, %s137
                  %s291 = sphi %s134, %s134
                $region54: #{encoder_forward.5} parent=50 // loop_header_branch
                  %288 = sbr.rel (%p286) target = $region58
                $region55: #{encoder_forward.5} parent=50 // loop_body
                  %v292 = vld [vmem:[%s290] sm:$0xff]
                  %293 = vst [vmem:[%s291] sm:$0xff] %v292
                  %v294 = vld [vmem:[%s290 + $0x10] sm:$0xff]
                  %295 = vst [vmem:[%s291 + $0x8] sm:$0xff] %v294
                  %v296 = vld [vmem:[%s290 + $0x20] sm:$0xff]
                  %297 = vst [vmem:[%s291 + $0x10] sm:$0xff] %v296
                  %v298 = vld [vmem:[%s290 + $0x30] sm:$0xff]
                  %299 = vst [vmem:[%s291 + $0x18] sm:$0xff] %v298
                  %v300 = vld [vmem:[%s290 + $0x40] sm:$0xff]
                  %301 = vst [vmem:[%s291 + $0x20] sm:$0xff] %v300
                  %v302 = vld [vmem:[%s290 + $0x50] sm:$0xff]
                  %303 = vst [vmem:[%s291 + $0x28] sm:$0xff] %v302
                  %v304 = vld [vmem:[%s290 + $0x60] sm:$0xff]
                  %305 = vst [vmem:[%s291 + $0x30] sm:$0xff] %v304
                  %v306 = vld [vmem:[%s290 + $0x70] sm:$0xff]
                  %307 = vst [vmem:[%s291 + $0x38] sm:$0xff] %v306
                  %v308 = vld [vmem:[%s290 + $0x80] sm:$0xff]
                  %309 = vst [vmem:[%s291 + $0x40] sm:$0xff] %v308
                  %v310 = vld [vmem:[%s290 + $0x90] sm:$0xff]
                  %311 = vst [vmem:[%s291 + $0x48] sm:$0xff] %v310
                  %v312 = vld [vmem:[%s290 + $0xa0] sm:$0xff]
                  %313 = vst [vmem:[%s291 + $0x50] sm:$0xff] %v312
                  %v314 = vld [vmem:[%s290 + $0xb0] sm:$0xff]
                  %315 = vst [vmem:[%s291 + $0x58] sm:$0xff] %v314
                  %v316 = vld [vmem:[%s290 + $0xc0] sm:$0xff]
                  %317 = vst [vmem:[%s291 + $0x60] sm:$0xff] %v316
                  %v318 = vld [vmem:[%s290 + $0xd0] sm:$0xff]
                  %319 = vst [vmem:[%s291 + $0x68] sm:$0xff] %v318
                  %v320 = vld [vmem:[%s290 + $0xe0] sm:$0xff]
                  %321 = vst [vmem:[%s291 + $0x70] sm:$0xff] %v320
                  %v322 = vld [vmem:[%s290 + $0xf0] sm:$0xff]
                  %323 = vst [vmem:[%s291 + $0x78] sm:$0xff] %v322
                  %v324 = vld [vmem:[%s290 + $0x100] sm:$0xff]
                  %325 = vst [vmem:[%s291 + $0x80] sm:$0xff] %v324
                  %v326 = vld [vmem:[%s290 + $0x110] sm:$0xff]
                  %327 = vst [vmem:[%s291 + $0x88] sm:$0xff] %v326
                  %v328 = vld [vmem:[%s290 + $0x120] sm:$0xff]
                  %329 = vst [vmem:[%s291 + $0x90] sm:$0xff] %v328
                  %v330 = vld [vmem:[%s290 + $0x130] sm:$0xff]
                  %331 = vst [vmem:[%s291 + $0x98] sm:$0xff] %v330
                  %v332 = vld [vmem:[%s290 + $0x140] sm:$0xff]
                  %333 = vst [vmem:[%s291 + $0xa0] sm:$0xff] %v332
                  %v334 = vld [vmem:[%s290 + $0x150] sm:$0xff]
                  %335 = vst [vmem:[%s291 + $0xa8] sm:$0xff] %v334
                  %v336 = vld [vmem:[%s290 + $0x160] sm:$0xff]
                  %337 = vst [vmem:[%s291 + $0xb0] sm:$0xff] %v336
                  %v338 = vld [vmem:[%s290 + $0x170] sm:$0xff]
                  %339 = vst [vmem:[%s291 + $0xb8] sm:$0xff] %v338
                  %v340 = vld [vmem:[%s290 + $0x180] sm:$0xff]
                  %341 = vst [vmem:[%s291 + $0xc0] sm:$0xff] %v340
                  %v342 = vld [vmem:[%s290 + $0x190] sm:$0xff]
                  %343 = vst [vmem:[%s291 + $0xc8] sm:$0xff] %v342
                  %v344 = vld [vmem:[%s290 + $0x1a0] sm:$0xff]
                  %345 = vst [vmem:[%s291 + $0xd0] sm:$0xff] %v344
                  %v346 = vld [vmem:[%s290 + $0x1b0] sm:$0xff]
                  %347 = vst [vmem:[%s291 + $0xd8] sm:$0xff] %v346
                  %v348 = vld [vmem:[%s290 + $0x1c0] sm:$0xff]
                  %349 = vst [vmem:[%s291 + $0xe0] sm:$0xff] %v348
                  %v350 = vld [vmem:[%s290 + $0x1d0] sm:$0xff]
                  %351 = vst [vmem:[%s291 + $0xe8] sm:$0xff] %v350
                  %v352 = vld [vmem:[%s290 + $0x1e0] sm:$0xff]
                  %353 = vst [vmem:[%s291 + $0xf0] sm:$0xff] %v352
                  %v354 = vld [vmem:[%s290 + $0x1f0] sm:$0xff]
                  %355 = vst [vmem:[%s291 + $0xf8] sm:$0xff] %v354
                  %v356 = vld [vmem:[%s290 + $0x200] sm:$0xff]
                  %357 = vst [vmem:[%s291 + $0x100] sm:$0xff] %v356
                  %v358 = vld [vmem:[%s290 + $0x210] sm:$0xff]
                  %359 = vst [vmem:[%s291 + $0x108] sm:$0xff] %v358
                  %v360 = vld [vmem:[%s290 + $0x220] sm:$0xff]
                  %361 = vst [vmem:[%s291 + $0x110] sm:$0xff] %v360
                  %v362 = vld [vmem:[%s290 + $0x230] sm:$0xff]
                  %363 = vst [vmem:[%s291 + $0x118] sm:$0xff] %v362
                  %v364 = vld [vmem:[%s290 + $0x240] sm:$0xff]
                  %365 = vst [vmem:[%s291 + $0x120] sm:$0xff] %v364
                  %v366 = vld [vmem:[%s290 + $0x250] sm:$0xff]
                  %367 = vst [vmem:[%s291 + $0x128] sm:$0xff] %v366
                  %v368 = vld [vmem:[%s290 + $0x260] sm:$0xff]
                  %369 = vst [vmem:[%s291 + $0x130] sm:$0xff] %v368
                  %v370 = vld [vmem:[%s290 + $0x270] sm:$0xff]
                  %371 = vst [vmem:[%s291 + $0x138] sm:$0xff] %v370
                  %v372 = vld [vmem:[%s290 + $0x280] sm:$0xff]
                  %373 = vst [vmem:[%s291 + $0x140] sm:$0xff] %v372
                  %v374 = vld [vmem:[%s290 + $0x290] sm:$0xff]
                  %375 = vst [vmem:[%s291 + $0x148] sm:$0xff] %v374
                  %v376 = vld [vmem:[%s290 + $0x2a0] sm:$0xff]
                  %377 = vst [vmem:[%s291 + $0x150] sm:$0xff] %v376
                  %v378 = vld [vmem:[%s290 + $0x2b0] sm:$0xff]
                  %379 = vst [vmem:[%s291 + $0x158] sm:$0xff] %v378
                  %v380 = vld [vmem:[%s290 + $0x2c0] sm:$0xff]
                  %381 = vst [vmem:[%s291 + $0x160] sm:$0xff] %v380
                  %v382 = vld [vmem:[%s290 + $0x2d0] sm:$0xff]
                  %383 = vst [vmem:[%s291 + $0x168] sm:$0xff] %v382
                  %v384 = vld [vmem:[%s290 + $0x2e0] sm:$0xff]
                  %385 = vst [vmem:[%s291 + $0x170] sm:$0xff] %v384
                  %v386 = vld [vmem:[%s290 + $0x2f0] sm:$0xff]
                  %387 = vst [vmem:[%s291 + $0x178] sm:$0xff] %v386
                  %v388 = vld [vmem:[%s290 + $0x300] sm:$0xff]
                  %389 = vst [vmem:[%s291 + $0x180] sm:$0xff] %v388
                  %v390 = vld [vmem:[%s290 + $0x310] sm:$0xff]
                  %391 = vst [vmem:[%s291 + $0x188] sm:$0xff] %v390
                  %v392 = vld [vmem:[%s290 + $0x320] sm:$0xff]
                  %393 = vst [vmem:[%s291 + $0x190] sm:$0xff] %v392
                  %v394 = vld [vmem:[%s290 + $0x330] sm:$0xff]
                  %395 = vst [vmem:[%s291 + $0x198] sm:$0xff] %v394
                  %v396 = vld [vmem:[%s290 + $0x340] sm:$0xff]
                  %397 = vst [vmem:[%s291 + $0x1a0] sm:$0xff] %v396
                  %v398 = vld [vmem:[%s290 + $0x350] sm:$0xff]
                  %399 = vst [vmem:[%s291 + $0x1a8] sm:$0xff] %v398
                  %v400 = vld [vmem:[%s290 + $0x360] sm:$0xff]
                  %401 = vst [vmem:[%s291 + $0x1b0] sm:$0xff] %v400
                  %v402 = vld [vmem:[%s290 + $0x370] sm:$0xff]
                  %403 = vst [vmem:[%s291 + $0x1b8] sm:$0xff] %v402
                  %v404 = vld [vmem:[%s290 + $0x380] sm:$0xff]
                  %405 = vst [vmem:[%s291 + $0x1c0] sm:$0xff] %v404
                  %v406 = vld [vmem:[%s290 + $0x390] sm:$0xff]
                  %407 = vst [vmem:[%s291 + $0x1c8] sm:$0xff] %v406
                  %v408 = vld [vmem:[%s290 + $0x3a0] sm:$0xff]
                  %409 = vst [vmem:[%s291 + $0x1d0] sm:$0xff] %v408
                  %v410 = vld [vmem:[%s290 + $0x3b0] sm:$0xff]
                  %411 = vst [vmem:[%s291 + $0x1d8] sm:$0xff] %v410
                  %v412 = vld [vmem:[%s290 + $0x3c0] sm:$0xff]
                  %413 = vst [vmem:[%s291 + $0x1e0] sm:$0xff] %v412
                  %v414 = vld [vmem:[%s290 + $0x3d0] sm:$0xff]
                  %415 = vst [vmem:[%s291 + $0x1e8] sm:$0xff] %v414
                  %v416 = vld [vmem:[%s290 + $0x3e0] sm:$0xff]
                  %417 = vst [vmem:[%s291 + $0x1f0] sm:$0xff] %v416
                  %v418 = vld [vmem:[%s290 + $0x3f0] sm:$0xff]
                  %419 = vst [vmem:[%s291 + $0x1f8] sm:$0xff] %v418
                $region56: #{encoder_forward.5} parent=50 // loop_footer
                  %s289 = sadd.s32 1, %s285
                $region57: #{encoder_forward.5} parent=50 // loop_footer_branch
                  %284 = sbr.rel target = $region53
                $region58: #{encoder_forward.5} parent=50 // loop_exit
                  _
              $region51: #{encoder_forward.5} parent=35 // pred_fallthru
                _
              // Predicated region
              $region59: #{encoder_forward.5} parent=35 // pred_check
                _
              $region60: #{encoder_forward.5} parent=35 // pred_check_branch
                %421 = sbr.rel target = $region62
              $region61: #{encoder_forward.5} parent=35 // pred_region
                _
              $region62: #{encoder_forward.5} parent=35 // pred_fallthru
                _
            $region36: #{encoder_forward.5} parent=31 // pred_fallthru
              _
            // Predicated region
            $region37: #{encoder_forward.5} parent=31 // pred_check
              _
            $region38: #{encoder_forward.5} parent=31 // pred_check_branch
              %143 = sbr.rel target = $region40
            $region39: #{encoder_forward.5} parent=31 // pred_region
              %s145 = ssub.s32 256, 1
              loop: start=0, step=1, limit=1
              $region41: #{encoder_forward.5} parent=39 // loop_pre_header
                _
              $region42: #{encoder_forward.5} parent=39 // loop_header
                %s147 = sphi 0, %s151
                %p148 = scmp.ge.s32.totalorder %s147, 1
                %s152 = sphi %s137, %s137
                %s153 = sphi %s134, %s134
              $region43: #{encoder_forward.5} parent=39 // loop_header_branch
                %150 = sbr.rel (%p148) target = $region47
              $region44: #{encoder_forward.5} parent=39 // loop_body
                %v154 = vld [vmem:[%s152] sm:%s145]
                %155 = vst [vmem:[%s153] sm:%s145] %v154
                %v156 = vld [vmem:[%s152 + $0x10] sm:%s145]
                %157 = vst [vmem:[%s153 + $0x8] sm:%s145] %v156
                %v158 = vld [vmem:[%s152 + $0x20] sm:%s145]
                %159 = vst [vmem:[%s153 + $0x10] sm:%s145] %v158
                %v160 = vld [vmem:[%s152 + $0x30] sm:%s145]
                %161 = vst [vmem:[%s153 + $0x18] sm:%s145] %v160
                %v162 = vld [vmem:[%s152 + $0x40] sm:%s145]
                %163 = vst [vmem:[%s153 + $0x20] sm:%s145] %v162
                %v164 = vld [vmem:[%s152 + $0x50] sm:%s145]
                %165 = vst [vmem:[%s153 + $0x28] sm:%s145] %v164
                %v166 = vld [vmem:[%s152 + $0x60] sm:%s145]
                %167 = vst [vmem:[%s153 + $0x30] sm:%s145] %v166
                %v168 = vld [vmem:[%s152 + $0x70] sm:%s145]
                %169 = vst [vmem:[%s153 + $0x38] sm:%s145] %v168
                %v170 = vld [vmem:[%s152 + $0x80] sm:%s145]
                %171 = vst [vmem:[%s153 + $0x40] sm:%s145] %v170
                %v172 = vld [vmem:[%s152 + $0x90] sm:%s145]
                %173 = vst [vmem:[%s153 + $0x48] sm:%s145] %v172
                %v174 = vld [vmem:[%s152 + $0xa0] sm:%s145]
                %175 = vst [vmem:[%s153 + $0x50] sm:%s145] %v174
                %v176 = vld [vmem:[%s152 + $0xb0] sm:%s145]
                %177 = vst [vmem:[%s153 + $0x58] sm:%s145] %v176
                %v178 = vld [vmem:[%s152 + $0xc0] sm:%s145]
                %179 = vst [vmem:[%s153 + $0x60] sm:%s145] %v178
                %v180 = vld [vmem:[%s152 + $0xd0] sm:%s145]
                %181 = vst [vmem:[%s153 + $0x68] sm:%s145] %v180
                %v182 = vld [vmem:[%s152 + $0xe0] sm:%s145]
                %183 = vst [vmem:[%s153 + $0x70] sm:%s145] %v182
                %v184 = vld [vmem:[%s152 + $0xf0] sm:%s145]
                %185 = vst [vmem:[%s153 + $0x78] sm:%s145] %v184
                %v186 = vld [vmem:[%s152 + $0x100] sm:%s145]
                %187 = vst [vmem:[%s153 + $0x80] sm:%s145] %v186
                %v188 = vld [vmem:[%s152 + $0x110] sm:%s145]
                %189 = vst [vmem:[%s153 + $0x88] sm:%s145] %v188
                %v190 = vld [vmem:[%s152 + $0x120] sm:%s145]
                %191 = vst [vmem:[%s153 + $0x90] sm:%s145] %v190
                %v192 = vld [vmem:[%s152 + $0x130] sm:%s145]
                %193 = vst [vmem:[%s153 + $0x98] sm:%s145] %v192
                %v194 = vld [vmem:[%s152 + $0x140] sm:%s145]
                %195 = vst [vmem:[%s153 + $0xa0] sm:%s145] %v194
                %v196 = vld [vmem:[%s152 + $0x150] sm:%s145]
                %197 = vst [vmem:[%s153 + $0xa8] sm:%s145] %v196
                %v198 = vld [vmem:[%s152 + $0x160] sm:%s145]
                %199 = vst [vmem:[%s153 + $0xb0] sm:%s145] %v198
                %v200 = vld [vmem:[%s152 + $0x170] sm:%s145]
                %201 = vst [vmem:[%s153 + $0xb8] sm:%s145] %v200
                %v202 = vld [vmem:[%s152 + $0x180] sm:%s145]
                %203 = vst [vmem:[%s153 + $0xc0] sm:%s145] %v202
                %v204 = vld [vmem:[%s152 + $0x190] sm:%s145]
                %205 = vst [vmem:[%s153 + $0xc8] sm:%s145] %v204
                %v206 = vld [vmem:[%s152 + $0x1a0] sm:%s145]
                %207 = vst [vmem:[%s153 + $0xd0] sm:%s145] %v206
                %v208 = vld [vmem:[%s152 + $0x1b0] sm:%s145]
                %209 = vst [vmem:[%s153 + $0xd8] sm:%s145] %v208
                %v210 = vld [vmem:[%s152 + $0x1c0] sm:%s145]
                %211 = vst [vmem:[%s153 + $0xe0] sm:%s145] %v210
                %v212 = vld [vmem:[%s152 + $0x1d0] sm:%s145]
                %213 = vst [vmem:[%s153 + $0xe8] sm:%s145] %v212
                %v214 = vld [vmem:[%s152 + $0x1e0] sm:%s145]
                %215 = vst [vmem:[%s153 + $0xf0] sm:%s145] %v214
                %v216 = vld [vmem:[%s152 + $0x1f0] sm:%s145]
                %217 = vst [vmem:[%s153 + $0xf8] sm:%s145] %v216
                %v218 = vld [vmem:[%s152 + $0x200] sm:%s145]
                %219 = vst [vmem:[%s153 + $0x100] sm:%s145] %v218
                %v220 = vld [vmem:[%s152 + $0x210] sm:%s145]
                %221 = vst [vmem:[%s153 + $0x108] sm:%s145] %v220
                %v222 = vld [vmem:[%s152 + $0x220] sm:%s145]
                %223 = vst [vmem:[%s153 + $0x110] sm:%s145] %v222
                %v224 = vld [vmem:[%s152 + $0x230] sm:%s145]
                %225 = vst [vmem:[%s153 + $0x118] sm:%s145] %v224
                %v226 = vld [vmem:[%s152 + $0x240] sm:%s145]
                %227 = vst [vmem:[%s153 + $0x120] sm:%s145] %v226
                %v228 = vld [vmem:[%s152 + $0x250] sm:%s145]
                %229 = vst [vmem:[%s153 + $0x128] sm:%s145] %v228
                %v230 = vld [vmem:[%s152 + $0x260] sm:%s145]
                %231 = vst [vmem:[%s153 + $0x130] sm:%s145] %v230
                %v232 = vld [vmem:[%s152 + $0x270] sm:%s145]
                %233 = vst [vmem:[%s153 + $0x138] sm:%s145] %v232
                %v234 = vld [vmem:[%s152 + $0x280] sm:%s145]
                %235 = vst [vmem:[%s153 + $0x140] sm:%s145] %v234
                %v236 = vld [vmem:[%s152 + $0x290] sm:%s145]
                %237 = vst [vmem:[%s153 + $0x148] sm:%s145] %v236
                %v238 = vld [vmem:[%s152 + $0x2a0] sm:%s145]
                %239 = vst [vmem:[%s153 + $0x150] sm:%s145] %v238
                %v240 = vld [vmem:[%s152 + $0x2b0] sm:%s145]
                %241 = vst [vmem:[%s153 + $0x158] sm:%s145] %v240
                %v242 = vld [vmem:[%s152 + $0x2c0] sm:%s145]
                %243 = vst [vmem:[%s153 + $0x160] sm:%s145] %v242
                %v244 = vld [vmem:[%s152 + $0x2d0] sm:%s145]
                %245 = vst [vmem:[%s153 + $0x168] sm:%s145] %v244
                %v246 = vld [vmem:[%s152 + $0x2e0] sm:%s145]
                %247 = vst [vmem:[%s153 + $0x170] sm:%s145] %v246
                %v248 = vld [vmem:[%s152 + $0x2f0] sm:%s145]
                %249 = vst [vmem:[%s153 + $0x178] sm:%s145] %v248
                %v250 = vld [vmem:[%s152 + $0x300] sm:%s145]
                %251 = vst [vmem:[%s153 + $0x180] sm:%s145] %v250
                %v252 = vld [vmem:[%s152 + $0x310] sm:%s145]
                %253 = vst [vmem:[%s153 + $0x188] sm:%s145] %v252
                %v254 = vld [vmem:[%s152 + $0x320] sm:%s145]
                %255 = vst [vmem:[%s153 + $0x190] sm:%s145] %v254
                %v256 = vld [vmem:[%s152 + $0x330] sm:%s145]
                %257 = vst [vmem:[%s153 + $0x198] sm:%s145] %v256
                %v258 = vld [vmem:[%s152 + $0x340] sm:%s145]
                %259 = vst [vmem:[%s153 + $0x1a0] sm:%s145] %v258
                %v260 = vld [vmem:[%s152 + $0x350] sm:%s145]
                %261 = vst [vmem:[%s153 + $0x1a8] sm:%s145] %v260
                %v262 = vld [vmem:[%s152 + $0x360] sm:%s145]
                %263 = vst [vmem:[%s153 + $0x1b0] sm:%s145] %v262
                %v264 = vld [vmem:[%s152 + $0x370] sm:%s145]
                %265 = vst [vmem:[%s153 + $0x1b8] sm:%s145] %v264
                %v266 = vld [vmem:[%s152 + $0x380] sm:%s145]
                %267 = vst [vmem:[%s153 + $0x1c0] sm:%s145] %v266
                %v268 = vld [vmem:[%s152 + $0x390] sm:%s145]
                %269 = vst [vmem:[%s153 + $0x1c8] sm:%s145] %v268
                %v270 = vld [vmem:[%s152 + $0x3a0] sm:%s145]
                %271 = vst [vmem:[%s153 + $0x1d0] sm:%s145] %v270
                %v272 = vld [vmem:[%s152 + $0x3b0] sm:%s145]
                %273 = vst [vmem:[%s153 + $0x1d8] sm:%s145] %v272
                %v274 = vld [vmem:[%s152 + $0x3c0] sm:%s145]
                %275 = vst [vmem:[%s153 + $0x1e0] sm:%s145] %v274
                %v276 = vld [vmem:[%s152 + $0x3d0] sm:%s145]
                %277 = vst [vmem:[%s153 + $0x1e8] sm:%s145] %v276
                %v278 = vld [vmem:[%s152 + $0x3e0] sm:%s145]
                %279 = vst [vmem:[%s153 + $0x1f0] sm:%s145] %v278
                %v280 = vld [vmem:[%s152 + $0x3f0] sm:%s145]
                %281 = vst [vmem:[%s153 + $0x1f8] sm:%s145] %v280
              $region45: #{encoder_forward.5} parent=39 // loop_footer
                %s151 = sadd.s32 1, %s147
              $region46: #{encoder_forward.5} parent=39 // loop_footer_branch
                %146 = sbr.rel target = $region42
              $region47: #{encoder_forward.5} parent=39 // loop_exit
                _
            $region40: #{encoder_forward.5} parent=31 // pred_fallthru
              _
          $region32: #{encoder_forward.5} parent=27 // pred_fallthru
            _
          %422 = vnop
        $region28: #{encoder_forward.5} parent=23 // pred_fallthru
          _
      $region24: #{encoder_forward.5} parent=5 // pred_fallthru
        _
      %p423 = scmp.le.s32.totalorder 1, %s9
      %p424 = scmp.lt.s32.totalorder %s9, 3
      %p425 = pnand %p423, %p424
      %p426 = pneg %p425
      // Predicated region
      $region63: #{encoder_forward.5} parent=5 // pred_check
        _
      $region64: #{encoder_forward.5} parent=5 // pred_check_branch
        %428 = sbr.rel (%p425) target = $region66
      $region65: #{encoder_forward.5} parent=5 // pred_region
        %s429 = ssub.s32 %s9, 1
        %s430 = sand.u32 %s43, 1
        %s431 = sand.u32 %s43, 1
        %s432 = smul.addr %s431, 512
        %s433 = scalar_lea.vmem [#allocation2], %s432
        // Predicated region
        $region67: #{encoder_forward.5} parent=65 // pred_check
          %p434 = pneg %p56
        $region68: #{encoder_forward.5} parent=65 // pred_check_branch
          %436 = sbr.rel (%p434) target = $region70
        $region69: #{encoder_forward.5} parent=65 // pred_region
          _
        $region70: #{encoder_forward.5} parent=65 // pred_fallthru
          _
        %p437 = pneg %p30
        %p438 = pneg %p27
        %s439 = sand.u32 %s43, 1
        %s440 = sand.u32 %s43, 1
        %s441 = smul.addr %s440, 512
        %s442 = scalar_lea.vmem [#allocation2], %s441
        %p443 = pneg %p56
        %p444 = pneg %p53
        %p445 = pneg %p77
        %p446 = pneg %p74
        %p447 = pneg %p103
        %p448 = pneg %p100
        %s449 = sand.u32 %s90, 1
        %s450 = sand.u32 %s90, 1
        %s451 = smul.addr %s450, 32
        %s452 = scalar_lea.vmem [#allocation3], %s451
        %s453 = smul.u32 2, %s14
        %s454 = smul.u32 2, %s14
        %v455 = vld [vmem:[%s0] sm:$0xff]
        %v456 = vld [vmem:[%s0 + $0x8] sm:$0xff]
        %v457 = vld [vmem:[%s0 + $0x10] sm:$0xff]
        %v458 = vld [vmem:[%s0 + $0x18] sm:$0xff]
        %v459 = vld [vmem:[%s0 + $0x20] sm:$0xff]
        %v460 = vld [vmem:[%s0 + $0x28] sm:$0xff]
        %v461 = vld [vmem:[%s0 + $0x30] sm:$0xff]
        %v462 = vld [vmem:[%s0 + $0x38] sm:$0xff]
        %v463 = vld [vmem:[%s433] sm:$0xff]
        %v464 = vld [vmem:[%s433 + $0x8] sm:$0xff]
        %v465 = vld [vmem:[%s433 + $0x10] sm:$0xff]
        %v466 = vld [vmem:[%s433 + $0x18] sm:$0xff]
        %v467 = vld [vmem:[%s433 + $0x20] sm:$0xff]
        %v468 = vld [vmem:[%s433 + $0x28] sm:$0xff]
        %v469 = vld [vmem:[%s433 + $0x30] sm:$0xff]
        %v470 = vld [vmem:[%s433 + $0x38] sm:$0xff]
        %v471 = vld [vmem:[%s433 + $0x40] sm:$0xff]
        %v472 = vld [vmem:[%s433 + $0x48] sm:$0xff]
        %v473 = vld [vmem:[%s433 + $0x50] sm:$0xff]
        %v474 = vld [vmem:[%s433 + $0x58] sm:$0xff]
        %v475 = vld [vmem:[%s433 + $0x60] sm:$0xff]
        %v476 = vld [vmem:[%s433 + $0x68] sm:$0xff]
        %v477 = vld [vmem:[%s433 + $0x70] sm:$0xff]
        %v478 = vld [vmem:[%s433 + $0x78] sm:$0xff]
        %v479 = vld [vmem:[%s433 + $0x80] sm:$0xff]
        %v480 = vld [vmem:[%s433 + $0x88] sm:$0xff]
        %v481 = vld [vmem:[%s433 + $0x90] sm:$0xff]
        %v482 = vld [vmem:[%s433 + $0x98] sm:$0xff]
        %v483 = vld [vmem:[%s433 + $0xa0] sm:$0xff]
        %v484 = vld [vmem:[%s433 + $0xa8] sm:$0xff]
        %v485 = vld [vmem:[%s433 + $0xb0] sm:$0xff]
        %v486 = vld [vmem:[%s433 + $0xb8] sm:$0xff]
        %v487 = vld [vmem:[%s433 + $0xc0] sm:$0xff]
        %v488 = vld [vmem:[%s433 + $0xc8] sm:$0xff]
        %v489 = vld [vmem:[%s433 + $0xd0] sm:$0xff]
        %v490 = vld [vmem:[%s433 + $0xd8] sm:$0xff]
        %v491 = vld [vmem:[%s433 + $0xe0] sm:$0xff]
        %v492 = vld [vmem:[%s433 + $0xe8] sm:$0xff]
        %v493 = vld [vmem:[%s433 + $0xf0] sm:$0xff]
        %v494 = vld [vmem:[%s433 + $0xf8] sm:$0xff]
        %v495 = vld [vmem:[%s433 + $0x100] sm:$0xff]
        %v496 = vld [vmem:[%s433 + $0x108] sm:$0xff]
        %v497 = vld [vmem:[%s433 + $0x110] sm:$0xff]
        %v498 = vld [vmem:[%s433 + $0x118] sm:$0xff]
        %v499 = vld [vmem:[%s433 + $0x120] sm:$0xff]
        %v500 = vld [vmem:[%s433 + $0x128] sm:$0xff]
        %v501 = vld [vmem:[%s433 + $0x130] sm:$0xff]
        %v502 = vld [vmem:[%s433 + $0x138] sm:$0xff]
        %v503 = vld [vmem:[%s433 + $0x140] sm:$0xff]
        %v504 = vld [vmem:[%s433 + $0x148] sm:$0xff]
        %v505 = vld [vmem:[%s433 + $0x150] sm:$0xff]
        %v506 = vld [vmem:[%s433 + $0x158] sm:$0xff]
        %v507 = vld [vmem:[%s433 + $0x160] sm:$0xff]
        %v508 = vld [vmem:[%s433 + $0x168] sm:$0xff]
        %v509 = vld [vmem:[%s433 + $0x170] sm:$0xff]
        %v510 = vld [vmem:[%s433 + $0x178] sm:$0xff]
        %v511 = vld [vmem:[%s433 + $0x180] sm:$0xff]
        %v512 = vld [vmem:[%s433 + $0x188] sm:$0xff]
        %v513 = vld [vmem:[%s433 + $0x190] sm:$0xff]
        %v514 = vld [vmem:[%s433 + $0x198] sm:$0xff]
        %v515 = vld [vmem:[%s433 + $0x1a0] sm:$0xff]
        %v516 = vld [vmem:[%s433 + $0x1a8] sm:$0xff]
        %v517 = vld [vmem:[%s433 + $0x1b0] sm:$0xff]
        %v518 = vld [vmem:[%s433 + $0x1b8] sm:$0xff]
        %v519 = vld [vmem:[%s433 + $0x1c0] sm:$0xff]
        %v520 = vld [vmem:[%s433 + $0x1c8] sm:$0xff]
        %v521 = vld [vmem:[%s433 + $0x1d0] sm:$0xff]
        %v522 = vld [vmem:[%s433 + $0x1d8] sm:$0xff]
        %v523 = vld [vmem:[%s433 + $0x1e0] sm:$0xff]
        %v524 = vld [vmem:[%s433 + $0x1e8] sm:$0xff]
        %v525 = vld [vmem:[%s433 + $0x1f0] sm:$0xff]
        %v526 = vld [vmem:[%s433 + $0x1f8] sm:$0xff]
        %v527 = vld [vmem:[%s2] sm:$0xff]
        %v528 = vld [vmem:[%s2 + $0x8] sm:$0xff]
        %v529 = vld [vmem:[%s2 + $0x10] sm:$0xff]
        %v530 = vld [vmem:[%s2 + $0x18] sm:$0xff]
        %532 = vset.pattern.permute.xlu0 0
        %533 = vperm.xlu0 %532, %v527
        %v534 = vpop.permute.xlu0 %533
        %537 = vset.pattern.permute.xlu0 0
        %538 = vperm.xlu0 %537, %v528
        %v539 = vpop.permute.xlu0 %538
        %542 = vset.pattern.permute.xlu0 0
        %543 = vperm.xlu0 %542, %v529
        %v544 = vpop.permute.xlu0 %543
        %547 = vset.pattern.permute.xlu0 0
        %548 = vperm.xlu0 %547, %v530
        %v549 = vpop.permute.xlu0 %548
        %v559 = vunpack.c.l.b16 %v455
        %v560 = vunpack.c.h.b16 %v455
        %v561 = vunpack.c.l.b16 %v456
        %v562 = vunpack.c.h.b16 %v456
        %v563 = vunpack.c.l.b16 %v457
        %v564 = vunpack.c.h.b16 %v457
        %v565 = vunpack.c.l.b16 %v458
        %v566 = vunpack.c.h.b16 %v458
        %v567 = vunpack.c.l.b16 %v459
        %v568 = vunpack.c.h.b16 %v459
        %v569 = vunpack.c.l.b16 %v460
        %v570 = vunpack.c.h.b16 %v460
        %v571 = vunpack.c.l.b16 %v461
        %v572 = vunpack.c.h.b16 %v461
        %v573 = vunpack.c.l.b16 %v462
        %v574 = vunpack.c.h.b16 %v462
        %v575 = vpack.c.b16 %v563, %v559
        %v576 = vpack.c.b16 %v564, %v560
        %v577 = vpack.c.b16 %v565, %v561
        %v578 = vpack.c.b16 %v566, %v562
        %v579 = vpack.c.b16 %v571, %v567
        %v580 = vpack.c.b16 %v572, %v568
        %v581 = vpack.c.b16 %v573, %v569
        %v582 = vpack.c.b16 %v574, %v570
        %v655 = vunpack.c.l.b16 %v463
        %v656 = vunpack.c.h.b16 %v463
        %v657 = vunpack.c.l.b16 %v464
        %v658 = vunpack.c.h.b16 %v464
        %v659 = vunpack.c.l.b16 %v465
        %v660 = vunpack.c.h.b16 %v465
        %v661 = vunpack.c.l.b16 %v466
        %v662 = vunpack.c.h.b16 %v466
        %v663 = vunpack.c.l.b16 %v467
        %v664 = vunpack.c.h.b16 %v467
        %v665 = vunpack.c.l.b16 %v468
        %v666 = vunpack.c.h.b16 %v468
        %v667 = vunpack.c.l.b16 %v469
        %v668 = vunpack.c.h.b16 %v469
        %v669 = vunpack.c.l.b16 %v470
        %v670 = vunpack.c.h.b16 %v470
        %v671 = vunpack.c.l.b16 %v471
        %v672 = vunpack.c.h.b16 %v471
        %v673 = vunpack.c.l.b16 %v472
        %v674 = vunpack.c.h.b16 %v472
        %v675 = vunpack.c.l.b16 %v473
        %v676 = vunpack.c.h.b16 %v473
        %v677 = vunpack.c.l.b16 %v474
        %v678 = vunpack.c.h.b16 %v474
        %v679 = vunpack.c.l.b16 %v475
        %v680 = vunpack.c.h.b16 %v475
        %v681 = vunpack.c.l.b16 %v476
        %v682 = vunpack.c.h.b16 %v476
        %v683 = vunpack.c.l.b16 %v477
        %v684 = vunpack.c.h.b16 %v477
        %v685 = vunpack.c.l.b16 %v478
        %v686 = vunpack.c.h.b16 %v478
        %v687 = vunpack.c.l.b16 %v479
        %v688 = vunpack.c.h.b16 %v479
        %v689 = vunpack.c.l.b16 %v480
        %v690 = vunpack.c.h.b16 %v480
        %v691 = vunpack.c.l.b16 %v481
        %v692 = vunpack.c.h.b16 %v481
        %v693 = vunpack.c.l.b16 %v482
        %v694 = vunpack.c.h.b16 %v482
        %v695 = vunpack.c.l.b16 %v483
        %v696 = vunpack.c.h.b16 %v483
        %v697 = vunpack.c.l.b16 %v484
        %v698 = vunpack.c.h.b16 %v484
        %v699 = vunpack.c.l.b16 %v485
        %v700 = vunpack.c.h.b16 %v485
        %v701 = vunpack.c.l.b16 %v486
        %v702 = vunpack.c.h.b16 %v486
        %v703 = vunpack.c.l.b16 %v487
        %v704 = vunpack.c.h.b16 %v487
        %v705 = vunpack.c.l.b16 %v488
        %v706 = vunpack.c.h.b16 %v488
        %v707 = vunpack.c.l.b16 %v489
        %v708 = vunpack.c.h.b16 %v489
        %v709 = vunpack.c.l.b16 %v490
        %v710 = vunpack.c.h.b16 %v490
        %v711 = vunpack.c.l.b16 %v491
        %v712 = vunpack.c.h.b16 %v491
        %v713 = vunpack.c.l.b16 %v492
        %v714 = vunpack.c.h.b16 %v492
        %v715 = vunpack.c.l.b16 %v493
        %v716 = vunpack.c.h.b16 %v493
        %v717 = vunpack.c.l.b16 %v494
        %v718 = vunpack.c.h.b16 %v494
        %v719 = vunpack.c.l.b16 %v495
        %v720 = vunpack.c.h.b16 %v495
        %v721 = vunpack.c.l.b16 %v496
        %v722 = vunpack.c.h.b16 %v496
        %v723 = vunpack.c.l.b16 %v497
        %v724 = vunpack.c.h.b16 %v497
        %v725 = vunpack.c.l.b16 %v498
        %v726 = vunpack.c.h.b16 %v498
        %v727 = vunpack.c.l.b16 %v499
        %v728 = vunpack.c.h.b16 %v499
        %v729 = vunpack.c.l.b16 %v500
        %v730 = vunpack.c.h.b16 %v500
        %v731 = vunpack.c.l.b16 %v501
        %v732 = vunpack.c.h.b16 %v501
        %v733 = vunpack.c.l.b16 %v502
        %v734 = vunpack.c.h.b16 %v502
        %v735 = vunpack.c.l.b16 %v503
        %v736 = vunpack.c.h.b16 %v503
        %v737 = vunpack.c.l.b16 %v504
        %v738 = vunpack.c.h.b16 %v504
        %v739 = vunpack.c.l.b16 %v505
        %v740 = vunpack.c.h.b16 %v505
        %v741 = vunpack.c.l.b16 %v506
        %v742 = vunpack.c.h.b16 %v506
        %v743 = vunpack.c.l.b16 %v507
        %v744 = vunpack.c.h.b16 %v507
        %v745 = vunpack.c.l.b16 %v508
        %v746 = vunpack.c.h.b16 %v508
        %v747 = vunpack.c.l.b16 %v509
        %v748 = vunpack.c.h.b16 %v509
        %v749 = vunpack.c.l.b16 %v510
        %v750 = vunpack.c.h.b16 %v510
        %v751 = vunpack.c.l.b16 %v511
        %v752 = vunpack.c.h.b16 %v511
        %v753 = vunpack.c.l.b16 %v512
        %v754 = vunpack.c.h.b16 %v512
        %v755 = vunpack.c.l.b16 %v513
        %v756 = vunpack.c.h.b16 %v513
        %v757 = vunpack.c.l.b16 %v514
        %v758 = vunpack.c.h.b16 %v514
        %v759 = vunpack.c.l.b16 %v515
        %v760 = vunpack.c.h.b16 %v515
        %v761 = vunpack.c.l.b16 %v516
        %v762 = vunpack.c.h.b16 %v516
        %v763 = vunpack.c.l.b16 %v517
        %v764 = vunpack.c.h.b16 %v517
        %v765 = vunpack.c.l.b16 %v518
        %v766 = vunpack.c.h.b16 %v518
        %v767 = vunpack.c.l.b16 %v519
        %v768 = vunpack.c.h.b16 %v519
        %v769 = vunpack.c.l.b16 %v520
        %v770 = vunpack.c.h.b16 %v520
        %v771 = vunpack.c.l.b16 %v521
        %v772 = vunpack.c.h.b16 %v521
        %v773 = vunpack.c.l.b16 %v522
        %v774 = vunpack.c.h.b16 %v522
        %v775 = vunpack.c.l.b16 %v523
        %v776 = vunpack.c.h.b16 %v523
        %v777 = vunpack.c.l.b16 %v524
        %v778 = vunpack.c.h.b16 %v524
        %v779 = vunpack.c.l.b16 %v525
        %v780 = vunpack.c.h.b16 %v525
        %v781 = vunpack.c.l.b16 %v526
        %v782 = vunpack.c.h.b16 %v526
        %v783 = vpack.c.b16 %v657, %v655
        %v784 = vpack.c.b16 %v658, %v656
        %v785 = vpack.c.b16 %v661, %v659
        %v786 = vpack.c.b16 %v662, %v660
        %v787 = vpack.c.b16 %v665, %v663
        %v788 = vpack.c.b16 %v666, %v664
        %v789 = vpack.c.b16 %v669, %v667
        %v790 = vpack.c.b16 %v670, %v668
        %v791 = vpack.c.b16 %v673, %v671
        %v792 = vpack.c.b16 %v674, %v672
        %v793 = vpack.c.b16 %v677, %v675
        %v794 = vpack.c.b16 %v678, %v676
        %v795 = vpack.c.b16 %v681, %v679
        %v796 = vpack.c.b16 %v682, %v680
        %v797 = vpack.c.b16 %v685, %v683
        %v798 = vpack.c.b16 %v686, %v684
        %v799 = vpack.c.b16 %v689, %v687
        %v800 = vpack.c.b16 %v690, %v688
        %v801 = vpack.c.b16 %v693, %v691
        %v802 = vpack.c.b16 %v694, %v692
        %v803 = vpack.c.b16 %v697, %v695
        %v804 = vpack.c.b16 %v698, %v696
        %v805 = vpack.c.b16 %v701, %v699
        %v806 = vpack.c.b16 %v702, %v700
        %v807 = vpack.c.b16 %v705, %v703
        %v808 = vpack.c.b16 %v706, %v704
        %v809 = vpack.c.b16 %v709, %v707
        %v810 = vpack.c.b16 %v710, %v708
        %v811 = vpack.c.b16 %v713, %v711
        %v812 = vpack.c.b16 %v714, %v712
        %v813 = vpack.c.b16 %v717, %v715
        %v814 = vpack.c.b16 %v718, %v716
        %v815 = vpack.c.b16 %v721, %v719
        %v816 = vpack.c.b16 %v722, %v720
        %v817 = vpack.c.b16 %v725, %v723
        %v818 = vpack.c.b16 %v726, %v724
        %v819 = vpack.c.b16 %v729, %v727
        %v820 = vpack.c.b16 %v730, %v728
        %v821 = vpack.c.b16 %v733, %v731
        %v822 = vpack.c.b16 %v734, %v732
        %v823 = vpack.c.b16 %v737, %v735
        %v824 = vpack.c.b16 %v738, %v736
        %v825 = vpack.c.b16 %v741, %v739
        %v826 = vpack.c.b16 %v742, %v740
        %v827 = vpack.c.b16 %v745, %v743
        %v828 = vpack.c.b16 %v746, %v744
        %v829 = vpack.c.b16 %v749, %v747
        %v830 = vpack.c.b16 %v750, %v748
        %v831 = vpack.c.b16 %v753, %v751
        %v832 = vpack.c.b16 %v754, %v752
        %v833 = vpack.c.b16 %v757, %v755
        %v834 = vpack.c.b16 %v758, %v756
        %v835 = vpack.c.b16 %v761, %v759
        %v836 = vpack.c.b16 %v762, %v760
        %v837 = vpack.c.b16 %v765, %v763
        %v838 = vpack.c.b16 %v766, %v764
        %v839 = vpack.c.b16 %v769, %v767
        %v840 = vpack.c.b16 %v770, %v768
        %v841 = vpack.c.b16 %v773, %v771
        %v842 = vpack.c.b16 %v774, %v772
        %v843 = vpack.c.b16 %v777, %v775
        %v844 = vpack.c.b16 %v778, %v776
        %v845 = vpack.c.b16 %v781, %v779
        %v846 = vpack.c.b16 %v782, %v780
        %911 = vmatprep.subr.bf16.mxu0 %v798
        %912 = vmatpush1.bf16.msra.mxu0 %v797
        %913 = vmatprep.subr.bf16.mxu0 %v796
        %914 = vmatpush1.bf16.msra.mxu0 %v795
        %915 = vmatprep.subr.bf16.mxu0 %v794
        %916 = vmatpush1.bf16.msra.mxu0 %v793
        %917 = vmatprep.subr.bf16.mxu0 %v792
        %918 = vmatpush1.bf16.msra.mxu0 %v791
        %919 = vmatprep.subr.bf16.mxu0 %v790
        %920 = vmatpush1.bf16.msra.mxu0 %v789
        %921 = vmatprep.subr.bf16.mxu0 %v788
        %922 = vmatpush1.bf16.msra.mxu0 %v787
        %923 = vmatprep.subr.bf16.mxu0 %v786
        %924 = vmatpush1.bf16.msra.mxu0 %v785
        %925 = vmatprep.subr.bf16.mxu0 %v784
        %926 = vmatpush1.bf16.msra.mxu0 %v783
        %927 = vmatprep.subr.bf16.mxu0 %v814
        %928 = vmatpush2.bf16.msra.mxu0 %v813
        %929 = vmatprep.subr.bf16.mxu0 %v812
        %930 = vmatpush2.bf16.msra.mxu0 %v811
        %931 = vmatprep.subr.bf16.mxu0 %v810
        %932 = vmatpush2.bf16.msra.mxu0 %v809
        %933 = vmatprep.subr.bf16.mxu0 %v808
        %934 = vmatpush2.bf16.msra.mxu0 %v807
        %935 = vmatprep.subr.bf16.mxu0 %v806
        %936 = vmatpush2.bf16.msra.mxu0 %v805
        %937 = vmatprep.subr.bf16.mxu0 %v804
        %938 = vmatpush2.bf16.msra.mxu0 %v803
        %939 = vmatprep.subr.bf16.mxu0 %v802
        %940 = vmatpush2.bf16.msra.mxu0 %v801
        %941 = vmatprep.subr.bf16.mxu0 %v800
        %942 = vmatpush2.bf16.msra.mxu0 %v799
        %943 = vmatprep.mubr.bf16.mxu0 %v576
        %944 = vmatmul.mubr.bf16.gmra.mxu0 %v575
        %v945 = vpop.f32.mrf.mxu0
        %v946 = vadd.f32 %v534, %v945
        %v947 = vpop.f32.mrf.mxu0
        %v948 = vadd.f32 %v534, %v947
        %v949 = vpop.f32.mrf.mxu0
        %v950 = vadd.f32 %v539, %v949
        %v951 = vpop.f32.mrf.mxu0
        %v952 = vadd.f32 %v539, %v951
        %953 = vmatprep.mubr.bf16.mxu0 %v580
        %954 = vmatmul.mubr.bf16.gmra.mxu0 %v579
        %v955 = vpop.f32.mrf.mxu0
        %v956 = vadd.f32 %v544, %v955
        %v957 = vpop.f32.mrf.mxu0
        %v958 = vadd.f32 %v544, %v957
        %v959 = vpop.f32.mrf.mxu0
        %v960 = vadd.f32 %v549, %v959
        %v961 = vpop.f32.mrf.mxu0
        %v962 = vadd.f32 %v549, %v961
        %963 = vdwg.mxu0
        %964 = vmatprep.subr.bf16.mxu0 %v830
        %965 = vmatpush1.bf16.msra.mxu0 %v829
        %966 = vmatprep.subr.bf16.mxu0 %v828
        %967 = vmatpush1.bf16.msra.mxu0 %v827
        %968 = vmatprep.subr.bf16.mxu0 %v826
        %969 = vmatpush1.bf16.msra.mxu0 %v825
        %970 = vmatprep.subr.bf16.mxu0 %v824
        %971 = vmatpush1.bf16.msra.mxu0 %v823
        %972 = vmatprep.subr.bf16.mxu0 %v822
        %973 = vmatpush1.bf16.msra.mxu0 %v821
        %974 = vmatprep.subr.bf16.mxu0 %v820
        %975 = vmatpush1.bf16.msra.mxu0 %v819
        %976 = vmatprep.subr.bf16.mxu0 %v818
        %977 = vmatpush1.bf16.msra.mxu0 %v817
        %978 = vmatprep.subr.bf16.mxu0 %v816
        %979 = vmatpush1.bf16.msra.mxu0 %v815
        %980 = vmatprep.subr.bf16.mxu0 %v846
        %981 = vmatpush2.bf16.msra.mxu0 %v845
        %982 = vmatprep.subr.bf16.mxu0 %v844
        %983 = vmatpush2.bf16.msra.mxu0 %v843
        %984 = vmatprep.subr.bf16.mxu0 %v842
        %985 = vmatpush2.bf16.msra.mxu0 %v841
        %986 = vmatprep.subr.bf16.mxu0 %v840
        %987 = vmatpush2.bf16.msra.mxu0 %v839
        %988 = vmatprep.subr.bf16.mxu0 %v838
        %989 = vmatpush2.bf16.msra.mxu0 %v837
        %990 = vmatprep.subr.bf16.mxu0 %v836
        %991 = vmatpush2.bf16.msra.mxu0 %v835
        %992 = vmatprep.subr.bf16.mxu0 %v834
        %993 = vmatpush2.bf16.msra.mxu0 %v833
        %994 = vmatprep.subr.bf16.mxu0 %v832
        %995 = vmatpush2.bf16.msra.mxu0 %v831
        %996 = vmatprep.mubr.bf16.mxu0 %v578
        %997 = vmatmul.mubr.bf16.gmra.mxu0 %v577
        %v998 = vpop.f32.mrf.mxu0
        %v999 = vadd.f32 %v946, %v998
        %v1000 = vpop.f32.mrf.mxu0
        %v1001 = vadd.f32 %v948, %v1000
        %v1002 = vpop.f32.mrf.mxu0
        %v1003 = vadd.f32 %v950, %v1002
        %v1004 = vpop.f32.mrf.mxu0
        %v1005 = vadd.f32 %v952, %v1004
        %1006 = vmatprep.mubr.bf16.mxu0 %v582
        %1007 = vmatmul.mubr.bf16.gmra.mxu0 %v581
        %v1008 = vpop.f32.mrf.mxu0
        %v1009 = vadd.f32 %v956, %v1008
        %v1010 = vpop.f32.mrf.mxu0
        %v1011 = vadd.f32 %v958, %v1010
        %v1012 = vpop.f32.mrf.mxu0
        %v1013 = vadd.f32 %v960, %v1012
        %v1014 = vpop.f32.mrf.mxu0
        %v1015 = vadd.f32 %v962, %v1014
        %1016 = vdwg.mxu0
        %v1017 = vmax.f32 %v999, 0.0
        %v1018 = vmax.f32 %v1001, 0.0
        %v1019 = vmax.f32 %v1003, 0.0
        %v1020 = vmax.f32 %v1005, 0.0
        %v1021 = vmax.f32 %v1009, 0.0
        %v1022 = vmax.f32 %v1011, 0.0
        %v1023 = vmax.f32 %v1013, 0.0
        %v1024 = vmax.f32 %v1015, 0.0
        %v1025 = vpack.c.bf16 %v1019, %v1017
        %v1026 = vpack.c.bf16 %v1020, %v1018
        %v1027 = vpack.c.bf16 %v1023, %v1021
        %v1028 = vpack.c.bf16 %v1024, %v1022
        %v1033 = vunpack.c.l.b16 %v1025
        %v1034 = vunpack.c.l.b16 %v1026
        %v1035 = vunpack.c.h.b16 %v1025
        %v1036 = vunpack.c.h.b16 %v1026
        %v1037 = vunpack.c.l.b16 %v1027
        %v1038 = vunpack.c.l.b16 %v1028
        %v1039 = vunpack.c.h.b16 %v1027
        %v1040 = vunpack.c.h.b16 %v1028
        %v1041 = vpack.c.b16 %v1034, %v1033
        %v1042 = vpack.c.b16 %v1036, %v1035
        %v1043 = vpack.c.b16 %v1038, %v1037
        %v1044 = vpack.c.b16 %v1040, %v1039
        %1049 = vst [vmem:[%s452] sm:$0xff] %v1041
        %1050 = vst [vmem:[%s452 + $0x8] sm:$0xff] %v1042
        %1051 = vst [vmem:[%s452 + $0x10] sm:$0xff] %v1043
        %1052 = vst [vmem:[%s452 + $0x18] sm:$0xff] %v1044
        %s1053 = sand.u32 %s90, 1
        %s1054 = sand.u32 %s90, 1
        %s1055 = smul.addr %s1054, 32
        %s1056 = scalar_lea.vmem [#allocation3], %s1055
        // Predicated region
        $region71: #{encoder_forward.5} parent=65 // pred_check
          %p1057 = pneg %p100
        $region72: #{encoder_forward.5} parent=65 // pred_check_branch
          %1059 = sbr.rel (%p1057) target = $region74
        $region73: #{encoder_forward.5} parent=65 // pred_region
          %s1060 = smul.u32 2, %s14
          %s1061 = smul.addr %s1060, 4
          %s1062 = scalar_lea.vmem %s3, %s1061
          // Predicated region
          $region75: #{encoder_forward.5} parent=73 // pred_check
            _
          $region76: #{encoder_forward.5} parent=73 // pred_check_branch
            %1064 = sbr.rel (0) target = $region78
          $region77: #{encoder_forward.5} parent=73 // pred_region
            // Predicated region
            $region79: #{encoder_forward.5} parent=77 // pred_check
              _
            $region80: #{encoder_forward.5} parent=77 // pred_check_branch
              %1066 = sbr.rel (0) target = $region82
            $region81: #{encoder_forward.5} parent=77 // pred_region
              // Predicated region
              $region94: #{encoder_forward.5} parent=81 // pred_check
                _
              $region95: #{encoder_forward.5} parent=81 // pred_check_branch
                %1088 = sbr.rel (0) target = $region97
              $region96: #{encoder_forward.5} parent=81 // pred_region
                loop: start=0, step=1, limit=1
                $region98: #{encoder_forward.5} parent=96 // loop_pre_header
                  _
                $region99: #{encoder_forward.5} parent=96 // loop_header
                  %s1090 = sphi 0, %s1094
                  %p1091 = scmp.ge.s32.totalorder %s1090, 1
                  %s1095 = sphi %s1056, %s1056
                  %s1096 = sphi %s1062, %s1062
                $region100: #{encoder_forward.5} parent=96 // loop_header_branch
                  %1093 = sbr.rel (%p1091) target = $region104
                $region101: #{encoder_forward.5} parent=96 // loop_body
                  %v1097 = vld [vmem:[%s1095] sm:$0xff]
                  %1098 = vst [vmem:[%s1096] sm:$0xff] %v1097
                  %v1099 = vld [vmem:[%s1095 + $0x8] sm:$0xff]
                  %1100 = vst [vmem:[%s1096 + $0x10] sm:$0xff] %v1099
                  %v1101 = vld [vmem:[%s1095 + $0x10] sm:$0xff]
                  %1102 = vst [vmem:[%s1096 + $0x20] sm:$0xff] %v1101
                  %v1103 = vld [vmem:[%s1095 + $0x18] sm:$0xff]
                  %1104 = vst [vmem:[%s1096 + $0x30] sm:$0xff] %v1103
                $region102: #{encoder_forward.5} parent=96 // loop_footer
                  %s1094 = sadd.s32 1, %s1090
                $region103: #{encoder_forward.5} parent=96 // loop_footer_branch
                  %1089 = sbr.rel target = $region99
                $region104: #{encoder_forward.5} parent=96 // loop_exit
                  _
              $region97: #{encoder_forward.5} parent=81 // pred_fallthru
                _
              // Predicated region
              $region105: #{encoder_forward.5} parent=81 // pred_check
                _
              $region106: #{encoder_forward.5} parent=81 // pred_check_branch
                %1106 = sbr.rel target = $region108
              $region107: #{encoder_forward.5} parent=81 // pred_region
                _
              $region108: #{encoder_forward.5} parent=81 // pred_fallthru
                _
            $region82: #{encoder_forward.5} parent=77 // pred_fallthru
              _
            // Predicated region
            $region83: #{encoder_forward.5} parent=77 // pred_check
              _
            $region84: #{encoder_forward.5} parent=77 // pred_check_branch
              %1068 = sbr.rel target = $region86
            $region85: #{encoder_forward.5} parent=77 // pred_region
              %s1070 = ssub.s32 256, 1
              loop: start=0, step=1, limit=1
              $region87: #{encoder_forward.5} parent=85 // loop_pre_header
                _
              $region88: #{encoder_forward.5} parent=85 // loop_header
                %s1072 = sphi 0, %s1076
                %p1073 = scmp.ge.s32.totalorder %s1072, 1
                %s1077 = sphi %s1056, %s1056
                %s1078 = sphi %s1062, %s1062
              $region89: #{encoder_forward.5} parent=85 // loop_header_branch
                %1075 = sbr.rel (%p1073) target = $region93
              $region90: #{encoder_forward.5} parent=85 // loop_body
                %v1079 = vld [vmem:[%s1077] sm:%s1070]
                %1080 = vst [vmem:[%s1078] sm:%s1070] %v1079
                %v1081 = vld [vmem:[%s1077 + $0x8] sm:%s1070]
                %1082 = vst [vmem:[%s1078 + $0x10] sm:%s1070] %v1081
                %v1083 = vld [vmem:[%s1077 + $0x10] sm:%s1070]
                %1084 = vst [vmem:[%s1078 + $0x20] sm:%s1070] %v1083
                %v1085 = vld [vmem:[%s1077 + $0x18] sm:%s1070]
                %1086 = vst [vmem:[%s1078 + $0x30] sm:%s1070] %v1085
              $region91: #{encoder_forward.5} parent=85 // loop_footer
                %s1076 = sadd.s32 1, %s1072
              $region92: #{encoder_forward.5} parent=85 // loop_footer_branch
                %1071 = sbr.rel target = $region88
              $region93: #{encoder_forward.5} parent=85 // loop_exit
                _
            $region86: #{encoder_forward.5} parent=77 // pred_fallthru
              _
          $region78: #{encoder_forward.5} parent=73 // pred_fallthru
            _
          %1107 = vnop
        $region74: #{encoder_forward.5} parent=65 // pred_fallthru
          _
      $region66: #{encoder_forward.5} parent=5 // pred_fallthru
        _
      %p1108 = scmp.le.s32.totalorder 2, %s9
      // Predicated region
      $region109: #{encoder_forward.5} parent=5 // pred_check
        %p1109 = pneg %p1108
      $region110: #{encoder_forward.5} parent=5 // pred_check_branch
        %1111 = sbr.rel (%p1109) target = $region112
      $region111: #{encoder_forward.5} parent=5 // pred_region
        %s1112 = ssub.s32 %s9, 2
        // Predicated region
        $region113: #{encoder_forward.5} parent=111 // pred_check
          %p1113 = pneg %p106
        $region114: #{encoder_forward.5} parent=111 // pred_check_branch
          %1115 = sbr.rel (%p1113) target = $region116
        $region115: #{encoder_forward.5} parent=111 // pred_region
          %s1116 = sand.u32 %s91, 1
          %s1117 = sand.u32 %s91, 1
          %s1118 = smul.addr %s1117, 32
          %s1119 = scalar_lea.vmem [#allocation3], %s1118
        $region116: #{encoder_forward.5} parent=111 // pred_fallthru
          _
      $region112: #{encoder_forward.5} parent=5 // pred_fallthru
        _
    $region6: #{encoder_forward.5} parent=1 // loop_footer
      %s13 = sadd.s32 1, %s9
    $region7: #{encoder_forward.5} parent=1 // loop_footer_branch
      %8 = sbr.rel target = $region3
    $region8: #{encoder_forward.5} parent=1 // loop_exit
      _

// kernel: encoder_forward.6
$region0: #{encoder_forward.6}
  #allocation0 [shape = 'u32[]', space=smem, size = 0x4, offset = 0x4, fixed_abs, tag = 'smem constant byte address 0x4 - core index']
  #allocation1 [shape = 'u32[144,128]{1,0:T(1,128)}', space=vmem, size = 0x12000, scoped, tag = 'internal scratch']
  %s0 = inlined_call_operand.vmem [shape: bf16[64,512], index: 0, kind: input, shape index: {}]
  %s1 = inlined_call_operand.vmem [shape: bf16[512,128], index: 1, kind: input, shape index: {}]
  %s2 = inlined_call_operand.vmem [shape: f32[64,1], index: 2, kind: input, shape index: {}]
  %s3 = inlined_call_operand.vmem [shape: bf16[64,128], index: 3, kind: output, shape index: {}]
  %s4 = sld [smem:[#allocation0]]
  $region22: #{encoder_forward.6} parent=0
    _
  %s6 = ssub.s32 1, %s4
  %s7 = scalar_select 0, %s6, %s4
  // Predicated region
  $region2: #{encoder_forward.6} parent=0 // pred_check
    _
  $region3: #{encoder_forward.6} parent=0 // pred_check_branch
    %9 = sbr.rel (0) target = $region5
  $region4: #{encoder_forward.6} parent=0 // pred_region
    _
  $region5: #{encoder_forward.6} parent=0 // pred_fallthru
    _
  // Predicated region
  $region6: #{encoder_forward.6} parent=0 // pred_check
    _
  $region7: #{encoder_forward.6} parent=0 // pred_check_branch
    %11 = sbr.rel (0) target = $region9
  $region8: #{encoder_forward.6} parent=0 // pred_region
    _
  $region9: #{encoder_forward.6} parent=0 // pred_fallthru
    _
  // Predicated region
  $region10: #{encoder_forward.6} parent=0 // pred_check
    _
  $region11: #{encoder_forward.6} parent=0 // pred_check_branch
    %13 = sbr.rel (0) target = $region13
  $region12: #{encoder_forward.6} parent=0 // pred_region
    _
  $region13: #{encoder_forward.6} parent=0 // pred_fallthru
    _
  %v15 = vld [vmem:[%s0] sm:$0xff]
  %v16 = vld [vmem:[%s0 + $0x8] sm:$0xff]
  %v17 = vld [vmem:[%s0 + $0x10] sm:$0xff]
  %v18 = vld [vmem:[%s0 + $0x18] sm:$0xff]
  %v19 = vld [vmem:[%s0 + $0x20] sm:$0xff]
  %v20 = vld [vmem:[%s0 + $0x28] sm:$0xff]
  %v21 = vld [vmem:[%s0 + $0x30] sm:$0xff]
  %v22 = vld [vmem:[%s0 + $0x38] sm:$0xff]
  %v23 = vld [vmem:[%s0 + $0x40] sm:$0xff]
  %v24 = vld [vmem:[%s0 + $0x48] sm:$0xff]
  %v25 = vld [vmem:[%s0 + $0x50] sm:$0xff]
  %v26 = vld [vmem:[%s0 + $0x58] sm:$0xff]
  %v27 = vld [vmem:[%s0 + $0x60] sm:$0xff]
  %v28 = vld [vmem:[%s0 + $0x68] sm:$0xff]
  %v29 = vld [vmem:[%s0 + $0x70] sm:$0xff]
  %v30 = vld [vmem:[%s0 + $0x78] sm:$0xff]
  %v31 = vld [vmem:[%s1] sm:$0xf]
  %v32 = vld [vmem:[%s1 + $0x4] sm:$0xf]
  %v33 = vld [vmem:[%s1 + $0x8] sm:$0xf]
  %v34 = vld [vmem:[%s1 + $0xc] sm:$0xf]
  %v35 = vld [vmem:[%s1 + $0x10] sm:$0xf]
  %v36 = vld [vmem:[%s1 + $0x14] sm:$0xf]
  %v37 = vld [vmem:[%s1 + $0x18] sm:$0xf]
  %v38 = vld [vmem:[%s1 + $0x1c] sm:$0xf]
  %v39 = vld [vmem:[%s1 + $0x20] sm:$0xf]
  %v40 = vld [vmem:[%s1 + $0x24] sm:$0xf]
  %v41 = vld [vmem:[%s1 + $0x28] sm:$0xf]
  %v42 = vld [vmem:[%s1 + $0x2c] sm:$0xf]
  %v43 = vld [vmem:[%s1 + $0x30] sm:$0xf]
  %v44 = vld [vmem:[%s1 + $0x34] sm:$0xf]
  %v45 = vld [vmem:[%s1 + $0x38] sm:$0xf]
  %v46 = vld [vmem:[%s1 + $0x3c] sm:$0xf]
  %v47 = vld [vmem:[%s1 + $0x40] sm:$0xf]
  %v48 = vld [vmem:[%s1 + $0x44] sm:$0xf]
  %v49 = vld [vmem:[%s1 + $0x48] sm:$0xf]
  %v50 = vld [vmem:[%s1 + $0x4c] sm:$0xf]
  %v51 = vld [vmem:[%s1 + $0x50] sm:$0xf]
  %v52 = vld [vmem:[%s1 + $0x54] sm:$0xf]
  %v53 = vld [vmem:[%s1 + $0x58] sm:$0xf]
  %v54 = vld [vmem:[%s1 + $0x5c] sm:$0xf]
  %v55 = vld [vmem:[%s1 + $0x60] sm:$0xf]
  %v56 = vld [vmem:[%s1 + $0x64] sm:$0xf]
  %v57 = vld [vmem:[%s1 + $0x68] sm:$0xf]
  %v58 = vld [vmem:[%s1 + $0x6c] sm:$0xf]
  %v59 = vld [vmem:[%s1 + $0x70] sm:$0xf]
  %v60 = vld [vmem:[%s1 + $0x74] sm:$0xf]
  %v61 = vld [vmem:[%s1 + $0x78] sm:$0xf]
  %v62 = vld [vmem:[%s1 + $0x7c] sm:$0xf]
  %v63 = vld [vmem:[%s1 + $0x80] sm:$0xf]
  %v64 = vld [vmem:[%s1 + $0x84] sm:$0xf]
  %v65 = vld [vmem:[%s1 + $0x88] sm:$0xf]
  %v66 = vld [vmem:[%s1 + $0x8c] sm:$0xf]
  %v67 = vld [vmem:[%s1 + $0x90] sm:$0xf]
  %v68 = vld [vmem:[%s1 + $0x94] sm:$0xf]
  %v69 = vld [vmem:[%s1 + $0x98] sm:$0xf]
  %v70 = vld [vmem:[%s1 + $0x9c] sm:$0xf]
  %v71 = vld [vmem:[%s1 + $0xa0] sm:$0xf]
  %v72 = vld [vmem:[%s1 + $0xa4] sm:$0xf]
  %v73 = vld [vmem:[%s1 + $0xa8] sm:$0xf]
  %v74 = vld [vmem:[%s1 + $0xac] sm:$0xf]
  %v75 = vld [vmem:[%s1 + $0xb0] sm:$0xf]
  %v76 = vld [vmem:[%s1 + $0xb4] sm:$0xf]
  %v77 = vld [vmem:[%s1 + $0xb8] sm:$0xf]
  %v78 = vld [vmem:[%s1 + $0xbc] sm:$0xf]
  %v79 = vld [vmem:[%s1 + $0xc0] sm:$0xf]
  %v80 = vld [vmem:[%s1 + $0xc4] sm:$0xf]
  %v81 = vld [vmem:[%s1 + $0xc8] sm:$0xf]
  %v82 = vld [vmem:[%s1 + $0xcc] sm:$0xf]
  %v83 = vld [vmem:[%s1 + $0xd0] sm:$0xf]
  %v84 = vld [vmem:[%s1 + $0xd4] sm:$0xf]
  %v85 = vld [vmem:[%s1 + $0xd8] sm:$0xf]
  %v86 = vld [vmem:[%s1 + $0xdc] sm:$0xf]
  %v87 = vld [vmem:[%s1 + $0xe0] sm:$0xf]
  %v88 = vld [vmem:[%s1 + $0xe4] sm:$0xf]
  %v89 = vld [vmem:[%s1 + $0xe8] sm:$0xf]
  %v90 = vld [vmem:[%s1 + $0xec] sm:$0xf]
  %v91 = vld [vmem:[%s1 + $0xf0] sm:$0xf]
  %v92 = vld [vmem:[%s1 + $0xf4] sm:$0xf]
  %v93 = vld [vmem:[%s1 + $0xf8] sm:$0xf]
  %v94 = vld [vmem:[%s1 + $0xfc] sm:$0xf]
  %v95 = vld [vmem:[%s2] sm:$0xff]
  %v96 = vld [vmem:[%s2 + $0x8] sm:$0xff]
  %v97 = vld [vmem:[%s2 + $0x10] sm:$0xff]
  %v98 = vld [vmem:[%s2 + $0x18] sm:$0xff]
  %v99 = vld [vmem:[%s2 + $0x20] sm:$0xff]
  %v100 = vld [vmem:[%s2 + $0x28] sm:$0xff]
  %v101 = vld [vmem:[%s2 + $0x30] sm:$0xff]
  %v102 = vld [vmem:[%s2 + $0x38] sm:$0xff]
  %104 = vset.pattern.permute.xlu0 0
  %105 = vperm.xlu0 %104, %v95
  %v106 = vpop.permute.xlu0 %105
  %109 = vset.pattern.permute.xlu0 0
  %110 = vperm.xlu0 %109, %v96
  %v111 = vpop.permute.xlu0 %110
  %114 = vset.pattern.permute.xlu0 0
  %115 = vperm.xlu0 %114, %v97
  %v116 = vpop.permute.xlu0 %115
  %119 = vset.pattern.permute.xlu0 0
  %120 = vperm.xlu0 %119, %v98
  %v121 = vpop.permute.xlu0 %120
  %124 = vset.pattern.permute.xlu0 0
  %125 = vperm.xlu0 %124, %v99
  %v126 = vpop.permute.xlu0 %125
  %129 = vset.pattern.permute.xlu0 0
  %130 = vperm.xlu0 %129, %v100
  %v131 = vpop.permute.xlu0 %130
  %134 = vset.pattern.permute.xlu0 0
  %135 = vperm.xlu0 %134, %v101
  %v136 = vpop.permute.xlu0 %135
  %139 = vset.pattern.permute.xlu0 0
  %140 = vperm.xlu0 %139, %v102
  %v141 = vpop.permute.xlu0 %140
  %v159 = vunpack.c.l.b16 %v15
  %v160 = vunpack.c.h.b16 %v15
  %v161 = vunpack.c.l.b16 %v16
  %v162 = vunpack.c.h.b16 %v16
  %v163 = vunpack.c.l.b16 %v17
  %v164 = vunpack.c.h.b16 %v17
  %v165 = vunpack.c.l.b16 %v18
  %v166 = vunpack.c.h.b16 %v18
  %v167 = vunpack.c.l.b16 %v19
  %v168 = vunpack.c.h.b16 %v19
  %v169 = vunpack.c.l.b16 %v20
  %v170 = vunpack.c.h.b16 %v20
  %v171 = vunpack.c.l.b16 %v21
  %v172 = vunpack.c.h.b16 %v21
  %v173 = vunpack.c.l.b16 %v22
  %v174 = vunpack.c.h.b16 %v22
  %v175 = vunpack.c.l.b16 %v23
  %v176 = vunpack.c.h.b16 %v23
  %v177 = vunpack.c.l.b16 %v24
  %v178 = vunpack.c.h.b16 %v24
  %v179 = vunpack.c.l.b16 %v25
  %v180 = vunpack.c.h.b16 %v25
  %v181 = vunpack.c.l.b16 %v26
  %v182 = vunpack.c.h.b16 %v26
  %v183 = vunpack.c.l.b16 %v27
  %v184 = vunpack.c.h.b16 %v27
  %v185 = vunpack.c.l.b16 %v28
  %v186 = vunpack.c.h.b16 %v28
  %v187 = vunpack.c.l.b16 %v29
  %v188 = vunpack.c.h.b16 %v29
  %v189 = vunpack.c.l.b16 %v30
  %v190 = vunpack.c.h.b16 %v30
  %v191 = vpack.c.b16 %v163, %v159
  %v192 = vpack.c.b16 %v164, %v160
  %v193 = vpack.c.b16 %v165, %v161
  %v194 = vpack.c.b16 %v166, %v162
  %v195 = vpack.c.b16 %v171, %v167
  %v196 = vpack.c.b16 %v172, %v168
  %v197 = vpack.c.b16 %v173, %v169
  %v198 = vpack.c.b16 %v174, %v170
  %v199 = vpack.c.b16 %v179, %v175
  %v200 = vpack.c.b16 %v180, %v176
  %v201 = vpack.c.b16 %v181, %v177
  %v202 = vpack.c.b16 %v182, %v178
  %v203 = vpack.c.b16 %v187, %v183
  %v204 = vpack.c.b16 %v188, %v184
  %v205 = vpack.c.b16 %v189, %v185
  %v206 = vpack.c.b16 %v190, %v186
  %v287 = vunpack.c.l.b16 %v31
  %v288 = vunpack.c.l.b16 %v32
  %v289 = vunpack.c.l.b16 %v33
  %v290 = vunpack.c.l.b16 %v34
  %v291 = vunpack.c.l.b16 %v35
  %v292 = vunpack.c.l.b16 %v36
  %v293 = vunpack.c.l.b16 %v37
  %v294 = vunpack.c.l.b16 %v38
  %v295 = vunpack.c.l.b16 %v39
  %v296 = vunpack.c.l.b16 %v40
  %v297 = vunpack.c.l.b16 %v41
  %v298 = vunpack.c.l.b16 %v42
  %v299 = vunpack.c.l.b16 %v43
  %v300 = vunpack.c.l.b16 %v44
  %v301 = vunpack.c.l.b16 %v45
  %v302 = vunpack.c.l.b16 %v46
  %v303 = vunpack.c.l.b16 %v47
  %v304 = vunpack.c.l.b16 %v48
  %v305 = vunpack.c.l.b16 %v49
  %v306 = vunpack.c.l.b16 %v50
  %v307 = vunpack.c.l.b16 %v51
  %v308 = vunpack.c.l.b16 %v52
  %v309 = vunpack.c.l.b16 %v53
  %v310 = vunpack.c.l.b16 %v54
  %v311 = vunpack.c.l.b16 %v55
  %v312 = vunpack.c.l.b16 %v56
  %v313 = vunpack.c.l.b16 %v57
  %v314 = vunpack.c.l.b16 %v58
  %v315 = vunpack.c.l.b16 %v59
  %v316 = vunpack.c.l.b16 %v60
  %v317 = vunpack.c.l.b16 %v61
  %v318 = vunpack.c.l.b16 %v62
  %v319 = vunpack.c.l.b16 %v63
  %v320 = vunpack.c.l.b16 %v64
  %v321 = vunpack.c.l.b16 %v65
  %v322 = vunpack.c.l.b16 %v66
  %v323 = vunpack.c.l.b16 %v67
  %v324 = vunpack.c.l.b16 %v68
  %v325 = vunpack.c.l.b16 %v69
  %v326 = vunpack.c.l.b16 %v70
  %v327 = vunpack.c.l.b16 %v71
  %v328 = vunpack.c.l.b16 %v72
  %v329 = vunpack.c.l.b16 %v73
  %v330 = vunpack.c.l.b16 %v74
  %v331 = vunpack.c.l.b16 %v75
  %v332 = vunpack.c.l.b16 %v76
  %v333 = vunpack.c.l.b16 %v77
  %v334 = vunpack.c.l.b16 %v78
  %v335 = vunpack.c.l.b16 %v79
  %v336 = vunpack.c.l.b16 %v80
  %v337 = vunpack.c.l.b16 %v81
  %v338 = vunpack.c.l.b16 %v82
  %v339 = vunpack.c.l.b16 %v83
  %v340 = vunpack.c.l.b16 %v84
  %v341 = vunpack.c.l.b16 %v85
  %v342 = vunpack.c.l.b16 %v86
  %v343 = vunpack.c.l.b16 %v87
  %v344 = vunpack.c.l.b16 %v88
  %v345 = vunpack.c.l.b16 %v89
  %v346 = vunpack.c.l.b16 %v90
  %v347 = vunpack.c.l.b16 %v91
  %v348 = vunpack.c.l.b16 %v92
  %v349 = vunpack.c.l.b16 %v93
  %v350 = vunpack.c.l.b16 %v94
  %v351 = vpack.c.b16 %v288, %v287
  %v352 = vpack.c.b16 %v290, %v289
  %v353 = vpack.c.b16 %v292, %v291
  %v354 = vpack.c.b16 %v294, %v293
  %v355 = vpack.c.b16 %v296, %v295
  %v356 = vpack.c.b16 %v298, %v297
  %v357 = vpack.c.b16 %v300, %v299
  %v358 = vpack.c.b16 %v302, %v301
  %v359 = vpack.c.b16 %v304, %v303
  %v360 = vpack.c.b16 %v306, %v305
  %v361 = vpack.c.b16 %v308, %v307
  %v362 = vpack.c.b16 %v310, %v309
  %v363 = vpack.c.b16 %v312, %v311
  %v364 = vpack.c.b16 %v314, %v313
  %v365 = vpack.c.b16 %v316, %v315
  %v366 = vpack.c.b16 %v318, %v317
  %v367 = vpack.c.b16 %v320, %v319
  %v368 = vpack.c.b16 %v322, %v321
  %v369 = vpack.c.b16 %v324, %v323
  %v370 = vpack.c.b16 %v326, %v325
  %v371 = vpack.c.b16 %v328, %v327
  %v372 = vpack.c.b16 %v330, %v329
  %v373 = vpack.c.b16 %v332, %v331
  %v374 = vpack.c.b16 %v334, %v333
  %v375 = vpack.c.b16 %v336, %v335
  %v376 = vpack.c.b16 %v338, %v337
  %v377 = vpack.c.b16 %v340, %v339
  %v378 = vpack.c.b16 %v342, %v341
  %v379 = vpack.c.b16 %v344, %v343
  %v380 = vpack.c.b16 %v346, %v345
  %v381 = vpack.c.b16 %v348, %v347
  %v382 = vpack.c.b16 %v350, %v349
  %415 = vmatprep.subr.bf16.mxu0 0
  %416 = vmatpush1.bf16.msra.mxu0 %v358
  %417 = vmatprep.subr.bf16.mxu0 0
  %418 = vmatpush1.bf16.msra.mxu0 %v357
  %419 = vmatprep.subr.bf16.mxu0 0
  %420 = vmatpush1.bf16.msra.mxu0 %v356
  %421 = vmatprep.subr.bf16.mxu0 0
  %422 = vmatpush1.bf16.msra.mxu0 %v355
  %423 = vmatprep.subr.bf16.mxu0 0
  %424 = vmatpush1.bf16.msra.mxu0 %v354
  %425 = vmatprep.subr.bf16.mxu0 0
  %426 = vmatpush1.bf16.msra.mxu0 %v353
  %427 = vmatprep.subr.bf16.mxu0 0
  %428 = vmatpush1.bf16.msra.mxu0 %v352
  %429 = vmatprep.subr.bf16.mxu0 0
  %430 = vmatpush1.bf16.msra.mxu0 %v351
  %431 = vmatprep.subr.bf16.mxu0 0
  %432 = vmatpush2.bf16.msra.mxu0 %v366
  %433 = vmatprep.subr.bf16.mxu0 0
  %434 = vmatpush2.bf16.msra.mxu0 %v365
  %435 = vmatprep.subr.bf16.mxu0 0
  %436 = vmatpush2.bf16.msra.mxu0 %v364
  %437 = vmatprep.subr.bf16.mxu0 0
  %438 = vmatpush2.bf16.msra.mxu0 %v363
  %439 = vmatprep.subr.bf16.mxu0 0
  %440 = vmatpush2.bf16.msra.mxu0 %v362
  %441 = vmatprep.subr.bf16.mxu0 0
  %442 = vmatpush2.bf16.msra.mxu0 %v361
  %443 = vmatprep.subr.bf16.mxu0 0
  %444 = vmatpush2.bf16.msra.mxu0 %v360
  %445 = vmatprep.subr.bf16.mxu0 0
  %446 = vmatpush2.bf16.msra.mxu0 %v359
  %447 = vmatprep.mubr.bf16.mxu0 %v192
  %448 = vmatmul.mubr.bf16.gmra.mxu0 %v191
  %v449 = vpop.f32.mrf.mxu0
  %v450 = vadd.f32 %v106, %v449
  %v451 = vpop.f32.mrf.mxu0
  %v452 = vpop.f32.mrf.mxu0
  %v453 = vadd.f32 %v111, %v452
  %v454 = vpop.f32.mrf.mxu0
  %455 = vmatprep.mubr.bf16.mxu0 %v196
  %456 = vmatmul.mubr.bf16.gmra.mxu0 %v195
  %v457 = vpop.f32.mrf.mxu0
  %v458 = vadd.f32 %v116, %v457
  %v459 = vpop.f32.mrf.mxu0
  %v460 = vpop.f32.mrf.mxu0
  %v461 = vadd.f32 %v121, %v460
  %v462 = vpop.f32.mrf.mxu0
  %463 = vmatprep.mubr.bf16.mxu0 %v200
  %464 = vmatmul.mubr.bf16.gmra.mxu0 %v199
  %v465 = vpop.f32.mrf.mxu0
  %v466 = vadd.f32 %v126, %v465
  %v467 = vpop.f32.mrf.mxu0
  %v468 = vpop.f32.mrf.mxu0
  %v469 = vadd.f32 %v131, %v468
  %v470 = vpop.f32.mrf.mxu0
  %471 = vmatprep.mubr.bf16.mxu0 %v204
  %472 = vmatmul.mubr.bf16.gmra.mxu0 %v203
  %v473 = vpop.f32.mrf.mxu0
  %v474 = vadd.f32 %v136, %v473
  %v475 = vpop.f32.mrf.mxu0
  %v476 = vpop.f32.mrf.mxu0
  %v477 = vadd.f32 %v141, %v476
  %v478 = vpop.f32.mrf.mxu0
  %479 = vdwg.mxu0
  %480 = vmatprep.subr.bf16.mxu0 0
  %481 = vmatpush1.bf16.msra.mxu0 %v374
  %482 = vmatprep.subr.bf16.mxu0 0
  %483 = vmatpush1.bf16.msra.mxu0 %v373
  %484 = vmatprep.subr.bf16.mxu0 0
  %485 = vmatpush1.bf16.msra.mxu0 %v372
  %486 = vmatprep.subr.bf16.mxu0 0
  %487 = vmatpush1.bf16.msra.mxu0 %v371
  %488 = vmatprep.subr.bf16.mxu0 0
  %489 = vmatpush1.bf16.msra.mxu0 %v370
  %490 = vmatprep.subr.bf16.mxu0 0
  %491 = vmatpush1.bf16.msra.mxu0 %v369
  %492 = vmatprep.subr.bf16.mxu0 0
  %493 = vmatpush1.bf16.msra.mxu0 %v368
  %494 = vmatprep.subr.bf16.mxu0 0
  %495 = vmatpush1.bf16.msra.mxu0 %v367
  %496 = vmatprep.subr.bf16.mxu0 0
  %497 = vmatpush2.bf16.msra.mxu0 %v382
  %498 = vmatprep.subr.bf16.mxu0 0
  %499 = vmatpush2.bf16.msra.mxu0 %v381
  %500 = vmatprep.subr.bf16.mxu0 0
  %501 = vmatpush2.bf16.msra.mxu0 %v380
  %502 = vmatprep.subr.bf16.mxu0 0
  %503 = vmatpush2.bf16.msra.mxu0 %v379
  %504 = vmatprep.subr.bf16.mxu0 0
  %505 = vmatpush2.bf16.msra.mxu0 %v378
  %506 = vmatprep.subr.bf16.mxu0 0
  %507 = vmatpush2.bf16.msra.mxu0 %v377
  %508 = vmatprep.subr.bf16.mxu0 0
  %509 = vmatpush2.bf16.msra.mxu0 %v376
  %510 = vmatprep.subr.bf16.mxu0 0
  %511 = vmatpush2.bf16.msra.mxu0 %v375
  %512 = vmatprep.mubr.bf16.mxu0 %v194
  %513 = vmatmul.mubr.bf16.gmra.mxu0 %v193
  %v514 = vpop.f32.mrf.mxu0
  %v515 = vadd.f32 %v450, %v514
  %v516 = vpop.f32.mrf.mxu0
  %v517 = vpop.f32.mrf.mxu0
  %v518 = vadd.f32 %v453, %v517
  %v519 = vpop.f32.mrf.mxu0
  %520 = vmatprep.mubr.bf16.mxu0 %v198
  %521 = vmatmul.mubr.bf16.gmra.mxu0 %v197
  %v522 = vpop.f32.mrf.mxu0
  %v523 = vadd.f32 %v458, %v522
  %v524 = vpop.f32.mrf.mxu0
  %v525 = vpop.f32.mrf.mxu0
  %v526 = vadd.f32 %v461, %v525
  %v527 = vpop.f32.mrf.mxu0
  %528 = vmatprep.mubr.bf16.mxu0 %v202
  %529 = vmatmul.mubr.bf16.gmra.mxu0 %v201
  %v530 = vpop.f32.mrf.mxu0
  %v531 = vadd.f32 %v466, %v530
  %v532 = vpop.f32.mrf.mxu0
  %v533 = vpop.f32.mrf.mxu0
  %v534 = vadd.f32 %v469, %v533
  %v535 = vpop.f32.mrf.mxu0
  %536 = vmatprep.mubr.bf16.mxu0 %v206
  %537 = vmatmul.mubr.bf16.gmra.mxu0 %v205
  %v538 = vpop.f32.mrf.mxu0
  %v539 = vadd.f32 %v474, %v538
  %v540 = vpop.f32.mrf.mxu0
  %v541 = vpop.f32.mrf.mxu0
  %v542 = vadd.f32 %v477, %v541
  %v543 = vpop.f32.mrf.mxu0
  %544 = vdwg.mxu0
  %v545 = vmax.f32 %v515, 0.0
  %v546 = vmax.f32 %v518, 0.0
  %v547 = vmax.f32 %v523, 0.0
  %v548 = vmax.f32 %v526, 0.0
  %v549 = vmax.f32 %v531, 0.0
  %v550 = vmax.f32 %v534, 0.0
  %v551 = vmax.f32 %v539, 0.0
  %v552 = vmax.f32 %v542, 0.0
  %v553 = vpack.c.bf16 %v546, %v545
  %v554 = vpack.c.bf16 %v548, %v547
  %v555 = vpack.c.bf16 %v550, %v549
  %v556 = vpack.c.bf16 %v552, %v551
  %v561 = vunpack.c.l.b16 %v553
  %v562 = vunpack.c.h.b16 %v553
  %v563 = vunpack.c.l.b16 %v554
  %v564 = vunpack.c.h.b16 %v554
  %v565 = vunpack.c.l.b16 %v555
  %v566 = vunpack.c.h.b16 %v555
  %v567 = vunpack.c.l.b16 %v556
  %v568 = vunpack.c.h.b16 %v556
  %v569 = vpack.c.b16 %v561, %v561
  %v570 = vpack.c.b16 %v562, %v562
  %v571 = vpack.c.b16 %v563, %v563
  %v572 = vpack.c.b16 %v564, %v564
  %v573 = vpack.c.b16 %v565, %v565
  %v574 = vpack.c.b16 %v566, %v566
  %v575 = vpack.c.b16 %v567, %v567
  %v576 = vpack.c.b16 %v568, %v568
  %585 = vst [vmem:[%s3] sm:$0xf] %v569
  %586 = vst [vmem:[%s3 + $0x4] sm:$0xf] %v570
  %587 = vst [vmem:[%s3 + $0x8] sm:$0xf] %v571
  %588 = vst [vmem:[%s3 + $0xc] sm:$0xf] %v572
  %589 = vst [vmem:[%s3 + $0x10] sm:$0xf] %v573
  %590 = vst [vmem:[%s3 + $0x14] sm:$0xf] %v574
  %591 = vst [vmem:[%s3 + $0x18] sm:$0xf] %v575
  %592 = vst [vmem:[%s3 + $0x1c] sm:$0xf] %v576
  // Predicated region
  $region14: #{encoder_forward.6} parent=0 // pred_check
    _
  $region15: #{encoder_forward.6} parent=0 // pred_check_branch
    %594 = sbr.rel (0) target = $region17
  $region16: #{encoder_forward.6} parent=0 // pred_region
    _
  $region17: #{encoder_forward.6} parent=0 // pred_fallthru
    _
  // Predicated region
  $region18: #{encoder_forward.6} parent=0 // pred_check
    _
  $region19: #{encoder_forward.6} parent=0 // pred_check_branch
    %596 = sbr.rel (0) target = $region21
  $region20: #{encoder_forward.6} parent=0 // pred_region
    _
  $region21: #{encoder_forward.6} parent=0 // pred_fallthru
    _

// kernel: encoder_forward.7
$region0: #{encoder_forward.7}
  #allocation0 [shape = 'u32[]', space=smem, size = 0x4, offset = 0x4, fixed_abs, tag = 'smem constant byte address 0x4 - core index']
  #allocation1 [shape = 'u32[144,128]{1,0:T(1,128)}', space=vmem, size = 0x12000, scoped, tag = 'internal scratch']
  %s0 = inlined_call_operand.vmem [shape: bf16[32,1024], index: 0, kind: input, shape index: {}]
  %s1 = inlined_call_operand.vmem [shape: bf16[1024,64], index: 1, kind: input, shape index: {}]
  %s2 = inlined_call_operand.vmem [shape: f32[1,64], index: 2, kind: input, shape index: {}]
  %s3 = inlined_call_operand.vmem [shape: bf16[16,64,256], index: 3, kind: input, shape index: {}]
  %s4 = inlined_call_operand.vmem [shape: f32[1,256], index: 4, kind: input, shape index: {}]
  %s5 = inlined_call_operand.vmem [shape: bf16[256,16], index: 5, kind: input, shape index: {}]
  %s6 = inlined_call_operand.vmem [shape: f32[1,16], index: 6, kind: input, shape index: {}]
  %s7 = inlined_call_operand.vmem [shape: f32[2,16], index: 7, kind: output, shape index: {}]
  %s8 = sld [smem:[#allocation0]]
  $region38: #{encoder_forward.7} parent=0
    _
  %s10 = ssub.s32 1, %s8
  %s11 = scalar_select 0, %s10, %s8
  // Predicated region
  $region2: #{encoder_forward.7} parent=0 // pred_check
    _
  $region3: #{encoder_forward.7} parent=0 // pred_check_branch
    %13 = sbr.rel (0) target = $region5
  $region4: #{encoder_forward.7} parent=0 // pred_region
    _
  $region5: #{encoder_forward.7} parent=0 // pred_fallthru
    _
  // Predicated region
  $region6: #{encoder_forward.7} parent=0 // pred_check
    _
  $region7: #{encoder_forward.7} parent=0 // pred_check_branch
    %15 = sbr.rel (0) target = $region9
  $region8: #{encoder_forward.7} parent=0 // pred_region
    _
  $region9: #{encoder_forward.7} parent=0 // pred_fallthru
    _
  // Predicated region
  $region10: #{encoder_forward.7} parent=0 // pred_check
    _
  $region11: #{encoder_forward.7} parent=0 // pred_check_branch
    %17 = sbr.rel (0) target = $region13
  $region12: #{encoder_forward.7} parent=0 // pred_region
    _
  $region13: #{encoder_forward.7} parent=0 // pred_fallthru
    _
  // Predicated region
  $region14: #{encoder_forward.7} parent=0 // pred_check
    _
  $region15: #{encoder_forward.7} parent=0 // pred_check_branch
    %19 = sbr.rel (0) target = $region17
  $region16: #{encoder_forward.7} parent=0 // pred_region
    _
  $region17: #{encoder_forward.7} parent=0 // pred_fallthru
    _
  // Predicated region
  $region18: #{encoder_forward.7} parent=0 // pred_check
    _
  $region19: #{encoder_forward.7} parent=0 // pred_check_branch
    %21 = sbr.rel (0) target = $region21
  $region20: #{encoder_forward.7} parent=0 // pred_region
    _
  $region21: #{encoder_forward.7} parent=0 // pred_fallthru
    _
  // Predicated region
  $region22: #{encoder_forward.7} parent=0 // pred_check
    _
  $region23: #{encoder_forward.7} parent=0 // pred_check_branch
    %23 = sbr.rel (0) target = $region25
  $region24: #{encoder_forward.7} parent=0 // pred_region
    _
  $region25: #{encoder_forward.7} parent=0 // pred_fallthru
    _
  // Predicated region
  $region26: #{encoder_forward.7} parent=0 // pred_check
    _
  $region27: #{encoder_forward.7} parent=0 // pred_check_branch
    %25 = sbr.rel (0) target = $region29
  $region28: #{encoder_forward.7} parent=0 // pred_region
    _
  $region29: #{encoder_forward.7} parent=0 // pred_fallthru
    _
  %v27 = vld [vmem:[%s0] sm:$0xff]
  %v28 = vld [vmem:[%s0 + $0x8] sm:$0xff]
  %v29 = vld [vmem:[%s0 + $0x10] sm:$0xff]
  %v30 = vld [vmem:[%s0 + $0x18] sm:$0xff]
  %v31 = vld [vmem:[%s0 + $0x20] sm:$0xff]
  %v32 = vld [vmem:[%s0 + $0x28] sm:$0xff]
  %v33 = vld [vmem:[%s0 + $0x30] sm:$0xff]
  %v34 = vld [vmem:[%s0 + $0x38] sm:$0xff]
  %v35 = vld [vmem:[%s0 + $0x40] sm:$0xff]
  %v36 = vld [vmem:[%s0 + $0x48] sm:$0xff]
  %v37 = vld [vmem:[%s0 + $0x50] sm:$0xff]
  %v38 = vld [vmem:[%s0 + $0x58] sm:$0xff]
  %v39 = vld [vmem:[%s0 + $0x60] sm:$0xff]
  %v40 = vld [vmem:[%s0 + $0x68] sm:$0xff]
  %v41 = vld [vmem:[%s0 + $0x70] sm:$0xff]
  %v42 = vld [vmem:[%s0 + $0x78] sm:$0xff]
  %v43 = vld [vmem:[%s1] sm:$0xf]
  %v44 = vld [vmem:[%s1 + $0x4] sm:$0xf]
  %v45 = vld [vmem:[%s1 + $0x8] sm:$0xf]
  %v46 = vld [vmem:[%s1 + $0xc] sm:$0xf]
  %v47 = vld [vmem:[%s1 + $0x10] sm:$0xf]
  %v48 = vld [vmem:[%s1 + $0x14] sm:$0xf]
  %v49 = vld [vmem:[%s1 + $0x18] sm:$0xf]
  %v50 = vld [vmem:[%s1 + $0x1c] sm:$0xf]
  %v51 = vld [vmem:[%s1 + $0x20] sm:$0xf]
  %v52 = vld [vmem:[%s1 + $0x24] sm:$0xf]
  %v53 = vld [vmem:[%s1 + $0x28] sm:$0xf]
  %v54 = vld [vmem:[%s1 + $0x2c] sm:$0xf]
  %v55 = vld [vmem:[%s1 + $0x30] sm:$0xf]
  %v56 = vld [vmem:[%s1 + $0x34] sm:$0xf]
  %v57 = vld [vmem:[%s1 + $0x38] sm:$0xf]
  %v58 = vld [vmem:[%s1 + $0x3c] sm:$0xf]
  %v59 = vld [vmem:[%s1 + $0x40] sm:$0xf]
  %v60 = vld [vmem:[%s1 + $0x44] sm:$0xf]
  %v61 = vld [vmem:[%s1 + $0x48] sm:$0xf]
  %v62 = vld [vmem:[%s1 + $0x4c] sm:$0xf]
  %v63 = vld [vmem:[%s1 + $0x50] sm:$0xf]
  %v64 = vld [vmem:[%s1 + $0x54] sm:$0xf]
  %v65 = vld [vmem:[%s1 + $0x58] sm:$0xf]
  %v66 = vld [vmem:[%s1 + $0x5c] sm:$0xf]
  %v67 = vld [vmem:[%s1 + $0x60] sm:$0xf]
  %v68 = vld [vmem:[%s1 + $0x64] sm:$0xf]
  %v69 = vld [vmem:[%s1 + $0x68] sm:$0xf]
  %v70 = vld [vmem:[%s1 + $0x6c] sm:$0xf]
  %v71 = vld [vmem:[%s1 + $0x70] sm:$0xf]
  %v72 = vld [vmem:[%s1 + $0x74] sm:$0xf]
  %v73 = vld [vmem:[%s1 + $0x78] sm:$0xf]
  %v74 = vld [vmem:[%s1 + $0x7c] sm:$0xf]
  %v75 = vld [vmem:[%s1 + $0x80] sm:$0xf]
  %v76 = vld [vmem:[%s1 + $0x84] sm:$0xf]
  %v77 = vld [vmem:[%s1 + $0x88] sm:$0xf]
  %v78 = vld [vmem:[%s1 + $0x8c] sm:$0xf]
  %v79 = vld [vmem:[%s1 + $0x90] sm:$0xf]
  %v80 = vld [vmem:[%s1 + $0x94] sm:$0xf]
  %v81 = vld [vmem:[%s1 + $0x98] sm:$0xf]
  %v82 = vld [vmem:[%s1 + $0x9c] sm:$0xf]
  %v83 = vld [vmem:[%s1 + $0xa0] sm:$0xf]
  %v84 = vld [vmem:[%s1 + $0xa4] sm:$0xf]
  %v85 = vld [vmem:[%s1 + $0xa8] sm:$0xf]
  %v86 = vld [vmem:[%s1 + $0xac] sm:$0xf]
  %v87 = vld [vmem:[%s1 + $0xb0] sm:$0xf]
  %v88 = vld [vmem:[%s1 + $0xb4] sm:$0xf]
  %v89 = vld [vmem:[%s1 + $0xb8] sm:$0xf]
  %v90 = vld [vmem:[%s1 + $0xbc] sm:$0xf]
  %v91 = vld [vmem:[%s1 + $0xc0] sm:$0xf]
  %v92 = vld [vmem:[%s1 + $0xc4] sm:$0xf]
  %v93 = vld [vmem:[%s1 + $0xc8] sm:$0xf]
  %v94 = vld [vmem:[%s1 + $0xcc] sm:$0xf]
  %v95 = vld [vmem:[%s1 + $0xd0] sm:$0xf]
  %v96 = vld [vmem:[%s1 + $0xd4] sm:$0xf]
  %v97 = vld [vmem:[%s1 + $0xd8] sm:$0xf]
  %v98 = vld [vmem:[%s1 + $0xdc] sm:$0xf]
  %v99 = vld [vmem:[%s1 + $0xe0] sm:$0xf]
  %v100 = vld [vmem:[%s1 + $0xe4] sm:$0xf]
  %v101 = vld [vmem:[%s1 + $0xe8] sm:$0xf]
  %v102 = vld [vmem:[%s1 + $0xec] sm:$0xf]
  %v103 = vld [vmem:[%s1 + $0xf0] sm:$0xf]
  %v104 = vld [vmem:[%s1 + $0xf4] sm:$0xf]
  %v105 = vld [vmem:[%s1 + $0xf8] sm:$0xf]
  %v106 = vld [vmem:[%s1 + $0xfc] sm:$0xf]
  %v107 = vld [vmem:[%s1 + $0x100] sm:$0xf]
  %v108 = vld [vmem:[%s1 + $0x104] sm:$0xf]
  %v109 = vld [vmem:[%s1 + $0x108] sm:$0xf]
  %v110 = vld [vmem:[%s1 + $0x10c] sm:$0xf]
  %v111 = vld [vmem:[%s1 + $0x110] sm:$0xf]
  %v112 = vld [vmem:[%s1 + $0x114] sm:$0xf]
  %v113 = vld [vmem:[%s1 + $0x118] sm:$0xf]
  %v114 = vld [vmem:[%s1 + $0x11c] sm:$0xf]
  %v115 = vld [vmem:[%s1 + $0x120] sm:$0xf]
  %v116 = vld [vmem:[%s1 + $0x124] sm:$0xf]
  %v117 = vld [vmem:[%s1 + $0x128] sm:$0xf]
  %v118 = vld [vmem:[%s1 + $0x12c] sm:$0xf]
  %v119 = vld [vmem:[%s1 + $0x130] sm:$0xf]
  %v120 = vld [vmem:[%s1 + $0x134] sm:$0xf]
  %v121 = vld [vmem:[%s1 + $0x138] sm:$0xf]
  %v122 = vld [vmem:[%s1 + $0x13c] sm:$0xf]
  %v123 = vld [vmem:[%s1 + $0x140] sm:$0xf]
  %v124 = vld [vmem:[%s1 + $0x144] sm:$0xf]
  %v125 = vld [vmem:[%s1 + $0x148] sm:$0xf]
  %v126 = vld [vmem:[%s1 + $0x14c] sm:$0xf]
  %v127 = vld [vmem:[%s1 + $0x150] sm:$0xf]
  %v128 = vld [vmem:[%s1 + $0x154] sm:$0xf]
  %v129 = vld [vmem:[%s1 + $0x158] sm:$0xf]
  %v130 = vld [vmem:[%s1 + $0x15c] sm:$0xf]
  %v131 = vld [vmem:[%s1 + $0x160] sm:$0xf]
  %v132 = vld [vmem:[%s1 + $0x164] sm:$0xf]
  %v133 = vld [vmem:[%s1 + $0x168] sm:$0xf]
  %v134 = vld [vmem:[%s1 + $0x16c] sm:$0xf]
  %v135 = vld [vmem:[%s1 + $0x170] sm:$0xf]
  %v136 = vld [vmem:[%s1 + $0x174] sm:$0xf]
  %v137 = vld [vmem:[%s1 + $0x178] sm:$0xf]
  %v138 = vld [vmem:[%s1 + $0x17c] sm:$0xf]
  %v139 = vld [vmem:[%s1 + $0x180] sm:$0xf]
  %v140 = vld [vmem:[%s1 + $0x184] sm:$0xf]
  %v141 = vld [vmem:[%s1 + $0x188] sm:$0xf]
  %v142 = vld [vmem:[%s1 + $0x18c] sm:$0xf]
  %v143 = vld [vmem:[%s1 + $0x190] sm:$0xf]
  %v144 = vld [vmem:[%s1 + $0x194] sm:$0xf]
  %v145 = vld [vmem:[%s1 + $0x198] sm:$0xf]
  %v146 = vld [vmem:[%s1 + $0x19c] sm:$0xf]
  %v147 = vld [vmem:[%s1 + $0x1a0] sm:$0xf]
  %v148 = vld [vmem:[%s1 + $0x1a4] sm:$0xf]
  %v149 = vld [vmem:[%s1 + $0x1a8] sm:$0xf]
  %v150 = vld [vmem:[%s1 + $0x1ac] sm:$0xf]
  %v151 = vld [vmem:[%s1 + $0x1b0] sm:$0xf]
  %v152 = vld [vmem:[%s1 + $0x1b4] sm:$0xf]
  %v153 = vld [vmem:[%s1 + $0x1b8] sm:$0xf]
  %v154 = vld [vmem:[%s1 + $0x1bc] sm:$0xf]
  %v155 = vld [vmem:[%s1 + $0x1c0] sm:$0xf]
  %v156 = vld [vmem:[%s1 + $0x1c4] sm:$0xf]
  %v157 = vld [vmem:[%s1 + $0x1c8] sm:$0xf]
  %v158 = vld [vmem:[%s1 + $0x1cc] sm:$0xf]
  %v159 = vld [vmem:[%s1 + $0x1d0] sm:$0xf]
  %v160 = vld [vmem:[%s1 + $0x1d4] sm:$0xf]
  %v161 = vld [vmem:[%s1 + $0x1d8] sm:$0xf]
  %v162 = vld [vmem:[%s1 + $0x1dc] sm:$0xf]
  %v163 = vld [vmem:[%s1 + $0x1e0] sm:$0xf]
  %v164 = vld [vmem:[%s1 + $0x1e4] sm:$0xf]
  %v165 = vld [vmem:[%s1 + $0x1e8] sm:$0xf]
  %v166 = vld [vmem:[%s1 + $0x1ec] sm:$0xf]
  %v167 = vld [vmem:[%s1 + $0x1f0] sm:$0xf]
  %v168 = vld [vmem:[%s1 + $0x1f4] sm:$0xf]
  %v169 = vld [vmem:[%s1 + $0x1f8] sm:$0xf]
  %v170 = vld [vmem:[%s1 + $0x1fc] sm:$0xf]
  %v171 = vld [vmem:[%s2] sm:$0x1]
  %v173 = vlaneseq
  %v174 = vshrl.u32 %v173, 7
  %v175 = vsub.s32 0, %v174
  %v176 = vrot.slane %v171, %v175
  %v194 = vunpack.c.l.b16 %v27
  %v195 = vunpack.c.h.b16 %v27
  %v196 = vunpack.c.l.b16 %v28
  %v197 = vunpack.c.h.b16 %v28
  %v198 = vunpack.c.l.b16 %v29
  %v199 = vunpack.c.h.b16 %v29
  %v200 = vunpack.c.l.b16 %v30
  %v201 = vunpack.c.h.b16 %v30
  %v202 = vunpack.c.l.b16 %v31
  %v203 = vunpack.c.h.b16 %v31
  %v204 = vunpack.c.l.b16 %v32
  %v205 = vunpack.c.h.b16 %v32
  %v206 = vunpack.c.l.b16 %v33
  %v207 = vunpack.c.h.b16 %v33
  %v208 = vunpack.c.l.b16 %v34
  %v209 = vunpack.c.h.b16 %v34
  %v210 = vunpack.c.l.b16 %v35
  %v211 = vunpack.c.h.b16 %v35
  %v212 = vunpack.c.l.b16 %v36
  %v213 = vunpack.c.h.b16 %v36
  %v214 = vunpack.c.l.b16 %v37
  %v215 = vunpack.c.h.b16 %v37
  %v216 = vunpack.c.l.b16 %v38
  %v217 = vunpack.c.h.b16 %v38
  %v218 = vunpack.c.l.b16 %v39
  %v219 = vunpack.c.h.b16 %v39
  %v220 = vunpack.c.l.b16 %v40
  %v221 = vunpack.c.h.b16 %v40
  %v222 = vunpack.c.l.b16 %v41
  %v223 = vunpack.c.h.b16 %v41
  %v224 = vunpack.c.l.b16 %v42
  %v225 = vunpack.c.h.b16 %v42
  %v226 = vpack.c.b16 %v202, %v194
  %v227 = vpack.c.b16 %v203, %v195
  %v228 = vpack.c.b16 %v204, %v196
  %v229 = vpack.c.b16 %v205, %v197
  %v230 = vpack.c.b16 %v206, %v198
  %v231 = vpack.c.b16 %v207, %v199
  %v232 = vpack.c.b16 %v208, %v200
  %v233 = vpack.c.b16 %v209, %v201
  %v234 = vpack.c.b16 %v218, %v210
  %v235 = vpack.c.b16 %v219, %v211
  %v236 = vpack.c.b16 %v220, %v212
  %v237 = vpack.c.b16 %v221, %v213
  %v238 = vpack.c.b16 %v222, %v214
  %v239 = vpack.c.b16 %v223, %v215
  %v240 = vpack.c.b16 %v224, %v216
  %v241 = vpack.c.b16 %v225, %v217
  %v386 = vunpack.c.l.b16 %v43
  %v387 = vunpack.c.l.b16 %v44
  %v388 = vunpack.c.l.b16 %v45
  %v389 = vunpack.c.l.b16 %v46
  %v390 = vunpack.c.l.b16 %v47
  %v391 = vunpack.c.l.b16 %v48
  %v392 = vunpack.c.l.b16 %v49
  %v393 = vunpack.c.l.b16 %v50
  %v394 = vunpack.c.l.b16 %v51
  %v395 = vunpack.c.l.b16 %v52
  %v396 = vunpack.c.l.b16 %v53
  %v397 = vunpack.c.l.b16 %v54
  %v398 = vunpack.c.l.b16 %v55
  %v399 = vunpack.c.l.b16 %v56
  %v400 = vunpack.c.l.b16 %v57
  %v401 = vunpack.c.l.b16 %v58
  %v402 = vunpack.c.l.b16 %v59
  %v403 = vunpack.c.l.b16 %v60
  %v404 = vunpack.c.l.b16 %v61
  %v405 = vunpack.c.l.b16 %v62
  %v406 = vunpack.c.l.b16 %v63
  %v407 = vunpack.c.l.b16 %v64
  %v408 = vunpack.c.l.b16 %v65
  %v409 = vunpack.c.l.b16 %v66
  %v410 = vunpack.c.l.b16 %v67
  %v411 = vunpack.c.l.b16 %v68
  %v412 = vunpack.c.l.b16 %v69
  %v413 = vunpack.c.l.b16 %v70
  %v414 = vunpack.c.l.b16 %v71
  %v415 = vunpack.c.l.b16 %v72
  %v416 = vunpack.c.l.b16 %v73
  %v417 = vunpack.c.l.b16 %v74
  %v418 = vunpack.c.l.b16 %v75
  %v419 = vunpack.c.l.b16 %v76
  %v420 = vunpack.c.l.b16 %v77
  %v421 = vunpack.c.l.b16 %v78
  %v422 = vunpack.c.l.b16 %v79
  %v423 = vunpack.c.l.b16 %v80
  %v424 = vunpack.c.l.b16 %v81
  %v425 = vunpack.c.l.b16 %v82
  %v426 = vunpack.c.l.b16 %v83
  %v427 = vunpack.c.l.b16 %v84
  %v428 = vunpack.c.l.b16 %v85
  %v429 = vunpack.c.l.b16 %v86
  %v430 = vunpack.c.l.b16 %v87
  %v431 = vunpack.c.l.b16 %v88
  %v432 = vunpack.c.l.b16 %v89
  %v433 = vunpack.c.l.b16 %v90
  %v434 = vunpack.c.l.b16 %v91
  %v435 = vunpack.c.l.b16 %v92
  %v436 = vunpack.c.l.b16 %v93
  %v437 = vunpack.c.l.b16 %v94
  %v438 = vunpack.c.l.b16 %v95
  %v439 = vunpack.c.l.b16 %v96
  %v440 = vunpack.c.l.b16 %v97
  %v441 = vunpack.c.l.b16 %v98
  %v442 = vunpack.c.l.b16 %v99
  %v443 = vunpack.c.l.b16 %v100
  %v444 = vunpack.c.l.b16 %v101
  %v445 = vunpack.c.l.b16 %v102
  %v446 = vunpack.c.l.b16 %v103
  %v447 = vunpack.c.l.b16 %v104
  %v448 = vunpack.c.l.b16 %v105
  %v449 = vunpack.c.l.b16 %v106
  %v450 = vunpack.c.l.b16 %v107
  %v451 = vunpack.c.l.b16 %v108
  %v452 = vunpack.c.l.b16 %v109
  %v453 = vunpack.c.l.b16 %v110
  %v454 = vunpack.c.l.b16 %v111
  %v455 = vunpack.c.l.b16 %v112
  %v456 = vunpack.c.l.b16 %v113
  %v457 = vunpack.c.l.b16 %v114
  %v458 = vunpack.c.l.b16 %v115
  %v459 = vunpack.c.l.b16 %v116
  %v460 = vunpack.c.l.b16 %v117
  %v461 = vunpack.c.l.b16 %v118
  %v462 = vunpack.c.l.b16 %v119
  %v463 = vunpack.c.l.b16 %v120
  %v464 = vunpack.c.l.b16 %v121
  %v465 = vunpack.c.l.b16 %v122
  %v466 = vunpack.c.l.b16 %v123
  %v467 = vunpack.c.l.b16 %v124
  %v468 = vunpack.c.l.b16 %v125
  %v469 = vunpack.c.l.b16 %v126
  %v470 = vunpack.c.l.b16 %v127
  %v471 = vunpack.c.l.b16 %v128
  %v472 = vunpack.c.l.b16 %v129
  %v473 = vunpack.c.l.b16 %v130
  %v474 = vunpack.c.l.b16 %v131
  %v475 = vunpack.c.l.b16 %v132
  %v476 = vunpack.c.l.b16 %v133
  %v477 = vunpack.c.l.b16 %v134
  %v478 = vunpack.c.l.b16 %v135
  %v479 = vunpack.c.l.b16 %v136
  %v480 = vunpack.c.l.b16 %v137
  %v481 = vunpack.c.l.b16 %v138
  %v482 = vunpack.c.l.b16 %v139
  %v483 = vunpack.c.l.b16 %v140
  %v484 = vunpack.c.l.b16 %v141
  %v485 = vunpack.c.l.b16 %v142
  %v486 = vunpack.c.l.b16 %v143
  %v487 = vunpack.c.l.b16 %v144
  %v488 = vunpack.c.l.b16 %v145
  %v489 = vunpack.c.l.b16 %v146
  %v490 = vunpack.c.l.b16 %v147
  %v491 = vunpack.c.l.b16 %v148
  %v492 = vunpack.c.l.b16 %v149
  %v493 = vunpack.c.l.b16 %v150
  %v494 = vunpack.c.l.b16 %v151
  %v495 = vunpack.c.l.b16 %v152
  %v496 = vunpack.c.l.b16 %v153
  %v497 = vunpack.c.l.b16 %v154
  %v498 = vunpack.c.l.b16 %v155
  %v499 = vunpack.c.l.b16 %v156
  %v500 = vunpack.c.l.b16 %v157
  %v501 = vunpack.c.l.b16 %v158
  %v502 = vunpack.c.l.b16 %v159
  %v503 = vunpack.c.l.b16 %v160
  %v504 = vunpack.c.l.b16 %v161
  %v505 = vunpack.c.l.b16 %v162
  %v506 = vunpack.c.l.b16 %v163
  %v507 = vunpack.c.l.b16 %v164
  %v508 = vunpack.c.l.b16 %v165
  %v509 = vunpack.c.l.b16 %v166
  %v510 = vunpack.c.l.b16 %v167
  %v511 = vunpack.c.l.b16 %v168
  %v512 = vunpack.c.l.b16 %v169
  %v513 = vunpack.c.l.b16 %v170
  %v514 = vpack.c.b16 %v387, %v386
  %v515 = vpack.c.b16 %v389, %v388
  %v516 = vpack.c.b16 %v391, %v390
  %v517 = vpack.c.b16 %v393, %v392
  %v518 = vpack.c.b16 %v395, %v394
  %v519 = vpack.c.b16 %v397, %v396
  %v520 = vpack.c.b16 %v399, %v398
  %v521 = vpack.c.b16 %v401, %v400
  %v522 = vpack.c.b16 %v403, %v402
  %v523 = vpack.c.b16 %v405, %v404
  %v524 = vpack.c.b16 %v407, %v406
  %v525 = vpack.c.b16 %v409, %v408
  %v526 = vpack.c.b16 %v411, %v410
  %v527 = vpack.c.b16 %v413, %v412
  %v528 = vpack.c.b16 %v415, %v414
  %v529 = vpack.c.b16 %v417, %v416
  %v530 = vpack.c.b16 %v419, %v418
  %v531 = vpack.c.b16 %v421, %v420
  %v532 = vpack.c.b16 %v423, %v422
  %v533 = vpack.c.b16 %v425, %v424
  %v534 = vpack.c.b16 %v427, %v426
  %v535 = vpack.c.b16 %v429, %v428
  %v536 = vpack.c.b16 %v431, %v430
  %v537 = vpack.c.b16 %v433, %v432
  %v538 = vpack.c.b16 %v435, %v434
  %v539 = vpack.c.b16 %v437, %v436
  %v540 = vpack.c.b16 %v439, %v438
  %v541 = vpack.c.b16 %v441, %v440
  %v542 = vpack.c.b16 %v443, %v442
  %v543 = vpack.c.b16 %v445, %v444
  %v544 = vpack.c.b16 %v447, %v446
  %v545 = vpack.c.b16 %v449, %v448
  %v546 = vpack.c.b16 %v451, %v450
  %v547 = vpack.c.b16 %v453, %v452
  %v548 = vpack.c.b16 %v455, %v454
  %v549 = vpack.c.b16 %v457, %v456
  %v550 = vpack.c.b16 %v459, %v458
  %v551 = vpack.c.b16 %v461, %v460
  %v552 = vpack.c.b16 %v463, %v462
  %v553 = vpack.c.b16 %v465, %v464
  %v554 = vpack.c.b16 %v467, %v466
  %v555 = vpack.c.b16 %v469, %v468
  %v556 = vpack.c.b16 %v471, %v470
  %v557 = vpack.c.b16 %v473, %v472
  %v558 = vpack.c.b16 %v475, %v474
  %v559 = vpack.c.b16 %v477, %v476
  %v560 = vpack.c.b16 %v479, %v478
  %v561 = vpack.c.b16 %v481, %v480
  %v562 = vpack.c.b16 %v483, %v482
  %v563 = vpack.c.b16 %v485, %v484
  %v564 = vpack.c.b16 %v487, %v486
  %v565 = vpack.c.b16 %v489, %v488
  %v566 = vpack.c.b16 %v491, %v490
  %v567 = vpack.c.b16 %v493, %v492
  %v568 = vpack.c.b16 %v495, %v494
  %v569 = vpack.c.b16 %v497, %v496
  %v570 = vpack.c.b16 %v499, %v498
  %v571 = vpack.c.b16 %v501, %v500
  %v572 = vpack.c.b16 %v503, %v502
  %v573 = vpack.c.b16 %v505, %v504
  %v574 = vpack.c.b16 %v507, %v506
  %v575 = vpack.c.b16 %v509, %v508
  %v576 = vpack.c.b16 %v511, %v510
  %v577 = vpack.c.b16 %v513, %v512
  %642 = vmatprep.subr.bf16.mxu0 0
  %643 = vmatpush1.bf16.msra.mxu0 %v521
  %644 = vmatprep.subr.bf16.mxu0 0
  %645 = vmatpush1.bf16.msra.mxu0 %v520
  %646 = vmatprep.subr.bf16.mxu0 0
  %647 = vmatpush1.bf16.msra.mxu0 %v519
  %648 = vmatprep.subr.bf16.mxu0 0
  %649 = vmatpush1.bf16.msra.mxu0 %v518
  %650 = vmatprep.subr.bf16.mxu0 0
  %651 = vmatpush1.bf16.msra.mxu0 %v517
  %652 = vmatprep.subr.bf16.mxu0 0
  %653 = vmatpush1.bf16.msra.mxu0 %v516
  %654 = vmatprep.subr.bf16.mxu0 0
  %655 = vmatpush1.bf16.msra.mxu0 %v515
  %656 = vmatprep.subr.bf16.mxu0 0
  %657 = vmatpush1.bf16.msra.mxu0 %v514
  %658 = vmatprep.subr.bf16.mxu0 0
  %659 = vmatpush2.bf16.msra.mxu0 %v529
  %660 = vmatprep.subr.bf16.mxu0 0
  %661 = vmatpush2.bf16.msra.mxu0 %v528
  %662 = vmatprep.subr.bf16.mxu0 0
  %663 = vmatpush2.bf16.msra.mxu0 %v527
  %664 = vmatprep.subr.bf16.mxu0 0
  %665 = vmatpush2.bf16.msra.mxu0 %v526
  %666 = vmatprep.subr.bf16.mxu0 0
  %667 = vmatpush2.bf16.msra.mxu0 %v525
  %668 = vmatprep.subr.bf16.mxu0 0
  %669 = vmatpush2.bf16.msra.mxu0 %v524
  %670 = vmatprep.subr.bf16.mxu0 0
  %671 = vmatpush2.bf16.msra.mxu0 %v523
  %672 = vmatprep.subr.bf16.mxu0 0
  %673 = vmatpush2.bf16.msra.mxu0 %v522
  %674 = vmatprep.mubr.bf16.mxu0 %v227
  %675 = vmatmul.mubr.bf16.gmra.mxu0 %v226
  %v676 = vpop.f32.mrf.mxu0
  %v677 = vadd.f32 %v176, %v676
  %v678 = vpop.f32.mrf.mxu0
  %v679 = vpop.f32.mrf.mxu0
  %v680 = vadd.f32 %v176, %v679
  %v681 = vpop.f32.mrf.mxu0
  %682 = vmatprep.mubr.bf16.mxu0 %v235
  %683 = vmatmul.mubr.bf16.gmra.mxu0 %v234
  %v684 = vpop.f32.mrf.mxu0
  %v685 = vadd.f32 %v176, %v684
  %v686 = vpop.f32.mrf.mxu0
  %v687 = vpop.f32.mrf.mxu0
  %v688 = vadd.f32 %v176, %v687
  %v689 = vpop.f32.mrf.mxu0
  %690 = vdwg.mxu0
  %691 = vmatprep.subr.bf16.mxu0 0
  %692 = vmatpush1.bf16.msra.mxu0 %v537
  %693 = vmatprep.subr.bf16.mxu0 0
  %694 = vmatpush1.bf16.msra.mxu0 %v536
  %695 = vmatprep.subr.bf16.mxu0 0
  %696 = vmatpush1.bf16.msra.mxu0 %v535
  %697 = vmatprep.subr.bf16.mxu0 0
  %698 = vmatpush1.bf16.msra.mxu0 %v534
  %699 = vmatprep.subr.bf16.mxu0 0
  %700 = vmatpush1.bf16.msra.mxu0 %v533
  %701 = vmatprep.subr.bf16.mxu0 0
  %702 = vmatpush1.bf16.msra.mxu0 %v532
  %703 = vmatprep.subr.bf16.mxu0 0
  %704 = vmatpush1.bf16.msra.mxu0 %v531
  %705 = vmatprep.subr.bf16.mxu0 0
  %706 = vmatpush1.bf16.msra.mxu0 %v530
  %707 = vmatprep.subr.bf16.mxu0 0
  %708 = vmatpush2.bf16.msra.mxu0 %v545
  %709 = vmatprep.subr.bf16.mxu0 0
  %710 = vmatpush2.bf16.msra.mxu0 %v544
  %711 = vmatprep.subr.bf16.mxu0 0
  %712 = vmatpush2.bf16.msra.mxu0 %v543
  %713 = vmatprep.subr.bf16.mxu0 0
  %714 = vmatpush2.bf16.msra.mxu0 %v542
  %715 = vmatprep.subr.bf16.mxu0 0
  %716 = vmatpush2.bf16.msra.mxu0 %v541
  %717 = vmatprep.subr.bf16.mxu0 0
  %718 = vmatpush2.bf16.msra.mxu0 %v540
  %719 = vmatprep.subr.bf16.mxu0 0
  %720 = vmatpush2.bf16.msra.mxu0 %v539
  %721 = vmatprep.subr.bf16.mxu0 0
  %722 = vmatpush2.bf16.msra.mxu0 %v538
  %723 = vmatprep.mubr.bf16.mxu0 %v229
  %724 = vmatmul.mubr.bf16.gmra.mxu0 %v228
  %v725 = vpop.f32.mrf.mxu0
  %v726 = vadd.f32 %v677, %v725
  %v727 = vpop.f32.mrf.mxu0
  %v728 = vpop.f32.mrf.mxu0
  %v729 = vadd.f32 %v680, %v728
  %v730 = vpop.f32.mrf.mxu0
  %731 = vmatprep.mubr.bf16.mxu0 %v237
  %732 = vmatmul.mubr.bf16.gmra.mxu0 %v236
  %v733 = vpop.f32.mrf.mxu0
  %v734 = vadd.f32 %v685, %v733
  %v735 = vpop.f32.mrf.mxu0
  %v736 = vpop.f32.mrf.mxu0
  %v737 = vadd.f32 %v688, %v736
  %v738 = vpop.f32.mrf.mxu0
  %739 = vdwg.mxu0
  %740 = vmatprep.subr.bf16.mxu0 0
  %741 = vmatpush1.bf16.msra.mxu0 %v553
  %742 = vmatprep.subr.bf16.mxu0 0
  %743 = vmatpush1.bf16.msra.mxu0 %v552
  %744 = vmatprep.subr.bf16.mxu0 0
  %745 = vmatpush1.bf16.msra.mxu0 %v551
  %746 = vmatprep.subr.bf16.mxu0 0
  %747 = vmatpush1.bf16.msra.mxu0 %v550
  %748 = vmatprep.subr.bf16.mxu0 0
  %749 = vmatpush1.bf16.msra.mxu0 %v549
  %750 = vmatprep.subr.bf16.mxu0 0
  %751 = vmatpush1.bf16.msra.mxu0 %v548
  %752 = vmatprep.subr.bf16.mxu0 0
  %753 = vmatpush1.bf16.msra.mxu0 %v547
  %754 = vmatprep.subr.bf16.mxu0 0
  %755 = vmatpush1.bf16.msra.mxu0 %v546
  %756 = vmatprep.subr.bf16.mxu0 0
  %757 = vmatpush2.bf16.msra.mxu0 %v561
  %758 = vmatprep.subr.bf16.mxu0 0
  %759 = vmatpush2.bf16.msra.mxu0 %v560
  %760 = vmatprep.subr.bf16.mxu0 0
  %761 = vmatpush2.bf16.msra.mxu0 %v559
  %762 = vmatprep.subr.bf16.mxu0 0
  %763 = vmatpush2.bf16.msra.mxu0 %v558
  %764 = vmatprep.subr.bf16.mxu0 0
  %765 = vmatpush2.bf16.msra.mxu0 %v557
  %766 = vmatprep.subr.bf16.mxu0 0
  %767 = vmatpush2.bf16.msra.mxu0 %v556
  %768 = vmatprep.subr.bf16.mxu0 0
  %769 = vmatpush2.bf16.msra.mxu0 %v555
  %770 = vmatprep.subr.bf16.mxu0 0
  %771 = vmatpush2.bf16.msra.mxu0 %v554
  %772 = vmatprep.mubr.bf16.mxu0 %v231
  %773 = vmatmul.mubr.bf16.gmra.mxu0 %v230
  %v774 = vpop.f32.mrf.mxu0
  %v775 = vadd.f32 %v726, %v774
  %v776 = vpop.f32.mrf.mxu0
  %v777 = vpop.f32.mrf.mxu0
  %v778 = vadd.f32 %v729, %v777
  %v779 = vpop.f32.mrf.mxu0
  %780 = vmatprep.mubr.bf16.mxu0 %v239
  %781 = vmatmul.mubr.bf16.gmra.mxu0 %v238
  %v782 = vpop.f32.mrf.mxu0
  %v783 = vadd.f32 %v734, %v782
  %v784 = vpop.f32.mrf.mxu0
  %v785 = vpop.f32.mrf.mxu0
  %v786 = vadd.f32 %v737, %v785
  %v787 = vpop.f32.mrf.mxu0
  %788 = vdwg.mxu0
  %789 = vmatprep.subr.bf16.mxu0 0
  %790 = vmatpush1.bf16.msra.mxu0 %v569
  %791 = vmatprep.subr.bf16.mxu0 0
  %792 = vmatpush1.bf16.msra.mxu0 %v568
  %793 = vmatprep.subr.bf16.mxu0 0
  %794 = vmatpush1.bf16.msra.mxu0 %v567
  %795 = vmatprep.subr.bf16.mxu0 0
  %796 = vmatpush1.bf16.msra.mxu0 %v566
  %797 = vmatprep.subr.bf16.mxu0 0
  %798 = vmatpush1.bf16.msra.mxu0 %v565
  %799 = vmatprep.subr.bf16.mxu0 0
  %800 = vmatpush1.bf16.msra.mxu0 %v564
  %801 = vmatprep.subr.bf16.mxu0 0
  %802 = vmatpush1.bf16.msra.mxu0 %v563
  %803 = vmatprep.subr.bf16.mxu0 0
  %804 = vmatpush1.bf16.msra.mxu0 %v562
  %805 = vmatprep.subr.bf16.mxu0 0
  %806 = vmatpush2.bf16.msra.mxu0 %v577
  %807 = vmatprep.subr.bf16.mxu0 0
  %808 = vmatpush2.bf16.msra.mxu0 %v576
  %809 = vmatprep.subr.bf16.mxu0 0
  %810 = vmatpush2.bf16.msra.mxu0 %v575
  %811 = vmatprep.subr.bf16.mxu0 0
  %812 = vmatpush2.bf16.msra.mxu0 %v574
  %813 = vmatprep.subr.bf16.mxu0 0
  %814 = vmatpush2.bf16.msra.mxu0 %v573
  %815 = vmatprep.subr.bf16.mxu0 0
  %816 = vmatpush2.bf16.msra.mxu0 %v572
  %817 = vmatprep.subr.bf16.mxu0 0
  %818 = vmatpush2.bf16.msra.mxu0 %v571
  %819 = vmatprep.subr.bf16.mxu0 0
  %820 = vmatpush2.bf16.msra.mxu0 %v570
  %821 = vmatprep.mubr.bf16.mxu0 %v233
  %822 = vmatmul.mubr.bf16.gmra.mxu0 %v232
  %v823 = vpop.f32.mrf.mxu0
  %v824 = vadd.f32 %v775, %v823
  %v825 = vpop.f32.mrf.mxu0
  %v826 = vpop.f32.mrf.mxu0
  %v827 = vadd.f32 %v778, %v826
  %v828 = vpop.f32.mrf.mxu0
  %829 = vmatprep.mubr.bf16.mxu0 %v241
  %830 = vmatmul.mubr.bf16.gmra.mxu0 %v240
  %v831 = vpop.f32.mrf.mxu0
  %v832 = vadd.f32 %v783, %v831
  %v833 = vpop.f32.mrf.mxu0
  %v834 = vpop.f32.mrf.mxu0
  %v835 = vadd.f32 %v786, %v834
  %v836 = vpop.f32.mrf.mxu0
  %837 = vdwg.mxu0
  %v838 = vmax.f32 %v824, 0.0
  %v839 = vmax.f32 %v827, 0.0
  %v840 = vmax.f32 %v832, 0.0
  %v841 = vmax.f32 %v835, 0.0
  %v842 = vpack.c.bf16 %v838, %v838
  %v843 = vld [vmem:[%s3] sm:$0xff]
  %v844 = vld [vmem:[%s3 + $0x8] sm:$0xff]
  %v845 = vld [vmem:[%s3 + $0x10] sm:$0xff]
  %v846 = vld [vmem:[%s3 + $0x18] sm:$0xff]
  %v847 = vld [vmem:[%s3 + $0x20] sm:$0xff]
  %v848 = vld [vmem:[%s3 + $0x28] sm:$0xff]
  %v849 = vld [vmem:[%s3 + $0x30] sm:$0xff]
  %v850 = vld [vmem:[%s3 + $0x38] sm:$0xff]
  %s851 = scalar_lea.vmem %s3, 64
  %v852 = vld [vmem:[%s851] sm:$0xff]
  %v853 = vld [vmem:[%s851 + $0x8] sm:$0xff]
  %v854 = vld [vmem:[%s851 + $0x10] sm:$0xff]
  %v855 = vld [vmem:[%s851 + $0x18] sm:$0xff]
  %v856 = vld [vmem:[%s851 + $0x20] sm:$0xff]
  %v857 = vld [vmem:[%s851 + $0x28] sm:$0xff]
  %v858 = vld [vmem:[%s851 + $0x30] sm:$0xff]
  %v859 = vld [vmem:[%s851 + $0x38] sm:$0xff]
  %v861 = vrot.slane %v842, 1
  %v870 = vunpack.c.l.b16 %v852
  %v871 = vunpack.c.h.b16 %v852
  %v872 = vunpack.c.l.b16 %v853
  %v873 = vunpack.c.h.b16 %v853
  %v874 = vunpack.c.l.b16 %v854
  %v875 = vunpack.c.h.b16 %v854
  %v876 = vunpack.c.l.b16 %v855
  %v877 = vunpack.c.h.b16 %v855
  %v878 = vunpack.c.l.b16 %v856
  %v879 = vunpack.c.h.b16 %v856
  %v880 = vunpack.c.l.b16 %v857
  %v881 = vunpack.c.h.b16 %v857
  %v882 = vunpack.c.l.b16 %v858
  %v883 = vunpack.c.h.b16 %v858
  %v884 = vunpack.c.l.b16 %v859
  %v885 = vunpack.c.h.b16 %v859
  %v886 = vpack.c.b16 %v872, %v870
  %v887 = vpack.c.b16 %v873, %v871
  %v888 = vpack.c.b16 %v876, %v874
  %v889 = vpack.c.b16 %v877, %v875
  %v890 = vpack.c.b16 %v880, %v878
  %v891 = vpack.c.b16 %v881, %v879
  %v892 = vpack.c.b16 %v884, %v882
  %v893 = vpack.c.b16 %v885, %v883
  %vm902 = vcmask 523264
  %v904 = vsel %vm902, %v861, 0
  %906 = vmatprep.subr.bf16.mxu0 0
  %907 = vmatpush1.bf16.msra.mxu0 0
  %908 = vmatprep.subr.bf16.mxu0 0
  %909 = vmatpush1.bf16.msra.mxu0 0
  %910 = vmatprep.subr.bf16.mxu0 0
  %911 = vmatpush1.bf16.msra.mxu0 0
  %912 = vmatprep.subr.bf16.mxu0 0
  %913 = vmatpush1.bf16.msra.mxu0 0
  %914 = vmatprep.subr.bf16.mxu0 %v893
  %915 = vmatpush1.bf16.msra.mxu0 %v892
  %916 = vmatprep.subr.bf16.mxu0 %v891
  %917 = vmatpush1.bf16.msra.mxu0 %v890
  %918 = vmatprep.subr.bf16.mxu0 %v889
  %919 = vmatpush1.bf16.msra.mxu0 %v888
  %920 = vmatprep.subr.bf16.mxu0 %v887
  %921 = vmatpush1.bf16.msra.mxu0 %v886
  %922 = vmatprep.subr.bf16.mxu0 0
  %923 = vmatpush2.bf16.msra.mxu0 0
  %924 = vmatprep.subr.bf16.mxu0 0
  %925 = vmatpush2.bf16.msra.mxu0 0
  %926 = vmatprep.subr.bf16.mxu0 0
  %927 = vmatpush2.bf16.msra.mxu0 0
  %928 = vmatprep.subr.bf16.mxu0 0
  %929 = vmatpush2.bf16.msra.mxu0 0
  %930 = vmatprep.subr.bf16.mxu0 0
  %931 = vmatpush2.bf16.msra.mxu0 0
  %932 = vmatprep.subr.bf16.mxu0 0
  %933 = vmatpush2.bf16.msra.mxu0 0
  %934 = vmatprep.subr.bf16.mxu0 0
  %935 = vmatpush2.bf16.msra.mxu0 0
  %936 = vmatprep.subr.bf16.mxu0 0
  %937 = vmatpush2.bf16.msra.mxu0 0
  %938 = vmatprep.mubr.bf16.mxu0 0
  %939 = vmatmul.mubr.bf16.gmra.mxu0 %v904
  %v940 = vpop.f32.mrf.mxu0
  %v941 = vadd.f32 0.0, %v940
  %v942 = vpop.f32.mrf.mxu0
  %v943 = vadd.f32 0.0, %v942
  %v944 = vpop.f32.mrf.mxu0
  %v945 = vpop.f32.mrf.mxu0
  %946 = vdwg.mxu0
  %v955 = vunpack.c.l.b16 %v843
  %v956 = vunpack.c.h.b16 %v843
  %v957 = vunpack.c.l.b16 %v844
  %v958 = vunpack.c.h.b16 %v844
  %v959 = vunpack.c.l.b16 %v845
  %v960 = vunpack.c.h.b16 %v845
  %v961 = vunpack.c.l.b16 %v846
  %v962 = vunpack.c.h.b16 %v846
  %v963 = vunpack.c.l.b16 %v847
  %v964 = vunpack.c.h.b16 %v847
  %v965 = vunpack.c.l.b16 %v848
  %v966 = vunpack.c.h.b16 %v848
  %v967 = vunpack.c.l.b16 %v849
  %v968 = vunpack.c.h.b16 %v849
  %v969 = vunpack.c.l.b16 %v850
  %v970 = vunpack.c.h.b16 %v850
  %v971 = vpack.c.b16 %v957, %v955
  %v972 = vpack.c.b16 %v958, %v956
  %v973 = vpack.c.b16 %v961, %v959
  %v974 = vpack.c.b16 %v962, %v960
  %v975 = vpack.c.b16 %v965, %v963
  %v976 = vpack.c.b16 %v966, %v964
  %v977 = vpack.c.b16 %v969, %v967
  %v978 = vpack.c.b16 %v970, %v968
  %v988 = vsel %vm902, %v842, 0
  %990 = vmatprep.subr.bf16.mxu0 0
  %991 = vmatpush1.bf16.msra.mxu0 0
  %992 = vmatprep.subr.bf16.mxu0 0
  %993 = vmatpush1.bf16.msra.mxu0 0
  %994 = vmatprep.subr.bf16.mxu0 0
  %995 = vmatpush1.bf16.msra.mxu0 0
  %996 = vmatprep.subr.bf16.mxu0 0
  %997 = vmatpush1.bf16.msra.mxu0 0
  %998 = vmatprep.subr.bf16.mxu0 %v978
  %999 = vmatpush1.bf16.msra.mxu0 %v977
  %1000 = vmatprep.subr.bf16.mxu0 %v976
  %1001 = vmatpush1.bf16.msra.mxu0 %v975
  %1002 = vmatprep.subr.bf16.mxu0 %v974
  %1003 = vmatpush1.bf16.msra.mxu0 %v973
  %1004 = vmatprep.subr.bf16.mxu0 %v972
  %1005 = vmatpush1.bf16.msra.mxu0 %v971
  %1006 = vmatprep.subr.bf16.mxu0 0
  %1007 = vmatpush2.bf16.msra.mxu0 0
  %1008 = vmatprep.subr.bf16.mxu0 0
  %1009 = vmatpush2.bf16.msra.mxu0 0
  %1010 = vmatprep.subr.bf16.mxu0 0
  %1011 = vmatpush2.bf16.msra.mxu0 0
  %1012 = vmatprep.subr.bf16.mxu0 0
  %1013 = vmatpush2.bf16.msra.mxu0 0
  %1014 = vmatprep.subr.bf16.mxu0 0
  %1015 = vmatpush2.bf16.msra.mxu0 0
  %1016 = vmatprep.subr.bf16.mxu0 0
  %1017 = vmatpush2.bf16.msra.mxu0 0
  %1018 = vmatprep.subr.bf16.mxu0 0
  %1019 = vmatpush2.bf16.msra.mxu0 0
  %1020 = vmatprep.subr.bf16.mxu0 0
  %1021 = vmatpush2.bf16.msra.mxu0 0
  %1022 = vmatprep.mubr.bf16.mxu0 0
  %1023 = vmatmul.mubr.bf16.gmra.mxu0 %v988
  %v1024 = vpop.f32.mrf.mxu0
  %v1025 = vadd.f32 %v941, %v1024
  %v1026 = vpop.f32.mrf.mxu0
  %v1027 = vadd.f32 %v943, %v1026
  %v1028 = vpop.f32.mrf.mxu0
  %v1029 = vpop.f32.mrf.mxu0
  %1030 = vdwg.mxu0
  %s1031 = scalar_lea.vmem %s3, 128
  %v1032 = vld [vmem:[%s1031] sm:$0xff]
  %v1033 = vld [vmem:[%s1031 + $0x8] sm:$0xff]
  %v1034 = vld [vmem:[%s1031 + $0x10] sm:$0xff]
  %v1035 = vld [vmem:[%s1031 + $0x18] sm:$0xff]
  %v1036 = vld [vmem:[%s1031 + $0x20] sm:$0xff]
  %v1037 = vld [vmem:[%s1031 + $0x28] sm:$0xff]
  %v1038 = vld [vmem:[%s1031 + $0x30] sm:$0xff]
  %v1039 = vld [vmem:[%s1031 + $0x38] sm:$0xff]
  %v1040 = vrot.slane %v842, 2
  %v1049 = vunpack.c.l.b16 %v1032
  %v1050 = vunpack.c.h.b16 %v1032
  %v1051 = vunpack.c.l.b16 %v1033
  %v1052 = vunpack.c.h.b16 %v1033
  %v1053 = vunpack.c.l.b16 %v1034
  %v1054 = vunpack.c.h.b16 %v1034
  %v1055 = vunpack.c.l.b16 %v1035
  %v1056 = vunpack.c.h.b16 %v1035
  %v1057 = vunpack.c.l.b16 %v1036
  %v1058 = vunpack.c.h.b16 %v1036
  %v1059 = vunpack.c.l.b16 %v1037
  %v1060 = vunpack.c.h.b16 %v1037
  %v1061 = vunpack.c.l.b16 %v1038
  %v1062 = vunpack.c.h.b16 %v1038
  %v1063 = vunpack.c.l.b16 %v1039
  %v1064 = vunpack.c.h.b16 %v1039
  %v1065 = vpack.c.b16 %v1051, %v1049
  %v1066 = vpack.c.b16 %v1052, %v1050
  %v1067 = vpack.c.b16 %v1055, %v1053
  %v1068 = vpack.c.b16 %v1056, %v1054
  %v1069 = vpack.c.b16 %v1059, %v1057
  %v1070 = vpack.c.b16 %v1060, %v1058
  %v1071 = vpack.c.b16 %v1063, %v1061
  %v1072 = vpack.c.b16 %v1064, %v1062
  %v1082 = vsel %vm902, %v1040, 0
  %1084 = vmatprep.subr.bf16.mxu0 0
  %1085 = vmatpush1.bf16.msra.mxu0 0
  %1086 = vmatprep.subr.bf16.mxu0 0
  %1087 = vmatpush1.bf16.msra.mxu0 0
  %1088 = vmatprep.subr.bf16.mxu0 0
  %1089 = vmatpush1.bf16.msra.mxu0 0
  %1090 = vmatprep.subr.bf16.mxu0 0
  %1091 = vmatpush1.bf16.msra.mxu0 0
  %1092 = vmatprep.subr.bf16.mxu0 %v1072
  %1093 = vmatpush1.bf16.msra.mxu0 %v1071
  %1094 = vmatprep.subr.bf16.mxu0 %v1070
  %1095 = vmatpush1.bf16.msra.mxu0 %v1069
  %1096 = vmatprep.subr.bf16.mxu0 %v1068
  %1097 = vmatpush1.bf16.msra.mxu0 %v1067
  %1098 = vmatprep.subr.bf16.mxu0 %v1066
  %1099 = vmatpush1.bf16.msra.mxu0 %v1065
  %1100 = vmatprep.subr.bf16.mxu0 0
  %1101 = vmatpush2.bf16.msra.mxu0 0
  %1102 = vmatprep.subr.bf16.mxu0 0
  %1103 = vmatpush2.bf16.msra.mxu0 0
  %1104 = vmatprep.subr.bf16.mxu0 0
  %1105 = vmatpush2.bf16.msra.mxu0 0
  %1106 = vmatprep.subr.bf16.mxu0 0
  %1107 = vmatpush2.bf16.msra.mxu0 0
  %1108 = vmatprep.subr.bf16.mxu0 0
  %1109 = vmatpush2.bf16.msra.mxu0 0
  %1110 = vmatprep.subr.bf16.mxu0 0
  %1111 = vmatpush2.bf16.msra.mxu0 0
  %1112 = vmatprep.subr.bf16.mxu0 0
  %1113 = vmatpush2.bf16.msra.mxu0 0
  %1114 = vmatprep.subr.bf16.mxu0 0
  %1115 = vmatpush2.bf16.msra.mxu0 0
  %1116 = vmatprep.mubr.bf16.mxu0 0
  %1117 = vmatmul.mubr.bf16.gmra.mxu0 %v1082
  %v1118 = vpop.f32.mrf.mxu0
  %v1119 = vadd.f32 0.0, %v1118
  %v1120 = vpop.f32.mrf.mxu0
  %v1121 = vadd.f32 0.0, %v1120
  %v1122 = vpop.f32.mrf.mxu0
  %v1123 = vpop.f32.mrf.mxu0
  %1124 = vdwg.mxu0
  %v1125 = vadd.f32 %v1025, %v1119
  %v1126 = vadd.f32 %v1027, %v1121
  %s1127 = scalar_lea.vmem %s3, 192
  %v1128 = vld [vmem:[%s1127] sm:$0xff]
  %v1129 = vld [vmem:[%s1127 + $0x8] sm:$0xff]
  %v1130 = vld [vmem:[%s1127 + $0x10] sm:$0xff]
  %v1131 = vld [vmem:[%s1127 + $0x18] sm:$0xff]
  %v1132 = vld [vmem:[%s1127 + $0x20] sm:$0xff]
  %v1133 = vld [vmem:[%s1127 + $0x28] sm:$0xff]
  %v1134 = vld [vmem:[%s1127 + $0x30] sm:$0xff]
  %v1135 = vld [vmem:[%s1127 + $0x38] sm:$0xff]
  %v1136 = vrot.slane %v842, 3
  %v1145 = vunpack.c.l.b16 %v1128
  %v1146 = vunpack.c.h.b16 %v1128
  %v1147 = vunpack.c.l.b16 %v1129
  %v1148 = vunpack.c.h.b16 %v1129
  %v1149 = vunpack.c.l.b16 %v1130
  %v1150 = vunpack.c.h.b16 %v1130
  %v1151 = vunpack.c.l.b16 %v1131
  %v1152 = vunpack.c.h.b16 %v1131
  %v1153 = vunpack.c.l.b16 %v1132
  %v1154 = vunpack.c.h.b16 %v1132
  %v1155 = vunpack.c.l.b16 %v1133
  %v1156 = vunpack.c.h.b16 %v1133
  %v1157 = vunpack.c.l.b16 %v1134
  %v1158 = vunpack.c.h.b16 %v1134
  %v1159 = vunpack.c.l.b16 %v1135
  %v1160 = vunpack.c.h.b16 %v1135
  %v1161 = vpack.c.b16 %v1147, %v1145
  %v1162 = vpack.c.b16 %v1148, %v1146
  %v1163 = vpack.c.b16 %v1151, %v1149
  %v1164 = vpack.c.b16 %v1152, %v1150
  %v1165 = vpack.c.b16 %v1155, %v1153
  %v1166 = vpack.c.b16 %v1156, %v1154
  %v1167 = vpack.c.b16 %v1159, %v1157
  %v1168 = vpack.c.b16 %v1160, %v1158
  %v1178 = vsel %vm902, %v1136, 0
  %1180 = vmatprep.subr.bf16.mxu0 0
  %1181 = vmatpush1.bf16.msra.mxu0 0
  %1182 = vmatprep.subr.bf16.mxu0 0
  %1183 = vmatpush1.bf16.msra.mxu0 0
  %1184 = vmatprep.subr.bf16.mxu0 0
  %1185 = vmatpush1.bf16.msra.mxu0 0
  %1186 = vmatprep.subr.bf16.mxu0 0
  %1187 = vmatpush1.bf16.msra.mxu0 0
  %1188 = vmatprep.subr.bf16.mxu0 %v1168
  %1189 = vmatpush1.bf16.msra.mxu0 %v1167
  %1190 = vmatprep.subr.bf16.mxu0 %v1166
  %1191 = vmatpush1.bf16.msra.mxu0 %v1165
  %1192 = vmatprep.subr.bf16.mxu0 %v1164
  %1193 = vmatpush1.bf16.msra.mxu0 %v1163
  %1194 = vmatprep.subr.bf16.mxu0 %v1162
  %1195 = vmatpush1.bf16.msra.mxu0 %v1161
  %1196 = vmatprep.subr.bf16.mxu0 0
  %1197 = vmatpush2.bf16.msra.mxu0 0
  %1198 = vmatprep.subr.bf16.mxu0 0
  %1199 = vmatpush2.bf16.msra.mxu0 0
  %1200 = vmatprep.subr.bf16.mxu0 0
  %1201 = vmatpush2.bf16.msra.mxu0 0
  %1202 = vmatprep.subr.bf16.mxu0 0
  %1203 = vmatpush2.bf16.msra.mxu0 0
  %1204 = vmatprep.subr.bf16.mxu0 0
  %1205 = vmatpush2.bf16.msra.mxu0 0
  %1206 = vmatprep.subr.bf16.mxu0 0
  %1207 = vmatpush2.bf16.msra.mxu0 0
  %1208 = vmatprep.subr.bf16.mxu0 0
  %1209 = vmatpush2.bf16.msra.mxu0 0
  %1210 = vmatprep.subr.bf16.mxu0 0
  %1211 = vmatpush2.bf16.msra.mxu0 0
  %1212 = vmatprep.mubr.bf16.mxu0 0
  %1213 = vmatmul.mubr.bf16.gmra.mxu0 %v1178
  %v1214 = vpop.f32.mrf.mxu0
  %v1215 = vadd.f32 0.0, %v1214
  %v1216 = vpop.f32.mrf.mxu0
  %v1217 = vadd.f32 0.0, %v1216
  %v1218 = vpop.f32.mrf.mxu0
  %v1219 = vpop.f32.mrf.mxu0
  %1220 = vdwg.mxu0
  %v1221 = vadd.f32 %v1125, %v1215
  %v1222 = vadd.f32 %v1126, %v1217
  %v1223 = vpack.c.bf16 %v839, %v839
  %s1224 = scalar_lea.vmem %s3, 256
  %v1225 = vld [vmem:[%s1224] sm:$0xff]
  %v1226 = vld [vmem:[%s1224 + $0x8] sm:$0xff]
  %v1227 = vld [vmem:[%s1224 + $0x10] sm:$0xff]
  %v1228 = vld [vmem:[%s1224 + $0x18] sm:$0xff]
  %v1229 = vld [vmem:[%s1224 + $0x20] sm:$0xff]
  %v1230 = vld [vmem:[%s1224 + $0x28] sm:$0xff]
  %v1231 = vld [vmem:[%s1224 + $0x30] sm:$0xff]
  %v1232 = vld [vmem:[%s1224 + $0x38] sm:$0xff]
  %v1241 = vunpack.c.l.b16 %v1225
  %v1242 = vunpack.c.h.b16 %v1225
  %v1243 = vunpack.c.l.b16 %v1226
  %v1244 = vunpack.c.h.b16 %v1226
  %v1245 = vunpack.c.l.b16 %v1227
  %v1246 = vunpack.c.h.b16 %v1227
  %v1247 = vunpack.c.l.b16 %v1228
  %v1248 = vunpack.c.h.b16 %v1228
  %v1249 = vunpack.c.l.b16 %v1229
  %v1250 = vunpack.c.h.b16 %v1229
  %v1251 = vunpack.c.l.b16 %v1230
  %v1252 = vunpack.c.h.b16 %v1230
  %v1253 = vunpack.c.l.b16 %v1231
  %v1254 = vunpack.c.h.b16 %v1231
  %v1255 = vunpack.c.l.b16 %v1232
  %v1256 = vunpack.c.h.b16 %v1232
  %v1257 = vpack.c.b16 %v1243, %v1241
  %v1258 = vpack.c.b16 %v1244, %v1242
  %v1259 = vpack.c.b16 %v1247, %v1245
  %v1260 = vpack.c.b16 %v1248, %v1246
  %v1261 = vpack.c.b16 %v1251, %v1249
  %v1262 = vpack.c.b16 %v1252, %v1250
  %v1263 = vpack.c.b16 %v1255, %v1253
  %v1264 = vpack.c.b16 %v1256, %v1254
  %v1274 = vsel %vm902, %v1223, 0
  %1276 = vmatprep.subr.bf16.mxu0 0
  %1277 = vmatpush1.bf16.msra.mxu0 0
  %1278 = vmatprep.subr.bf16.mxu0 0
  %1279 = vmatpush1.bf16.msra.mxu0 0
  %1280 = vmatprep.subr.bf16.mxu0 0
  %1281 = vmatpush1.bf16.msra.mxu0 0
  %1282 = vmatprep.subr.bf16.mxu0 0
  %1283 = vmatpush1.bf16.msra.mxu0 0
  %1284 = vmatprep.subr.bf16.mxu0 %v1264
  %1285 = vmatpush1.bf16.msra.mxu0 %v1263
  %1286 = vmatprep.subr.bf16.mxu0 %v1262
  %1287 = vmatpush1.bf16.msra.mxu0 %v1261
  %1288 = vmatprep.subr.bf16.mxu0 %v1260
  %1289 = vmatpush1.bf16.msra.mxu0 %v1259
  %1290 = vmatprep.subr.bf16.mxu0 %v1258
  %1291 = vmatpush1.bf16.msra.mxu0 %v1257
  %1292 = vmatprep.subr.bf16.mxu0 0
  %1293 = vmatpush2.bf16.msra.mxu0 0
  %1294 = vmatprep.subr.bf16.mxu0 0
  %1295 = vmatpush2.bf16.msra.mxu0 0
  %1296 = vmatprep.subr.bf16.mxu0 0
  %1297 = vmatpush2.bf16.msra.mxu0 0
  %1298 = vmatprep.subr.bf16.mxu0 0
  %1299 = vmatpush2.bf16.msra.mxu0 0
  %1300 = vmatprep.subr.bf16.mxu0 0
  %1301 = vmatpush2.bf16.msra.mxu0 0
  %1302 = vmatprep.subr.bf16.mxu0 0
  %1303 = vmatpush2.bf16.msra.mxu0 0
  %1304 = vmatprep.subr.bf16.mxu0 0
  %1305 = vmatpush2.bf16.msra.mxu0 0
  %1306 = vmatprep.subr.bf16.mxu0 0
  %1307 = vmatpush2.bf16.msra.mxu0 0
  %1308 = vmatprep.mubr.bf16.mxu0 0
  %1309 = vmatmul.mubr.bf16.gmra.mxu0 %v1274
  %v1310 = vpop.f32.mrf.mxu0
  %v1311 = vadd.f32 0.0, %v1310
  %v1312 = vpop.f32.mrf.mxu0
  %v1313 = vadd.f32 0.0, %v1312
  %v1314 = vpop.f32.mrf.mxu0
  %v1315 = vpop.f32.mrf.mxu0
  %1316 = vdwg.mxu0
  %v1317 = vadd.f32 %v1221, %v1311
  %v1318 = vadd.f32 %v1222, %v1313
  %s1319 = scalar_lea.vmem %s3, 320
  %v1320 = vld [vmem:[%s1319] sm:$0xff]
  %v1321 = vld [vmem:[%s1319 + $0x8] sm:$0xff]
  %v1322 = vld [vmem:[%s1319 + $0x10] sm:$0xff]
  %v1323 = vld [vmem:[%s1319 + $0x18] sm:$0xff]
  %v1324 = vld [vmem:[%s1319 + $0x20] sm:$0xff]
  %v1325 = vld [vmem:[%s1319 + $0x28] sm:$0xff]
  %v1326 = vld [vmem:[%s1319 + $0x30] sm:$0xff]
  %v1327 = vld [vmem:[%s1319 + $0x38] sm:$0xff]
  %v1329 = vrot.slane %v1223, 1
  %v1338 = vunpack.c.l.b16 %v1320
  %v1339 = vunpack.c.h.b16 %v1320
  %v1340 = vunpack.c.l.b16 %v1321
  %v1341 = vunpack.c.h.b16 %v1321
  %v1342 = vunpack.c.l.b16 %v1322
  %v1343 = vunpack.c.h.b16 %v1322
  %v1344 = vunpack.c.l.b16 %v1323
  %v1345 = vunpack.c.h.b16 %v1323
  %v1346 = vunpack.c.l.b16 %v1324
  %v1347 = vunpack.c.h.b16 %v1324
  %v1348 = vunpack.c.l.b16 %v1325
  %v1349 = vunpack.c.h.b16 %v1325
  %v1350 = vunpack.c.l.b16 %v1326
  %v1351 = vunpack.c.h.b16 %v1326
  %v1352 = vunpack.c.l.b16 %v1327
  %v1353 = vunpack.c.h.b16 %v1327
  %v1354 = vpack.c.b16 %v1340, %v1338
  %v1355 = vpack.c.b16 %v1341, %v1339
  %v1356 = vpack.c.b16 %v1344, %v1342
  %v1357 = vpack.c.b16 %v1345, %v1343
  %v1358 = vpack.c.b16 %v1348, %v1346
  %v1359 = vpack.c.b16 %v1349, %v1347
  %v1360 = vpack.c.b16 %v1352, %v1350
  %v1361 = vpack.c.b16 %v1353, %v1351
  %v1371 = vsel %vm902, %v1329, 0
  %1373 = vmatprep.subr.bf16.mxu0 0
  %1374 = vmatpush1.bf16.msra.mxu0 0
  %1375 = vmatprep.subr.bf16.mxu0 0
  %1376 = vmatpush1.bf16.msra.mxu0 0
  %1377 = vmatprep.subr.bf16.mxu0 0
  %1378 = vmatpush1.bf16.msra.mxu0 0
  %1379 = vmatprep.subr.bf16.mxu0 0
  %1380 = vmatpush1.bf16.msra.mxu0 0
  %1381 = vmatprep.subr.bf16.mxu0 %v1361
  %1382 = vmatpush1.bf16.msra.mxu0 %v1360
  %1383 = vmatprep.subr.bf16.mxu0 %v1359
  %1384 = vmatpush1.bf16.msra.mxu0 %v1358
  %1385 = vmatprep.subr.bf16.mxu0 %v1357
  %1386 = vmatpush1.bf16.msra.mxu0 %v1356
  %1387 = vmatprep.subr.bf16.mxu0 %v1355
  %1388 = vmatpush1.bf16.msra.mxu0 %v1354
  %1389 = vmatprep.subr.bf16.mxu0 0
  %1390 = vmatpush2.bf16.msra.mxu0 0
  %1391 = vmatprep.subr.bf16.mxu0 0
  %1392 = vmatpush2.bf16.msra.mxu0 0
  %1393 = vmatprep.subr.bf16.mxu0 0
  %1394 = vmatpush2.bf16.msra.mxu0 0
  %1395 = vmatprep.subr.bf16.mxu0 0
  %1396 = vmatpush2.bf16.msra.mxu0 0
  %1397 = vmatprep.subr.bf16.mxu0 0
  %1398 = vmatpush2.bf16.msra.mxu0 0
  %1399 = vmatprep.subr.bf16.mxu0 0
  %1400 = vmatpush2.bf16.msra.mxu0 0
  %1401 = vmatprep.subr.bf16.mxu0 0
  %1402 = vmatpush2.bf16.msra.mxu0 0
  %1403 = vmatprep.subr.bf16.mxu0 0
  %1404 = vmatpush2.bf16.msra.mxu0 0
  %1405 = vmatprep.mubr.bf16.mxu0 0
  %1406 = vmatmul.mubr.bf16.gmra.mxu0 %v1371
  %v1407 = vpop.f32.mrf.mxu0
  %v1408 = vadd.f32 0.0, %v1407
  %v1409 = vpop.f32.mrf.mxu0
  %v1410 = vadd.f32 0.0, %v1409
  %v1411 = vpop.f32.mrf.mxu0
  %v1412 = vpop.f32.mrf.mxu0
  %1413 = vdwg.mxu0
  %v1414 = vadd.f32 %v1317, %v1408
  %v1415 = vadd.f32 %v1318, %v1410
  %s1416 = scalar_lea.vmem %s3, 384
  %v1417 = vld [vmem:[%s1416] sm:$0xff]
  %v1418 = vld [vmem:[%s1416 + $0x8] sm:$0xff]
  %v1419 = vld [vmem:[%s1416 + $0x10] sm:$0xff]
  %v1420 = vld [vmem:[%s1416 + $0x18] sm:$0xff]
  %v1421 = vld [vmem:[%s1416 + $0x20] sm:$0xff]
  %v1422 = vld [vmem:[%s1416 + $0x28] sm:$0xff]
  %v1423 = vld [vmem:[%s1416 + $0x30] sm:$0xff]
  %v1424 = vld [vmem:[%s1416 + $0x38] sm:$0xff]
  %v1425 = vrot.slane %v1223, 2
  %v1434 = vunpack.c.l.b16 %v1417
  %v1435 = vunpack.c.h.b16 %v1417
  %v1436 = vunpack.c.l.b16 %v1418
  %v1437 = vunpack.c.h.b16 %v1418
  %v1438 = vunpack.c.l.b16 %v1419
  %v1439 = vunpack.c.h.b16 %v1419
  %v1440 = vunpack.c.l.b16 %v1420
  %v1441 = vunpack.c.h.b16 %v1420
  %v1442 = vunpack.c.l.b16 %v1421
  %v1443 = vunpack.c.h.b16 %v1421
  %v1444 = vunpack.c.l.b16 %v1422
  %v1445 = vunpack.c.h.b16 %v1422
  %v1446 = vunpack.c.l.b16 %v1423
  %v1447 = vunpack.c.h.b16 %v1423
  %v1448 = vunpack.c.l.b16 %v1424
  %v1449 = vunpack.c.h.b16 %v1424
  %v1450 = vpack.c.b16 %v1436, %v1434
  %v1451 = vpack.c.b16 %v1437, %v1435
  %v1452 = vpack.c.b16 %v1440, %v1438
  %v1453 = vpack.c.b16 %v1441, %v1439
  %v1454 = vpack.c.b16 %v1444, %v1442
  %v1455 = vpack.c.b16 %v1445, %v1443
  %v1456 = vpack.c.b16 %v1448, %v1446
  %v1457 = vpack.c.b16 %v1449, %v1447
  %v1467 = vsel %vm902, %v1425, 0
  %1469 = vmatprep.subr.bf16.mxu0 0
  %1470 = vmatpush1.bf16.msra.mxu0 0
  %1471 = vmatprep.subr.bf16.mxu0 0
  %1472 = vmatpush1.bf16.msra.mxu0 0
  %1473 = vmatprep.subr.bf16.mxu0 0
  %1474 = vmatpush1.bf16.msra.mxu0 0
  %1475 = vmatprep.subr.bf16.mxu0 0
  %1476 = vmatpush1.bf16.msra.mxu0 0
  %1477 = vmatprep.subr.bf16.mxu0 %v1457
  %1478 = vmatpush1.bf16.msra.mxu0 %v1456
  %1479 = vmatprep.subr.bf16.mxu0 %v1455
  %1480 = vmatpush1.bf16.msra.mxu0 %v1454
  %1481 = vmatprep.subr.bf16.mxu0 %v1453
  %1482 = vmatpush1.bf16.msra.mxu0 %v1452
  %1483 = vmatprep.subr.bf16.mxu0 %v1451
  %1484 = vmatpush1.bf16.msra.mxu0 %v1450
  %1485 = vmatprep.subr.bf16.mxu0 0
  %1486 = vmatpush2.bf16.msra.mxu0 0
  %1487 = vmatprep.subr.bf16.mxu0 0
  %1488 = vmatpush2.bf16.msra.mxu0 0
  %1489 = vmatprep.subr.bf16.mxu0 0
  %1490 = vmatpush2.bf16.msra.mxu0 0
  %1491 = vmatprep.subr.bf16.mxu0 0
  %1492 = vmatpush2.bf16.msra.mxu0 0
  %1493 = vmatprep.subr.bf16.mxu0 0
  %1494 = vmatpush2.bf16.msra.mxu0 0
  %1495 = vmatprep.subr.bf16.mxu0 0
  %1496 = vmatpush2.bf16.msra.mxu0 0
  %1497 = vmatprep.subr.bf16.mxu0 0
  %1498 = vmatpush2.bf16.msra.mxu0 0
  %1499 = vmatprep.subr.bf16.mxu0 0
  %1500 = vmatpush2.bf16.msra.mxu0 0
  %1501 = vmatprep.mubr.bf16.mxu0 0
  %1502 = vmatmul.mubr.bf16.gmra.mxu0 %v1467
  %v1503 = vpop.f32.mrf.mxu0
  %v1504 = vadd.f32 0.0, %v1503
  %v1505 = vpop.f32.mrf.mxu0
  %v1506 = vadd.f32 0.0, %v1505
  %v1507 = vpop.f32.mrf.mxu0
  %v1508 = vpop.f32.mrf.mxu0
  %1509 = vdwg.mxu0
  %v1510 = vadd.f32 %v1414, %v1504
  %v1511 = vadd.f32 %v1415, %v1506
  %s1512 = scalar_lea.vmem %s3, 448
  %v1513 = vld [vmem:[%s1512] sm:$0xff]
  %v1514 = vld [vmem:[%s1512 + $0x8] sm:$0xff]
  %v1515 = vld [vmem:[%s1512 + $0x10] sm:$0xff]
  %v1516 = vld [vmem:[%s1512 + $0x18] sm:$0xff]
  %v1517 = vld [vmem:[%s1512 + $0x20] sm:$0xff]
  %v1518 = vld [vmem:[%s1512 + $0x28] sm:$0xff]
  %v1519 = vld [vmem:[%s1512 + $0x30] sm:$0xff]
  %v1520 = vld [vmem:[%s1512 + $0x38] sm:$0xff]
  %v1521 = vrot.slane %v1223, 3
  %v1530 = vunpack.c.l.b16 %v1513
  %v1531 = vunpack.c.h.b16 %v1513
  %v1532 = vunpack.c.l.b16 %v1514
  %v1533 = vunpack.c.h.b16 %v1514
  %v1534 = vunpack.c.l.b16 %v1515
  %v1535 = vunpack.c.h.b16 %v1515
  %v1536 = vunpack.c.l.b16 %v1516
  %v1537 = vunpack.c.h.b16 %v1516
  %v1538 = vunpack.c.l.b16 %v1517
  %v1539 = vunpack.c.h.b16 %v1517
  %v1540 = vunpack.c.l.b16 %v1518
  %v1541 = vunpack.c.h.b16 %v1518
  %v1542 = vunpack.c.l.b16 %v1519
  %v1543 = vunpack.c.h.b16 %v1519
  %v1544 = vunpack.c.l.b16 %v1520
  %v1545 = vunpack.c.h.b16 %v1520
  %v1546 = vpack.c.b16 %v1532, %v1530
  %v1547 = vpack.c.b16 %v1533, %v1531
  %v1548 = vpack.c.b16 %v1536, %v1534
  %v1549 = vpack.c.b16 %v1537, %v1535
  %v1550 = vpack.c.b16 %v1540, %v1538
  %v1551 = vpack.c.b16 %v1541, %v1539
  %v1552 = vpack.c.b16 %v1544, %v1542
  %v1553 = vpack.c.b16 %v1545, %v1543
  %v1563 = vsel %vm902, %v1521, 0
  %1565 = vmatprep.subr.bf16.mxu0 0
  %1566 = vmatpush1.bf16.msra.mxu0 0
  %1567 = vmatprep.subr.bf16.mxu0 0
  %1568 = vmatpush1.bf16.msra.mxu0 0
  %1569 = vmatprep.subr.bf16.mxu0 0
  %1570 = vmatpush1.bf16.msra.mxu0 0
  %1571 = vmatprep.subr.bf16.mxu0 0
  %1572 = vmatpush1.bf16.msra.mxu0 0
  %1573 = vmatprep.subr.bf16.mxu0 %v1553
  %1574 = vmatpush1.bf16.msra.mxu0 %v1552
  %1575 = vmatprep.subr.bf16.mxu0 %v1551
  %1576 = vmatpush1.bf16.msra.mxu0 %v1550
  %1577 = vmatprep.subr.bf16.mxu0 %v1549
  %1578 = vmatpush1.bf16.msra.mxu0 %v1548
  %1579 = vmatprep.subr.bf16.mxu0 %v1547
  %1580 = vmatpush1.bf16.msra.mxu0 %v1546
  %1581 = vmatprep.subr.bf16.mxu0 0
  %1582 = vmatpush2.bf16.msra.mxu0 0
  %1583 = vmatprep.subr.bf16.mxu0 0
  %1584 = vmatpush2.bf16.msra.mxu0 0
  %1585 = vmatprep.subr.bf16.mxu0 0
  %1586 = vmatpush2.bf16.msra.mxu0 0
  %1587 = vmatprep.subr.bf16.mxu0 0
  %1588 = vmatpush2.bf16.msra.mxu0 0
  %1589 = vmatprep.subr.bf16.mxu0 0
  %1590 = vmatpush2.bf16.msra.mxu0 0
  %1591 = vmatprep.subr.bf16.mxu0 0
  %1592 = vmatpush2.bf16.msra.mxu0 0
  %1593 = vmatprep.subr.bf16.mxu0 0
  %1594 = vmatpush2.bf16.msra.mxu0 0
  %1595 = vmatprep.subr.bf16.mxu0 0
  %1596 = vmatpush2.bf16.msra.mxu0 0
  %1597 = vmatprep.mubr.bf16.mxu0 0
  %1598 = vmatmul.mubr.bf16.gmra.mxu0 %v1563
  %v1599 = vpop.f32.mrf.mxu0
  %v1600 = vadd.f32 0.0, %v1599
  %v1601 = vpop.f32.mrf.mxu0
  %v1602 = vadd.f32 0.0, %v1601
  %v1603 = vpop.f32.mrf.mxu0
  %v1604 = vpop.f32.mrf.mxu0
  %1605 = vdwg.mxu0
  %v1606 = vadd.f32 %v1510, %v1600
  %v1607 = vadd.f32 %v1511, %v1602
  %v1608 = vpack.c.bf16 %v840, %v840
  %s1609 = scalar_lea.vmem %s3, 512
  %v1610 = vld [vmem:[%s1609] sm:$0xff]
  %v1611 = vld [vmem:[%s1609 + $0x8] sm:$0xff]
  %v1612 = vld [vmem:[%s1609 + $0x10] sm:$0xff]
  %v1613 = vld [vmem:[%s1609 + $0x18] sm:$0xff]
  %v1614 = vld [vmem:[%s1609 + $0x20] sm:$0xff]
  %v1615 = vld [vmem:[%s1609 + $0x28] sm:$0xff]
  %v1616 = vld [vmem:[%s1609 + $0x30] sm:$0xff]
  %v1617 = vld [vmem:[%s1609 + $0x38] sm:$0xff]
  %v1626 = vunpack.c.l.b16 %v1610
  %v1627 = vunpack.c.h.b16 %v1610
  %v1628 = vunpack.c.l.b16 %v1611
  %v1629 = vunpack.c.h.b16 %v1611
  %v1630 = vunpack.c.l.b16 %v1612
  %v1631 = vunpack.c.h.b16 %v1612
  %v1632 = vunpack.c.l.b16 %v1613
  %v1633 = vunpack.c.h.b16 %v1613
  %v1634 = vunpack.c.l.b16 %v1614
  %v1635 = vunpack.c.h.b16 %v1614
  %v1636 = vunpack.c.l.b16 %v1615
  %v1637 = vunpack.c.h.b16 %v1615
  %v1638 = vunpack.c.l.b16 %v1616
  %v1639 = vunpack.c.h.b16 %v1616
  %v1640 = vunpack.c.l.b16 %v1617
  %v1641 = vunpack.c.h.b16 %v1617
  %v1642 = vpack.c.b16 %v1628, %v1626
  %v1643 = vpack.c.b16 %v1629, %v1627
  %v1644 = vpack.c.b16 %v1632, %v1630
  %v1645 = vpack.c.b16 %v1633, %v1631
  %v1646 = vpack.c.b16 %v1636, %v1634
  %v1647 = vpack.c.b16 %v1637, %v1635
  %v1648 = vpack.c.b16 %v1640, %v1638
  %v1649 = vpack.c.b16 %v1641, %v1639
  %v1659 = vsel %vm902, %v1608, 0
  %1661 = vmatprep.subr.bf16.mxu0 0
  %1662 = vmatpush1.bf16.msra.mxu0 0
  %1663 = vmatprep.subr.bf16.mxu0 0
  %1664 = vmatpush1.bf16.msra.mxu0 0
  %1665 = vmatprep.subr.bf16.mxu0 0
  %1666 = vmatpush1.bf16.msra.mxu0 0
  %1667 = vmatprep.subr.bf16.mxu0 0
  %1668 = vmatpush1.bf16.msra.mxu0 0
  %1669 = vmatprep.subr.bf16.mxu0 %v1649
  %1670 = vmatpush1.bf16.msra.mxu0 %v1648
  %1671 = vmatprep.subr.bf16.mxu0 %v1647
  %1672 = vmatpush1.bf16.msra.mxu0 %v1646
  %1673 = vmatprep.subr.bf16.mxu0 %v1645
  %1674 = vmatpush1.bf16.msra.mxu0 %v1644
  %1675 = vmatprep.subr.bf16.mxu0 %v1643
  %1676 = vmatpush1.bf16.msra.mxu0 %v1642
  %1677 = vmatprep.subr.bf16.mxu0 0
  %1678 = vmatpush2.bf16.msra.mxu0 0
  %1679 = vmatprep.subr.bf16.mxu0 0
  %1680 = vmatpush2.bf16.msra.mxu0 0
  %1681 = vmatprep.subr.bf16.mxu0 0
  %1682 = vmatpush2.bf16.msra.mxu0 0
  %1683 = vmatprep.subr.bf16.mxu0 0
  %1684 = vmatpush2.bf16.msra.mxu0 0
  %1685 = vmatprep.subr.bf16.mxu0 0
  %1686 = vmatpush2.bf16.msra.mxu0 0
  %1687 = vmatprep.subr.bf16.mxu0 0
  %1688 = vmatpush2.bf16.msra.mxu0 0
  %1689 = vmatprep.subr.bf16.mxu0 0
  %1690 = vmatpush2.bf16.msra.mxu0 0
  %1691 = vmatprep.subr.bf16.mxu0 0
  %1692 = vmatpush2.bf16.msra.mxu0 0
  %1693 = vmatprep.mubr.bf16.mxu0 0
  %1694 = vmatmul.mubr.bf16.gmra.mxu0 %v1659
  %v1695 = vpop.f32.mrf.mxu0
  %v1696 = vadd.f32 0.0, %v1695
  %v1697 = vpop.f32.mrf.mxu0
  %v1698 = vadd.f32 0.0, %v1697
  %v1699 = vpop.f32.mrf.mxu0
  %v1700 = vpop.f32.mrf.mxu0
  %1701 = vdwg.mxu0
  %v1702 = vadd.f32 %v1606, %v1696
  %v1703 = vadd.f32 %v1607, %v1698
  %s1704 = scalar_lea.vmem %s3, 576
  %v1705 = vld [vmem:[%s1704] sm:$0xff]
  %v1706 = vld [vmem:[%s1704 + $0x8] sm:$0xff]
  %v1707 = vld [vmem:[%s1704 + $0x10] sm:$0xff]
  %v1708 = vld [vmem:[%s1704 + $0x18] sm:$0xff]
  %v1709 = vld [vmem:[%s1704 + $0x20] sm:$0xff]
  %v1710 = vld [vmem:[%s1704 + $0x28] sm:$0xff]
  %v1711 = vld [vmem:[%s1704 + $0x30] sm:$0xff]
  %v1712 = vld [vmem:[%s1704 + $0x38] sm:$0xff]
  %v1714 = vrot.slane %v1608, 1
  %v1723 = vunpack.c.l.b16 %v1705
  %v1724 = vunpack.c.h.b16 %v1705
  %v1725 = vunpack.c.l.b16 %v1706
  %v1726 = vunpack.c.h.b16 %v1706
  %v1727 = vunpack.c.l.b16 %v1707
  %v1728 = vunpack.c.h.b16 %v1707
  %v1729 = vunpack.c.l.b16 %v1708
  %v1730 = vunpack.c.h.b16 %v1708
  %v1731 = vunpack.c.l.b16 %v1709
  %v1732 = vunpack.c.h.b16 %v1709
  %v1733 = vunpack.c.l.b16 %v1710
  %v1734 = vunpack.c.h.b16 %v1710
  %v1735 = vunpack.c.l.b16 %v1711
  %v1736 = vunpack.c.h.b16 %v1711
  %v1737 = vunpack.c.l.b16 %v1712
  %v1738 = vunpack.c.h.b16 %v1712
  %v1739 = vpack.c.b16 %v1725, %v1723
  %v1740 = vpack.c.b16 %v1726, %v1724
  %v1741 = vpack.c.b16 %v1729, %v1727
  %v1742 = vpack.c.b16 %v1730, %v1728
  %v1743 = vpack.c.b16 %v1733, %v1731
  %v1744 = vpack.c.b16 %v1734, %v1732
  %v1745 = vpack.c.b16 %v1737, %v1735
  %v1746 = vpack.c.b16 %v1738, %v1736
  %v1756 = vsel %vm902, %v1714, 0
  %1758 = vmatprep.subr.bf16.mxu0 0
  %1759 = vmatpush1.bf16.msra.mxu0 0
  %1760 = vmatprep.subr.bf16.mxu0 0
  %1761 = vmatpush1.bf16.msra.mxu0 0
  %1762 = vmatprep.subr.bf16.mxu0 0
  %1763 = vmatpush1.bf16.msra.mxu0 0
  %1764 = vmatprep.subr.bf16.mxu0 0
  %1765 = vmatpush1.bf16.msra.mxu0 0
  %1766 = vmatprep.subr.bf16.mxu0 %v1746
  %1767 = vmatpush1.bf16.msra.mxu0 %v1745
  %1768 = vmatprep.subr.bf16.mxu0 %v1744
  %1769 = vmatpush1.bf16.msra.mxu0 %v1743
  %1770 = vmatprep.subr.bf16.mxu0 %v1742
  %1771 = vmatpush1.bf16.msra.mxu0 %v1741
  %1772 = vmatprep.subr.bf16.mxu0 %v1740
  %1773 = vmatpush1.bf16.msra.mxu0 %v1739
  %1774 = vmatprep.subr.bf16.mxu0 0
  %1775 = vmatpush2.bf16.msra.mxu0 0
  %1776 = vmatprep.subr.bf16.mxu0 0
  %1777 = vmatpush2.bf16.msra.mxu0 0
  %1778 = vmatprep.subr.bf16.mxu0 0
  %1779 = vmatpush2.bf16.msra.mxu0 0
  %1780 = vmatprep.subr.bf16.mxu0 0
  %1781 = vmatpush2.bf16.msra.mxu0 0
  %1782 = vmatprep.subr.bf16.mxu0 0
  %1783 = vmatpush2.bf16.msra.mxu0 0
  %1784 = vmatprep.subr.bf16.mxu0 0
  %1785 = vmatpush2.bf16.msra.mxu0 0
  %1786 = vmatprep.subr.bf16.mxu0 0
  %1787 = vmatpush2.bf16.msra.mxu0 0
  %1788 = vmatprep.subr.bf16.mxu0 0
  %1789 = vmatpush2.bf16.msra.mxu0 0
  %1790 = vmatprep.mubr.bf16.mxu0 0
  %1791 = vmatmul.mubr.bf16.gmra.mxu0 %v1756
  %v1792 = vpop.f32.mrf.mxu0
  %v1793 = vadd.f32 0.0, %v1792
  %v1794 = vpop.f32.mrf.mxu0
  %v1795 = vadd.f32 0.0, %v1794
  %v1796 = vpop.f32.mrf.mxu0
  %v1797 = vpop.f32.mrf.mxu0
  %1798 = vdwg.mxu0
  %v1799 = vadd.f32 %v1702, %v1793
  %v1800 = vadd.f32 %v1703, %v1795
  %s1801 = scalar_lea.vmem %s3, 640
  %v1802 = vld [vmem:[%s1801] sm:$0xff]
  %v1803 = vld [vmem:[%s1801 + $0x8] sm:$0xff]
  %v1804 = vld [vmem:[%s1801 + $0x10] sm:$0xff]
  %v1805 = vld [vmem:[%s1801 + $0x18] sm:$0xff]
  %v1806 = vld [vmem:[%s1801 + $0x20] sm:$0xff]
  %v1807 = vld [vmem:[%s1801 + $0x28] sm:$0xff]
  %v1808 = vld [vmem:[%s1801 + $0x30] sm:$0xff]
  %v1809 = vld [vmem:[%s1801 + $0x38] sm:$0xff]
  %v1810 = vrot.slane %v1608, 2
  %v1819 = vunpack.c.l.b16 %v1802
  %v1820 = vunpack.c.h.b16 %v1802
  %v1821 = vunpack.c.l.b16 %v1803
  %v1822 = vunpack.c.h.b16 %v1803
  %v1823 = vunpack.c.l.b16 %v1804
  %v1824 = vunpack.c.h.b16 %v1804
  %v1825 = vunpack.c.l.b16 %v1805
  %v1826 = vunpack.c.h.b16 %v1805
  %v1827 = vunpack.c.l.b16 %v1806
  %v1828 = vunpack.c.h.b16 %v1806
  %v1829 = vunpack.c.l.b16 %v1807
  %v1830 = vunpack.c.h.b16 %v1807
  %v1831 = vunpack.c.l.b16 %v1808
  %v1832 = vunpack.c.h.b16 %v1808
  %v1833 = vunpack.c.l.b16 %v1809
  %v1834 = vunpack.c.h.b16 %v1809
  %v1835 = vpack.c.b16 %v1821, %v1819
  %v1836 = vpack.c.b16 %v1822, %v1820
  %v1837 = vpack.c.b16 %v1825, %v1823
  %v1838 = vpack.c.b16 %v1826, %v1824
  %v1839 = vpack.c.b16 %v1829, %v1827
  %v1840 = vpack.c.b16 %v1830, %v1828
  %v1841 = vpack.c.b16 %v1833, %v1831
  %v1842 = vpack.c.b16 %v1834, %v1832
  %v1852 = vsel %vm902, %v1810, 0
  %1854 = vmatprep.subr.bf16.mxu0 0
  %1855 = vmatpush1.bf16.msra.mxu0 0
  %1856 = vmatprep.subr.bf16.mxu0 0
  %1857 = vmatpush1.bf16.msra.mxu0 0
  %1858 = vmatprep.subr.bf16.mxu0 0
  %1859 = vmatpush1.bf16.msra.mxu0 0
  %1860 = vmatprep.subr.bf16.mxu0 0
  %1861 = vmatpush1.bf16.msra.mxu0 0
  %1862 = vmatprep.subr.bf16.mxu0 %v1842
  %1863 = vmatpush1.bf16.msra.mxu0 %v1841
  %1864 = vmatprep.subr.bf16.mxu0 %v1840
  %1865 = vmatpush1.bf16.msra.mxu0 %v1839
  %1866 = vmatprep.subr.bf16.mxu0 %v1838
  %1867 = vmatpush1.bf16.msra.mxu0 %v1837
  %1868 = vmatprep.subr.bf16.mxu0 %v1836
  %1869 = vmatpush1.bf16.msra.mxu0 %v1835
  %1870 = vmatprep.subr.bf16.mxu0 0
  %1871 = vmatpush2.bf16.msra.mxu0 0
  %1872 = vmatprep.subr.bf16.mxu0 0
  %1873 = vmatpush2.bf16.msra.mxu0 0
  %1874 = vmatprep.subr.bf16.mxu0 0
  %1875 = vmatpush2.bf16.msra.mxu0 0
  %1876 = vmatprep.subr.bf16.mxu0 0
  %1877 = vmatpush2.bf16.msra.mxu0 0
  %1878 = vmatprep.subr.bf16.mxu0 0
  %1879 = vmatpush2.bf16.msra.mxu0 0
  %1880 = vmatprep.subr.bf16.mxu0 0
  %1881 = vmatpush2.bf16.msra.mxu0 0
  %1882 = vmatprep.subr.bf16.mxu0 0
  %1883 = vmatpush2.bf16.msra.mxu0 0
  %1884 = vmatprep.subr.bf16.mxu0 0
  %1885 = vmatpush2.bf16.msra.mxu0 0
  %1886 = vmatprep.mubr.bf16.mxu0 0
  %1887 = vmatmul.mubr.bf16.gmra.mxu0 %v1852
  %v1888 = vpop.f32.mrf.mxu0
  %v1889 = vadd.f32 0.0, %v1888
  %v1890 = vpop.f32.mrf.mxu0
  %v1891 = vadd.f32 0.0, %v1890
  %v1892 = vpop.f32.mrf.mxu0
  %v1893 = vpop.f32.mrf.mxu0
  %1894 = vdwg.mxu0
  %v1895 = vadd.f32 %v1799, %v1889
  %v1896 = vadd.f32 %v1800, %v1891
  %s1897 = scalar_lea.vmem %s3, 704
  %v1898 = vld [vmem:[%s1897] sm:$0xff]
  %v1899 = vld [vmem:[%s1897 + $0x8] sm:$0xff]
  %v1900 = vld [vmem:[%s1897 + $0x10] sm:$0xff]
  %v1901 = vld [vmem:[%s1897 + $0x18] sm:$0xff]
  %v1902 = vld [vmem:[%s1897 + $0x20] sm:$0xff]
  %v1903 = vld [vmem:[%s1897 + $0x28] sm:$0xff]
  %v1904 = vld [vmem:[%s1897 + $0x30] sm:$0xff]
  %v1905 = vld [vmem:[%s1897 + $0x38] sm:$0xff]
  %v1906 = vrot.slane %v1608, 3
  %v1915 = vunpack.c.l.b16 %v1898
  %v1916 = vunpack.c.h.b16 %v1898
  %v1917 = vunpack.c.l.b16 %v1899
  %v1918 = vunpack.c.h.b16 %v1899
  %v1919 = vunpack.c.l.b16 %v1900
  %v1920 = vunpack.c.h.b16 %v1900
  %v1921 = vunpack.c.l.b16 %v1901
  %v1922 = vunpack.c.h.b16 %v1901
  %v1923 = vunpack.c.l.b16 %v1902
  %v1924 = vunpack.c.h.b16 %v1902
  %v1925 = vunpack.c.l.b16 %v1903
  %v1926 = vunpack.c.h.b16 %v1903
  %v1927 = vunpack.c.l.b16 %v1904
  %v1928 = vunpack.c.h.b16 %v1904
  %v1929 = vunpack.c.l.b16 %v1905
  %v1930 = vunpack.c.h.b16 %v1905
  %v1931 = vpack.c.b16 %v1917, %v1915
  %v1932 = vpack.c.b16 %v1918, %v1916
  %v1933 = vpack.c.b16 %v1921, %v1919
  %v1934 = vpack.c.b16 %v1922, %v1920
  %v1935 = vpack.c.b16 %v1925, %v1923
  %v1936 = vpack.c.b16 %v1926, %v1924
  %v1937 = vpack.c.b16 %v1929, %v1927
  %v1938 = vpack.c.b16 %v1930, %v1928
  %v1948 = vsel %vm902, %v1906, 0
  %1950 = vmatprep.subr.bf16.mxu0 0
  %1951 = vmatpush1.bf16.msra.mxu0 0
  %1952 = vmatprep.subr.bf16.mxu0 0
  %1953 = vmatpush1.bf16.msra.mxu0 0
  %1954 = vmatprep.subr.bf16.mxu0 0
  %1955 = vmatpush1.bf16.msra.mxu0 0
  %1956 = vmatprep.subr.bf16.mxu0 0
  %1957 = vmatpush1.bf16.msra.mxu0 0
  %1958 = vmatprep.subr.bf16.mxu0 %v1938
  %1959 = vmatpush1.bf16.msra.mxu0 %v1937
  %1960 = vmatprep.subr.bf16.mxu0 %v1936
  %1961 = vmatpush1.bf16.msra.mxu0 %v1935
  %1962 = vmatprep.subr.bf16.mxu0 %v1934
  %1963 = vmatpush1.bf16.msra.mxu0 %v1933
  %1964 = vmatprep.subr.bf16.mxu0 %v1932
  %1965 = vmatpush1.bf16.msra.mxu0 %v1931
  %1966 = vmatprep.subr.bf16.mxu0 0
  %1967 = vmatpush2.bf16.msra.mxu0 0
  %1968 = vmatprep.subr.bf16.mxu0 0
  %1969 = vmatpush2.bf16.msra.mxu0 0
  %1970 = vmatprep.subr.bf16.mxu0 0
  %1971 = vmatpush2.bf16.msra.mxu0 0
  %1972 = vmatprep.subr.bf16.mxu0 0
  %1973 = vmatpush2.bf16.msra.mxu0 0
  %1974 = vmatprep.subr.bf16.mxu0 0
  %1975 = vmatpush2.bf16.msra.mxu0 0
  %1976 = vmatprep.subr.bf16.mxu0 0
  %1977 = vmatpush2.bf16.msra.mxu0 0
  %1978 = vmatprep.subr.bf16.mxu0 0
  %1979 = vmatpush2.bf16.msra.mxu0 0
  %1980 = vmatprep.subr.bf16.mxu0 0
  %1981 = vmatpush2.bf16.msra.mxu0 0
  %1982 = vmatprep.mubr.bf16.mxu0 0
  %1983 = vmatmul.mubr.bf16.gmra.mxu0 %v1948
  %v1984 = vpop.f32.mrf.mxu0
  %v1985 = vadd.f32 0.0, %v1984
  %v1986 = vpop.f32.mrf.mxu0
  %v1987 = vadd.f32 0.0, %v1986
  %v1988 = vpop.f32.mrf.mxu0
  %v1989 = vpop.f32.mrf.mxu0
  %1990 = vdwg.mxu0
  %v1991 = vadd.f32 %v1895, %v1985
  %v1992 = vadd.f32 %v1896, %v1987
  %v1993 = vpack.c.bf16 %v841, %v841
  %s1994 = scalar_lea.vmem %s3, 768
  %v1995 = vld [vmem:[%s1994] sm:$0xff]
  %v1996 = vld [vmem:[%s1994 + $0x8] sm:$0xff]
  %v1997 = vld [vmem:[%s1994 + $0x10] sm:$0xff]
  %v1998 = vld [vmem:[%s1994 + $0x18] sm:$0xff]
  %v1999 = vld [vmem:[%s1994 + $0x20] sm:$0xff]
  %v2000 = vld [vmem:[%s1994 + $0x28] sm:$0xff]
  %v2001 = vld [vmem:[%s1994 + $0x30] sm:$0xff]
  %v2002 = vld [vmem:[%s1994 + $0x38] sm:$0xff]
  %v2011 = vunpack.c.l.b16 %v1995
  %v2012 = vunpack.c.h.b16 %v1995
  %v2013 = vunpack.c.l.b16 %v1996
  %v2014 = vunpack.c.h.b16 %v1996
  %v2015 = vunpack.c.l.b16 %v1997
  %v2016 = vunpack.c.h.b16 %v1997
  %v2017 = vunpack.c.l.b16 %v1998
  %v2018 = vunpack.c.h.b16 %v1998
  %v2019 = vunpack.c.l.b16 %v1999
  %v2020 = vunpack.c.h.b16 %v1999
  %v2021 = vunpack.c.l.b16 %v2000
  %v2022 = vunpack.c.h.b16 %v2000
  %v2023 = vunpack.c.l.b16 %v2001
  %v2024 = vunpack.c.h.b16 %v2001
  %v2025 = vunpack.c.l.b16 %v2002
  %v2026 = vunpack.c.h.b16 %v2002
  %v2027 = vpack.c.b16 %v2013, %v2011
  %v2028 = vpack.c.b16 %v2014, %v2012
  %v2029 = vpack.c.b16 %v2017, %v2015
  %v2030 = vpack.c.b16 %v2018, %v2016
  %v2031 = vpack.c.b16 %v2021, %v2019
  %v2032 = vpack.c.b16 %v2022, %v2020
  %v2033 = vpack.c.b16 %v2025, %v2023
  %v2034 = vpack.c.b16 %v2026, %v2024
  %v2044 = vsel %vm902, %v1993, 0
  %2046 = vmatprep.subr.bf16.mxu0 0
  %2047 = vmatpush1.bf16.msra.mxu0 0
  %2048 = vmatprep.subr.bf16.mxu0 0
  %2049 = vmatpush1.bf16.msra.mxu0 0
  %2050 = vmatprep.subr.bf16.mxu0 0
  %2051 = vmatpush1.bf16.msra.mxu0 0
  %2052 = vmatprep.subr.bf16.mxu0 0
  %2053 = vmatpush1.bf16.msra.mxu0 0
  %2054 = vmatprep.subr.bf16.mxu0 %v2034
  %2055 = vmatpush1.bf16.msra.mxu0 %v2033
  %2056 = vmatprep.subr.bf16.mxu0 %v2032
  %2057 = vmatpush1.bf16.msra.mxu0 %v2031
  %2058 = vmatprep.subr.bf16.mxu0 %v2030
  %2059 = vmatpush1.bf16.msra.mxu0 %v2029
  %2060 = vmatprep.subr.bf16.mxu0 %v2028
  %2061 = vmatpush1.bf16.msra.mxu0 %v2027
  %2062 = vmatprep.subr.bf16.mxu0 0
  %2063 = vmatpush2.bf16.msra.mxu0 0
  %2064 = vmatprep.subr.bf16.mxu0 0
  %2065 = vmatpush2.bf16.msra.mxu0 0
  %2066 = vmatprep.subr.bf16.mxu0 0
  %2067 = vmatpush2.bf16.msra.mxu0 0
  %2068 = vmatprep.subr.bf16.mxu0 0
  %2069 = vmatpush2.bf16.msra.mxu0 0
  %2070 = vmatprep.subr.bf16.mxu0 0
  %2071 = vmatpush2.bf16.msra.mxu0 0
  %2072 = vmatprep.subr.bf16.mxu0 0
  %2073 = vmatpush2.bf16.msra.mxu0 0
  %2074 = vmatprep.subr.bf16.mxu0 0
  %2075 = vmatpush2.bf16.msra.mxu0 0
  %2076 = vmatprep.subr.bf16.mxu0 0
  %2077 = vmatpush2.bf16.msra.mxu0 0
  %2078 = vmatprep.mubr.bf16.mxu0 0
  %2079 = vmatmul.mubr.bf16.gmra.mxu0 %v2044
  %v2080 = vpop.f32.mrf.mxu0
  %v2081 = vadd.f32 0.0, %v2080
  %v2082 = vpop.f32.mrf.mxu0
  %v2083 = vadd.f32 0.0, %v2082
  %v2084 = vpop.f32.mrf.mxu0
  %v2085 = vpop.f32.mrf.mxu0
  %2086 = vdwg.mxu0
  %v2087 = vadd.f32 %v1991, %v2081
  %v2088 = vadd.f32 %v1992, %v2083
  %s2089 = scalar_lea.vmem %s3, 832
  %v2090 = vld [vmem:[%s2089] sm:$0xff]
  %v2091 = vld [vmem:[%s2089 + $0x8] sm:$0xff]
  %v2092 = vld [vmem:[%s2089 + $0x10] sm:$0xff]
  %v2093 = vld [vmem:[%s2089 + $0x18] sm:$0xff]
  %v2094 = vld [vmem:[%s2089 + $0x20] sm:$0xff]
  %v2095 = vld [vmem:[%s2089 + $0x28] sm:$0xff]
  %v2096 = vld [vmem:[%s2089 + $0x30] sm:$0xff]
  %v2097 = vld [vmem:[%s2089 + $0x38] sm:$0xff]
  %v2099 = vrot.slane %v1993, 1
  %v2108 = vunpack.c.l.b16 %v2090
  %v2109 = vunpack.c.h.b16 %v2090
  %v2110 = vunpack.c.l.b16 %v2091
  %v2111 = vunpack.c.h.b16 %v2091
  %v2112 = vunpack.c.l.b16 %v2092
  %v2113 = vunpack.c.h.b16 %v2092
  %v2114 = vunpack.c.l.b16 %v2093
  %v2115 = vunpack.c.h.b16 %v2093
  %v2116 = vunpack.c.l.b16 %v2094
  %v2117 = vunpack.c.h.b16 %v2094
  %v2118 = vunpack.c.l.b16 %v2095
  %v2119 = vunpack.c.h.b16 %v2095
  %v2120 = vunpack.c.l.b16 %v2096
  %v2121 = vunpack.c.h.b16 %v2096
  %v2122 = vunpack.c.l.b16 %v2097
  %v2123 = vunpack.c.h.b16 %v2097
  %v2124 = vpack.c.b16 %v2110, %v2108
  %v2125 = vpack.c.b16 %v2111, %v2109
  %v2126 = vpack.c.b16 %v2114, %v2112
  %v2127 = vpack.c.b16 %v2115, %v2113
  %v2128 = vpack.c.b16 %v2118, %v2116
  %v2129 = vpack.c.b16 %v2119, %v2117
  %v2130 = vpack.c.b16 %v2122, %v2120
  %v2131 = vpack.c.b16 %v2123, %v2121
  %v2141 = vsel %vm902, %v2099, 0
  %2143 = vmatprep.subr.bf16.mxu0 0
  %2144 = vmatpush1.bf16.msra.mxu0 0
  %2145 = vmatprep.subr.bf16.mxu0 0
  %2146 = vmatpush1.bf16.msra.mxu0 0
  %2147 = vmatprep.subr.bf16.mxu0 0
  %2148 = vmatpush1.bf16.msra.mxu0 0
  %2149 = vmatprep.subr.bf16.mxu0 0
  %2150 = vmatpush1.bf16.msra.mxu0 0
  %2151 = vmatprep.subr.bf16.mxu0 %v2131
  %2152 = vmatpush1.bf16.msra.mxu0 %v2130
  %2153 = vmatprep.subr.bf16.mxu0 %v2129
  %2154 = vmatpush1.bf16.msra.mxu0 %v2128
  %2155 = vmatprep.subr.bf16.mxu0 %v2127
  %2156 = vmatpush1.bf16.msra.mxu0 %v2126
  %2157 = vmatprep.subr.bf16.mxu0 %v2125
  %2158 = vmatpush1.bf16.msra.mxu0 %v2124
  %2159 = vmatprep.subr.bf16.mxu0 0
  %2160 = vmatpush2.bf16.msra.mxu0 0
  %2161 = vmatprep.subr.bf16.mxu0 0
  %2162 = vmatpush2.bf16.msra.mxu0 0
  %2163 = vmatprep.subr.bf16.mxu0 0
  %2164 = vmatpush2.bf16.msra.mxu0 0
  %2165 = vmatprep.subr.bf16.mxu0 0
  %2166 = vmatpush2.bf16.msra.mxu0 0
  %2167 = vmatprep.subr.bf16.mxu0 0
  %2168 = vmatpush2.bf16.msra.mxu0 0
  %2169 = vmatprep.subr.bf16.mxu0 0
  %2170 = vmatpush2.bf16.msra.mxu0 0
  %2171 = vmatprep.subr.bf16.mxu0 0
  %2172 = vmatpush2.bf16.msra.mxu0 0
  %2173 = vmatprep.subr.bf16.mxu0 0
  %2174 = vmatpush2.bf16.msra.mxu0 0
  %2175 = vmatprep.mubr.bf16.mxu0 0
  %2176 = vmatmul.mubr.bf16.gmra.mxu0 %v2141
  %v2177 = vpop.f32.mrf.mxu0
  %v2178 = vadd.f32 0.0, %v2177
  %v2179 = vpop.f32.mrf.mxu0
  %v2180 = vadd.f32 0.0, %v2179
  %v2181 = vpop.f32.mrf.mxu0
  %v2182 = vpop.f32.mrf.mxu0
  %2183 = vdwg.mxu0
  %v2184 = vadd.f32 %v2087, %v2178
  %v2185 = vadd.f32 %v2088, %v2180
  %s2186 = scalar_lea.vmem %s3, 896
  %v2187 = vld [vmem:[%s2186] sm:$0xff]
  %v2188 = vld [vmem:[%s2186 + $0x8] sm:$0xff]
  %v2189 = vld [vmem:[%s2186 + $0x10] sm:$0xff]
  %v2190 = vld [vmem:[%s2186 + $0x18] sm:$0xff]
  %v2191 = vld [vmem:[%s2186 + $0x20] sm:$0xff]
  %v2192 = vld [vmem:[%s2186 + $0x28] sm:$0xff]
  %v2193 = vld [vmem:[%s2186 + $0x30] sm:$0xff]
  %v2194 = vld [vmem:[%s2186 + $0x38] sm:$0xff]
  %v2195 = vrot.slane %v1993, 2
  %v2204 = vunpack.c.l.b16 %v2187
  %v2205 = vunpack.c.h.b16 %v2187
  %v2206 = vunpack.c.l.b16 %v2188
  %v2207 = vunpack.c.h.b16 %v2188
  %v2208 = vunpack.c.l.b16 %v2189
  %v2209 = vunpack.c.h.b16 %v2189
  %v2210 = vunpack.c.l.b16 %v2190
  %v2211 = vunpack.c.h.b16 %v2190
  %v2212 = vunpack.c.l.b16 %v2191
  %v2213 = vunpack.c.h.b16 %v2191
  %v2214 = vunpack.c.l.b16 %v2192
  %v2215 = vunpack.c.h.b16 %v2192
  %v2216 = vunpack.c.l.b16 %v2193
  %v2217 = vunpack.c.h.b16 %v2193
  %v2218 = vunpack.c.l.b16 %v2194
  %v2219 = vunpack.c.h.b16 %v2194
  %v2220 = vpack.c.b16 %v2206, %v2204
  %v2221 = vpack.c.b16 %v2207, %v2205
  %v2222 = vpack.c.b16 %v2210, %v2208
  %v2223 = vpack.c.b16 %v2211, %v2209
  %v2224 = vpack.c.b16 %v2214, %v2212
  %v2225 = vpack.c.b16 %v2215, %v2213
  %v2226 = vpack.c.b16 %v2218, %v2216
  %v2227 = vpack.c.b16 %v2219, %v2217
  %v2237 = vsel %vm902, %v2195, 0
  %2239 = vmatprep.subr.bf16.mxu0 0
  %2240 = vmatpush1.bf16.msra.mxu0 0
  %2241 = vmatprep.subr.bf16.mxu0 0
  %2242 = vmatpush1.bf16.msra.mxu0 0
  %2243 = vmatprep.subr.bf16.mxu0 0
  %2244 = vmatpush1.bf16.msra.mxu0 0
  %2245 = vmatprep.subr.bf16.mxu0 0
  %2246 = vmatpush1.bf16.msra.mxu0 0
  %2247 = vmatprep.subr.bf16.mxu0 %v2227
  %2248 = vmatpush1.bf16.msra.mxu0 %v2226
  %2249 = vmatprep.subr.bf16.mxu0 %v2225
  %2250 = vmatpush1.bf16.msra.mxu0 %v2224
  %2251 = vmatprep.subr.bf16.mxu0 %v2223
  %2252 = vmatpush1.bf16.msra.mxu0 %v2222
  %2253 = vmatprep.subr.bf16.mxu0 %v2221
  %2254 = vmatpush1.bf16.msra.mxu0 %v2220
  %2255 = vmatprep.subr.bf16.mxu0 0
  %2256 = vmatpush2.bf16.msra.mxu0 0
  %2257 = vmatprep.subr.bf16.mxu0 0
  %2258 = vmatpush2.bf16.msra.mxu0 0
  %2259 = vmatprep.subr.bf16.mxu0 0
  %2260 = vmatpush2.bf16.msra.mxu0 0
  %2261 = vmatprep.subr.bf16.mxu0 0
  %2262 = vmatpush2.bf16.msra.mxu0 0
  %2263 = vmatprep.subr.bf16.mxu0 0
  %2264 = vmatpush2.bf16.msra.mxu0 0
  %2265 = vmatprep.subr.bf16.mxu0 0
  %2266 = vmatpush2.bf16.msra.mxu0 0
  %2267 = vmatprep.subr.bf16.mxu0 0
  %2268 = vmatpush2.bf16.msra.mxu0 0
  %2269 = vmatprep.subr.bf16.mxu0 0
  %2270 = vmatpush2.bf16.msra.mxu0 0
  %2271 = vmatprep.mubr.bf16.mxu0 0
  %2272 = vmatmul.mubr.bf16.gmra.mxu0 %v2237
  %v2273 = vpop.f32.mrf.mxu0
  %v2274 = vadd.f32 0.0, %v2273
  %v2275 = vpop.f32.mrf.mxu0
  %v2276 = vadd.f32 0.0, %v2275
  %v2277 = vpop.f32.mrf.mxu0
  %v2278 = vpop.f32.mrf.mxu0
  %2279 = vdwg.mxu0
  %v2280 = vadd.f32 %v2184, %v2274
  %v2281 = vadd.f32 %v2185, %v2276
  %s2282 = scalar_lea.vmem %s3, 960
  %v2283 = vld [vmem:[%s2282] sm:$0xff]
  %v2284 = vld [vmem:[%s2282 + $0x8] sm:$0xff]
  %v2285 = vld [vmem:[%s2282 + $0x10] sm:$0xff]
  %v2286 = vld [vmem:[%s2282 + $0x18] sm:$0xff]
  %v2287 = vld [vmem:[%s2282 + $0x20] sm:$0xff]
  %v2288 = vld [vmem:[%s2282 + $0x28] sm:$0xff]
  %v2289 = vld [vmem:[%s2282 + $0x30] sm:$0xff]
  %v2290 = vld [vmem:[%s2282 + $0x38] sm:$0xff]
  %v2291 = vrot.slane %v1993, 3
  %v2300 = vunpack.c.l.b16 %v2283
  %v2301 = vunpack.c.h.b16 %v2283
  %v2302 = vunpack.c.l.b16 %v2284
  %v2303 = vunpack.c.h.b16 %v2284
  %v2304 = vunpack.c.l.b16 %v2285
  %v2305 = vunpack.c.h.b16 %v2285
  %v2306 = vunpack.c.l.b16 %v2286
  %v2307 = vunpack.c.h.b16 %v2286
  %v2308 = vunpack.c.l.b16 %v2287
  %v2309 = vunpack.c.h.b16 %v2287
  %v2310 = vunpack.c.l.b16 %v2288
  %v2311 = vunpack.c.h.b16 %v2288
  %v2312 = vunpack.c.l.b16 %v2289
  %v2313 = vunpack.c.h.b16 %v2289
  %v2314 = vunpack.c.l.b16 %v2290
  %v2315 = vunpack.c.h.b16 %v2290
  %v2316 = vpack.c.b16 %v2302, %v2300
  %v2317 = vpack.c.b16 %v2303, %v2301
  %v2318 = vpack.c.b16 %v2306, %v2304
  %v2319 = vpack.c.b16 %v2307, %v2305
  %v2320 = vpack.c.b16 %v2310, %v2308
  %v2321 = vpack.c.b16 %v2311, %v2309
  %v2322 = vpack.c.b16 %v2314, %v2312
  %v2323 = vpack.c.b16 %v2315, %v2313
  %v2333 = vsel %vm902, %v2291, 0
  %2335 = vmatprep.subr.bf16.mxu0 0
  %2336 = vmatpush1.bf16.msra.mxu0 0
  %2337 = vmatprep.subr.bf16.mxu0 0
  %2338 = vmatpush1.bf16.msra.mxu0 0
  %2339 = vmatprep.subr.bf16.mxu0 0
  %2340 = vmatpush1.bf16.msra.mxu0 0
  %2341 = vmatprep.subr.bf16.mxu0 0
  %2342 = vmatpush1.bf16.msra.mxu0 0
  %2343 = vmatprep.subr.bf16.mxu0 %v2323
  %2344 = vmatpush1.bf16.msra.mxu0 %v2322
  %2345 = vmatprep.subr.bf16.mxu0 %v2321
  %2346 = vmatpush1.bf16.msra.mxu0 %v2320
  %2347 = vmatprep.subr.bf16.mxu0 %v2319
  %2348 = vmatpush1.bf16.msra.mxu0 %v2318
  %2349 = vmatprep.subr.bf16.mxu0 %v2317
  %2350 = vmatpush1.bf16.msra.mxu0 %v2316
  %2351 = vmatprep.subr.bf16.mxu0 0
  %2352 = vmatpush2.bf16.msra.mxu0 0
  %2353 = vmatprep.subr.bf16.mxu0 0
  %2354 = vmatpush2.bf16.msra.mxu0 0
  %2355 = vmatprep.subr.bf16.mxu0 0
  %2356 = vmatpush2.bf16.msra.mxu0 0
  %2357 = vmatprep.subr.bf16.mxu0 0
  %2358 = vmatpush2.bf16.msra.mxu0 0
  %2359 = vmatprep.subr.bf16.mxu0 0
  %2360 = vmatpush2.bf16.msra.mxu0 0
  %2361 = vmatprep.subr.bf16.mxu0 0
  %2362 = vmatpush2.bf16.msra.mxu0 0
  %2363 = vmatprep.subr.bf16.mxu0 0
  %2364 = vmatpush2.bf16.msra.mxu0 0
  %2365 = vmatprep.subr.bf16.mxu0 0
  %2366 = vmatpush2.bf16.msra.mxu0 0
  %2367 = vmatprep.mubr.bf16.mxu0 0
  %2368 = vmatmul.mubr.bf16.gmra.mxu0 %v2333
  %v2369 = vpop.f32.mrf.mxu0
  %v2370 = vadd.f32 0.0, %v2369
  %v2371 = vpop.f32.mrf.mxu0
  %v2372 = vadd.f32 0.0, %v2371
  %v2373 = vpop.f32.mrf.mxu0
  %v2374 = vpop.f32.mrf.mxu0
  %2375 = vdwg.mxu0
  %v2376 = vadd.f32 %v2280, %v2370
  %v2377 = vadd.f32 %v2281, %v2372
  %v2378 = vld [vmem:[%s4] sm:$0x3]
  %v2380 = vlaneseq
  %v2381 = vshrl.u32 %v2380, 7
  %v2382 = vsub.s32 0, %v2381
  %v2383 = vrot.slane %v2378, %v2382
  %v2384 = vlaneseq
  %v2385 = vshrl.u32 %v2384, 7
  %v2386 = vsub.s32 1, %v2385
  %v2387 = vrot.slane %v2378, %v2386
  %v2390 = vadd.f32 %v2376, %v2383
  %v2391 = vadd.f32 %v2377, %v2387
  %v2392 = vmax.f32 %v2390, 0.0
  %v2393 = vmax.f32 %v2391, 0.0
  %v2394 = vpack.c.bf16 %v2392, %v2392
  %v2395 = vpack.c.bf16 %v2393, %v2393
  %v2396 = vld [vmem:[%s5] sm:$0xf]
  %v2397 = vld [vmem:[%s5 + $0x4] sm:$0xf]
  %v2398 = vld [vmem:[%s5 + $0x8] sm:$0xf]
  %v2399 = vld [vmem:[%s5 + $0xc] sm:$0xf]
  %v2400 = vld [vmem:[%s5 + $0x10] sm:$0xf]
  %v2401 = vld [vmem:[%s5 + $0x14] sm:$0xf]
  %v2402 = vld [vmem:[%s5 + $0x18] sm:$0xf]
  %v2403 = vld [vmem:[%s5 + $0x1c] sm:$0xf]
  %v2404 = vld [vmem:[%s5 + $0x20] sm:$0xf]
  %v2405 = vld [vmem:[%s5 + $0x24] sm:$0xf]
  %v2406 = vld [vmem:[%s5 + $0x28] sm:$0xf]
  %v2407 = vld [vmem:[%s5 + $0x2c] sm:$0xf]
  %v2408 = vld [vmem:[%s5 + $0x30] sm:$0xf]
  %v2409 = vld [vmem:[%s5 + $0x34] sm:$0xf]
  %v2410 = vld [vmem:[%s5 + $0x38] sm:$0xf]
  %v2411 = vld [vmem:[%s5 + $0x3c] sm:$0xf]
  %v2412 = vld [vmem:[%s5 + $0x40] sm:$0xf]
  %v2413 = vld [vmem:[%s5 + $0x44] sm:$0xf]
  %v2414 = vld [vmem:[%s5 + $0x48] sm:$0xf]
  %v2415 = vld [vmem:[%s5 + $0x4c] sm:$0xf]
  %v2416 = vld [vmem:[%s5 + $0x50] sm:$0xf]
  %v2417 = vld [vmem:[%s5 + $0x54] sm:$0xf]
  %v2418 = vld [vmem:[%s5 + $0x58] sm:$0xf]
  %v2419 = vld [vmem:[%s5 + $0x5c] sm:$0xf]
  %v2420 = vld [vmem:[%s5 + $0x60] sm:$0xf]
  %v2421 = vld [vmem:[%s5 + $0x64] sm:$0xf]
  %v2422 = vld [vmem:[%s5 + $0x68] sm:$0xf]
  %v2423 = vld [vmem:[%s5 + $0x6c] sm:$0xf]
  %v2424 = vld [vmem:[%s5 + $0x70] sm:$0xf]
  %v2425 = vld [vmem:[%s5 + $0x74] sm:$0xf]
  %v2426 = vld [vmem:[%s5 + $0x78] sm:$0xf]
  %v2427 = vld [vmem:[%s5 + $0x7c] sm:$0xf]
  %v2428 = vld [vmem:[%s6] sm:$0x1]
  %v2430 = vlaneseq
  %v2431 = vshrl.u32 %v2430, 7
  %v2432 = vsub.s32 0, %v2431
  %v2433 = vrot.slane %v2428, %v2432
  %v2467 = vunpack.c.l.b16 %v2396
  %v2468 = vunpack.c.l.b16 %v2397
  %v2469 = vunpack.c.l.b16 %v2398
  %v2470 = vunpack.c.l.b16 %v2399
  %v2471 = vunpack.c.l.b16 %v2400
  %v2472 = vunpack.c.l.b16 %v2401
  %v2473 = vunpack.c.l.b16 %v2402
  %v2474 = vunpack.c.l.b16 %v2403
  %v2475 = vunpack.c.l.b16 %v2404
  %v2476 = vunpack.c.l.b16 %v2405
  %v2477 = vunpack.c.l.b16 %v2406
  %v2478 = vunpack.c.l.b16 %v2407
  %v2479 = vunpack.c.l.b16 %v2408
  %v2480 = vunpack.c.l.b16 %v2409
  %v2481 = vunpack.c.l.b16 %v2410
  %v2482 = vunpack.c.l.b16 %v2411
  %v2483 = vunpack.c.l.b16 %v2412
  %v2484 = vunpack.c.l.b16 %v2413
  %v2485 = vunpack.c.l.b16 %v2414
  %v2486 = vunpack.c.l.b16 %v2415
  %v2487 = vunpack.c.l.b16 %v2416
  %v2488 = vunpack.c.l.b16 %v2417
  %v2489 = vunpack.c.l.b16 %v2418
  %v2490 = vunpack.c.l.b16 %v2419
  %v2491 = vunpack.c.l.b16 %v2420
  %v2492 = vunpack.c.l.b16 %v2421
  %v2493 = vunpack.c.l.b16 %v2422
  %v2494 = vunpack.c.l.b16 %v2423
  %v2495 = vunpack.c.l.b16 %v2424
  %v2496 = vunpack.c.l.b16 %v2425
  %v2497 = vunpack.c.l.b16 %v2426
  %v2498 = vunpack.c.l.b16 %v2427
  %v2499 = vpack.c.b16 %v2468, %v2467
  %v2500 = vpack.c.b16 %v2470, %v2469
  %v2501 = vpack.c.b16 %v2472, %v2471
  %v2502 = vpack.c.b16 %v2474, %v2473
  %v2503 = vpack.c.b16 %v2476, %v2475
  %v2504 = vpack.c.b16 %v2478, %v2477
  %v2505 = vpack.c.b16 %v2480, %v2479
  %v2506 = vpack.c.b16 %v2482, %v2481
  %v2507 = vpack.c.b16 %v2484, %v2483
  %v2508 = vpack.c.b16 %v2486, %v2485
  %v2509 = vpack.c.b16 %v2488, %v2487
  %v2510 = vpack.c.b16 %v2490, %v2489
  %v2511 = vpack.c.b16 %v2492, %v2491
  %v2512 = vpack.c.b16 %v2494, %v2493
  %v2513 = vpack.c.b16 %v2496, %v2495
  %v2514 = vpack.c.b16 %v2498, %v2497
  %2531 = vmatprep.subr.bf16.mxu0 0
  %2532 = vmatpush1.bf16.msra.mxu0 %v2506
  %2533 = vmatprep.subr.bf16.mxu0 0
  %2534 = vmatpush1.bf16.msra.mxu0 %v2505
  %2535 = vmatprep.subr.bf16.mxu0 0
  %2536 = vmatpush1.bf16.msra.mxu0 %v2504
  %2537 = vmatprep.subr.bf16.mxu0 0
  %2538 = vmatpush1.bf16.msra.mxu0 %v2503
  %2539 = vmatprep.subr.bf16.mxu0 0
  %2540 = vmatpush1.bf16.msra.mxu0 %v2502
  %2541 = vmatprep.subr.bf16.mxu0 0
  %2542 = vmatpush1.bf16.msra.mxu0 %v2501
  %2543 = vmatprep.subr.bf16.mxu0 0
  %2544 = vmatpush1.bf16.msra.mxu0 %v2500
  %2545 = vmatprep.subr.bf16.mxu0 0
  %2546 = vmatpush1.bf16.msra.mxu0 %v2499
  %2547 = vmatprep.subr.bf16.mxu0 0
  %2548 = vmatpush2.bf16.msra.mxu0 %v2514
  %2549 = vmatprep.subr.bf16.mxu0 0
  %2550 = vmatpush2.bf16.msra.mxu0 %v2513
  %2551 = vmatprep.subr.bf16.mxu0 0
  %2552 = vmatpush2.bf16.msra.mxu0 %v2512
  %2553 = vmatprep.subr.bf16.mxu0 0
  %2554 = vmatpush2.bf16.msra.mxu0 %v2511
  %2555 = vmatprep.subr.bf16.mxu0 0
  %2556 = vmatpush2.bf16.msra.mxu0 %v2510
  %2557 = vmatprep.subr.bf16.mxu0 0
  %2558 = vmatpush2.bf16.msra.mxu0 %v2509
  %2559 = vmatprep.subr.bf16.mxu0 0
  %2560 = vmatpush2.bf16.msra.mxu0 %v2508
  %2561 = vmatprep.subr.bf16.mxu0 0
  %2562 = vmatpush2.bf16.msra.mxu0 %v2507
  %2563 = vmatprep.mubr.bf16.mxu0 %v2395
  %2564 = vmatmul.mubr.bf16.gmra.mxu0 %v2394
  %v2565 = vpop.f32.mrf.mxu0
  %v2566 = vadd.f32 %v2433, %v2565
  %v2567 = vpop.f32.mrf.mxu0
  %v2568 = vpop.f32.mrf.mxu0
  %v2569 = vpop.f32.mrf.mxu0
  %2570 = vdwg.mxu0
  %vm2571 = vcmask 123904
  %2572 = vst.msk [vmem:[%s7] sm:$0x3] %vm2571, %v2566
  // Predicated region
  $region30: #{encoder_forward.7} parent=0 // pred_check
    _
  $region31: #{encoder_forward.7} parent=0 // pred_check_branch
    %2574 = sbr.rel (0) target = $region33
  $region32: #{encoder_forward.7} parent=0 // pred_region
    _
  $region33: #{encoder_forward.7} parent=0 // pred_fallthru
    _
  // Predicated region
  $region34: #{encoder_forward.7} parent=0 // pred_check
    _
  $region35: #{encoder_forward.7} parent=0 // pred_check_branch
    %2576 = sbr.rel (0) target = $region37
  $region36: #{encoder_forward.7} parent=0 // pred_region
    _
  $region37: #{encoder_forward.7} parent=0 // pred_fallthru
    _

</llo_original>
